<compile_context>
chip_gen: v7x
topology: tpu7x:2x2x1
jax: 0.10.0
libtpu: 0.0.40
codegen_flags: <defaults>
</compile_context>

<pallas_src>
import functools

import jax
import jax.numpy as jnp
import numpy as np
from jax import lax
from jax.experimental import pallas as pl
from jax.experimental.pallas import tpu as pltpu


def _odeblock_rk4_kernel(x_ref, wp_ref, bias_ref, o_ref, *,
                         c, b_blk, hw, nt, dt, lane_shifts):
    """RK4 integration of f(z) = relu(conv3x3(z) + b) for one batch block.

    Packed, channel-major layout (row r = ci*b_blk + b, lane p = h*W + w):
      x_ref, o_ref : (c*b_blk, hw)         state z(0) / z(1)
      wp_ref       : (9, c, c*b_blk, hw)   boundary-masked weight planes
                     wp[t, d, co*b_blk + b, p] = w[co, (co-d)%c, kh, kw] * mask_t[p]
      bias_ref     : (c*b_blk, hw)         bias[co] pre-broadcast (lane-dense)
    """
    bias_plane = bias_ref[...]                      # hoisted once, 2 vregs

    def odefunc(z):                                 # (c*b_blk, hw) -> same
        # Channel-rotated variants of the state: a sublane roll by d*b_blk maps
        # row (co, b) -> ((co - d) % c, b); the batch index is preserved because
        # the roll amount is a multiple of b_blk.  3 sublane rolls per f-eval
        # replace the 36 per-(tap, ci) sublane broadcasts of the old kernel.
        zrot = [z]
        for d in range(1, c):
            zrot.append(pltpu.roll(z, d * b_blk, axis=0))

        acc = bias_plane
        for t in range(9):
            sft = lane_shifts[t]                    # static: (-(dh*W + dw)) % hw
            for d in range(c):
                zz = zrot[d]
                if sft != 0:
                    # zz[:, p] = zrot[d][:, (p + dh*W + dw) % hw]; wrapped lanes
                    # are zeroed by the mask folded into wp.
                    zz = pltpu.roll(zz, sft, axis=1)
                acc = acc + wp_ref[t, d] * zz       # full-vreg VALU FMA
        return jnp.maximum(acc, 0.0)

    def rk4_step(_, z):
        # Incremental combination: only z, acc, k live simultaneously.
        k = odefunc(z)                              # k1
        acc = k
        k = odefunc(z + (0.5 * dt) * k)             # k2
        acc = acc + 2.0 * k
        k = odefunc(z + (0.5 * dt) * k)             # k3
        acc = acc + 2.0 * k
        k = odefunc(z + dt * k)                     # k4
        return z + (dt / 6.0) * (acc + k)

    # 4 f-evals of one RK4 step stay unrolled (Python); the Nt loop is rolled
    # to bound live ranges / vreg pressure (review item on spills).
    zf = lax.fori_loop(0, nt, rk4_step, x_ref[...], unroll=False)
    o_ref[...] = zf


def _precompute_planes(conv_w_oihw, conv_b, hh, ww, b_blk):
    """Lane-dense, boundary-masked weight planes + bias plane (wrapper-side)."""
    c = conv_w_oihw.shape[0]
    hw = hh * ww
    rows = c * b_blk
    pos = np.arange(hw)
    prow, pcol = pos // ww, pos % ww
    co = np.arange(c)

    planes = []
    lane_shifts = []
    for kh in range(3):
        for kw in range(3):
            dh, dw = kh - 1, kw - 1
            lane_shifts.append((-(dh * ww + dw)) % hw)
            valid = ((prow + dh >= 0) & (prow + dh < hh) &
                     (pcol + dw >= 0) & (pcol + dw < ww))
            mask = jnp.asarray(valid.astype(np.float32))                 # (hw,)
            per_d = []
            for d in range(c):
                ci = (co - d) % c
                wvec = conv_w_oihw[co, ci, kh, kw].astype(jnp.float32)   # (c,)
                wrows = jnp.repeat(wvec, b_blk)                          # (rows,)
                per_d.append(wrows[:, None] * mask[None, :])             # (rows, hw)
            planes.append(jnp.stack(per_d, axis=0))                      # (c, rows, hw)
    wp = jnp.stack(planes, axis=0)                                       # (9, c, rows, hw)
    bias_plane = jnp.broadcast_to(
        jnp.repeat(conv_b.astype(jnp.float32), b_blk)[:, None], (rows, hw))
    return wp, bias_plane, tuple(lane_shifts)


def odeblock_forward(x_nchw, conv_w_oihw, conv_b, nt, reverse=False):
    """ODEBlock.forward: RK4 with Nt steps of f(z)=relu(conv3x3(z)+b)."""
    n, c, hh, ww = x_nchw.shape
    hw = hh * ww

    # Fill the 8-sublane vreg axis: pack b_blk batch elements per block so that
    # the per-block state is (c*b_blk, hw) with c*b_blk a multiple of 8 where
    # possible, and the batch grid has N/b_blk steps.
    b_blk = min(n, max(1, 8 // c)) if c < 8 else 1
    # TODO(synk): pad the batch when n % b_blk != 0 (not needed at test sizes).
    while n % b_blk != 0:
        b_blk -= 1
    rows = c * b_blk
    nb = n // b_blk

    x_flat = x_nchw.reshape(n, c, hw).astype(jnp.float32)
    xp = (x_flat.reshape(nb, b_blk, c, hw)
                .transpose(0, 2, 1, 3)                 # channel-major rows
                .reshape(nb, rows, hw))

    wp, bias_plane, lane_shifts = _precompute_planes(
        conv_w_oihw, conv_b, hh, ww, b_blk)
    dt = (-1.0 if reverse else 1.0) / float(nt)

    kernel = functools.partial(
        _odeblock_rk4_kernel, c=c, b_blk=b_blk, hw=hw,
        nt=int(nt), dt=dt, lane_shifts=lane_shifts)

    out_p = pl.pallas_call(
        kernel,
        out_shape=jax.ShapeDtypeStruct((nb, rows, hw), jnp.float32),
        grid=(nb,),
        in_specs=[
            pl.BlockSpec((None, rows, hw), lambda i: (i, 0, 0)),    # state block
            pl.BlockSpec((9, c, rows, hw), lambda i: (0, 0, 0, 0)),  # weight planes
            pl.BlockSpec((rows, hw), lambda i: (0, 0)),              # bias plane
        ],
        out_specs=pl.BlockSpec((None, rows, hw), lambda i: (i, 0, 0)),
        compiler_params=pltpu.CompilerParams(
            dimension_semantics=("parallel",),   # v7x: shard batch blocks across TCs
        ),
    )(xp, wp, bias_plane)

    out = (out_p.reshape(nb, c, b_blk, hw)
                .transpose(0, 2, 1, 3)
                .reshape(n, c, hh, ww))
    return out


def odeblock_reference(x_nchw, conv_w_oihw, conv_b, nt, reverse=False):
    """Pure-JAX reference (NCHW conv), mirrors the PyTorch forward."""
    dt = (-1.0 if reverse else 1.0) / float(nt)

    def f(z):
        y = lax.conv_general_dilated(
            z, conv_w_oihw, window_strides=(1, 1), padding="SAME",
            dimension_numbers=("NCHW", "OIHW", "NCHW"))
        y = y + conv_b[None, :, None, None]
        return jnp.maximum(y, 0.0)

    z = x_nchw.astype(jnp.float32)
    for _ in range(nt):
        k1 = f(z)
        k2 = f(z + 0.5 * dt * k1)
        k3 = f(z + 0.5 * dt * k2)
        k4 = f(z + dt * k3)
        z = z + (dt / 6.0) * (k1 + 2.0 * k2 + 2.0 * k3 + k4)
    return z


if __name__ == "__main__":
    N, C, H, W = 2, 4, 16, 16
    Nt = 4  # ODEBlock(odefunc, Nt) -> options = {'Nt': 4, 'method': 'RK4'}

    key = jax.random.PRNGKey(0)
    kx, kw, kb = jax.random.split(key, 3)

    x = jax.random.normal(kx, (N, C, H, W), dtype=jnp.float32)
    # Deterministic conv3x3 params (PyTorch Conv2d(C, C, 3, padding=1) shapes).
    bound = 1.0 / np.sqrt(C * 3 * 3)
    conv_w = jax.random.uniform(kw, (C, C, 3, 3), jnp.float32, -bound, bound)
    conv_b = jax.random.uniform(kb, (C,), jnp.float32, -bound, bound)

    out = odeblock_forward(x, conv_w, conv_b, Nt, reverse=False)
    out = jax.block_until_ready(out)

    ref = jax.block_until_ready(
        odeblock_reference(x, conv_w, conv_b, Nt, reverse=False))

    np.testing.assert_allclose(np.asarray(out), np.asarray(ref),
                               rtol=1e-3, atol=1e-3)
    assert out.shape == x.shape and out.dtype == jnp.float32

    print("KERNEL_OK")
</pallas_src>

<mosaic_0001>
module attributes {stable_mosaic.version = 11 : i64} {
  func.func @_odeblock_rk4_kernel(%arg0: i32, %arg1: memref<1x8x256xf32, #tpu.memory_space<vmem>>, %arg2: memref<9x4x8x256xf32, #tpu.memory_space<vmem>>, %arg3: memref<8x256xf32, #tpu.memory_space<vmem>>, %arg4: memref<1x8x256xf32, #tpu.memory_space<vmem>>) attributes {dimension_semantics = [#tpu.dimension_semantics<parallel>], iteration_bounds = array<i64: 1>, scalar_prefetch = 0 : i64, scratch_operands = 0 : i64, tpu.core_type = #tpu.core_type<tc>, window_params = [{transform_indices = @transform_0, window_bounds = array<i64: 1, 8, 256>}, {pipeline_mode = #tpu.pipeline_mode<synchronous>, transform_indices = @transform_1, window_bounds = array<i64: 9, 4, 8, 256>}, {pipeline_mode = #tpu.pipeline_mode<synchronous>, transform_indices = @transform_2, window_bounds = array<i64: 8, 256>}, {transform_indices = @transform_3, window_bounds = array<i64: 1, 8, 256>}]} {
    %c0 = arith.constant 0 : index
    %c0_0 = arith.constant 0 : index
    %0 = vector.load %arg3[%c0, %c0_0] : memref<8x256xf32, #tpu.memory_space<vmem>>, vector<8x256xf32>
    %c0_1 = arith.constant 0 : index
    %c0_2 = arith.constant 0 : index
    %c0_3 = arith.constant 0 : index
    %1 = vector.load %arg1[%c0_1, %c0_2, %c0_3] : memref<1x8x256xf32, #tpu.memory_space<vmem>>, vector<1x8x256xf32>
    %2 = vector.shape_cast %1 : vector<1x8x256xf32> to vector<8x256xf32>
    %c0_i32 = arith.constant 0 : i32
    %c4_i32 = arith.constant 4 : i32
    %3 = arith.addi %c0_i32, %c4_i32 : i32
    %c1_i32 = arith.constant 1 : i32
    %4 = scf.for %arg5 = %c0_i32 to %3 step %c1_i32 iter_args(%arg6 = %2) -> (vector<8x256xf32>)  : i32 {
      %c2_i32 = arith.constant 2 : i32
      %8 = tpu.dynamic_rotate %arg6 by %c2_i32 dim 0 : vector<8x256xf32>, i32 -> vector<8x256xf32>
      %c4_i32_7 = arith.constant 4 : i32
      %9 = tpu.dynamic_rotate %arg6 by %c4_i32_7 dim 0 : vector<8x256xf32>, i32 -> vector<8x256xf32>
      %c6_i32 = arith.constant 6 : i32
      %10 = tpu.dynamic_rotate %arg6 by %c6_i32 dim 0 : vector<8x256xf32>, i32 -> vector<8x256xf32>
      %c17_i32 = arith.constant 17 : i32
      %11 = tpu.dynamic_rotate %arg6 by %c17_i32 dim 1 : vector<8x256xf32>, i32 -> vector<8x256xf32>
      %c0_8 = arith.constant 0 : index
      %c0_9 = arith.constant 0 : index
      %c0_10 = arith.constant 0 : index
      %c0_11 = arith.constant 0 : index
      %12 = vector.load %arg2[%c0_8, %c0_9, %c0_10, %c0_11] : memref<9x4x8x256xf32, #tpu.memory_space<vmem>>, vector<1x1x8x256xf32>
      %13 = vector.shape_cast %12 : vector<1x1x8x256xf32> to vector<8x256xf32>
      %14 = arith.mulf %13, %11 : vector<8x256xf32>
      %15 = arith.addf %0, %14 : vector<8x256xf32>
      %c17_i32_12 = arith.constant 17 : i32
      %16 = tpu.dynamic_rotate %8 by %c17_i32_12 dim 1 : vector<8x256xf32>, i32 -> vector<8x256xf32>
      %c0_13 = arith.constant 0 : index
      %c1 = arith.constant 1 : index
      %c0_14 = arith.constant 0 : index
      %c0_15 = arith.constant 0 : index
      %17 = vector.load %arg2[%c0_13, %c1, %c0_14, %c0_15] : memref<9x4x8x256xf32, #tpu.memory_space<vmem>>, vector<1x1x8x256xf32>
      %18 = vector.shape_cast %17 : vector<1x1x8x256xf32> to vector<8x256xf32>
      %19 = arith.mulf %18, %16 : vector<8x256xf32>
      %20 = arith.addf %15, %19 : vector<8x256xf32>
      %c17_i32_16 = arith.constant 17 : i32
      %21 = tpu.dynamic_rotate %9 by %c17_i32_16 dim 1 : vector<8x256xf32>, i32 -> vector<8x256xf32>
      %c0_17 = arith.constant 0 : index
      %c2 = arith.constant 2 : index
      %c0_18 = arith.constant 0 : index
      %c0_19 = arith.constant 0 : index
      %22 = vector.load %arg2[%c0_17, %c2, %c0_18, %c0_19] : memref<9x4x8x256xf32, #tpu.memory_space<vmem>>, vector<1x1x8x256xf32>
      %23 = vector.shape_cast %22 : vector<1x1x8x256xf32> to vector<8x256xf32>
      %24 = arith.mulf %23, %21 : vector<8x256xf32>
      %25 = arith.addf %20, %24 : vector<8x256xf32>
      %c17_i32_20 = arith.constant 17 : i32
      %26 = tpu.dynamic_rotate %10 by %c17_i32_20 dim 1 : vector<8x256xf32>, i32 -> vector<8x256xf32>
      %c0_21 = arith.constant 0 : index
      %c3 = arith.constant 3 : index
      %c0_22 = arith.constant 0 : index
      %c0_23 = arith.constant 0 : index
      %27 = vector.load %arg2[%c0_21, %c3, %c0_22, %c0_23] : memref<9x4x8x256xf32, #tpu.memory_space<vmem>>, vector<1x1x8x256xf32>
      %28 = vector.shape_cast %27 : vector<1x1x8x256xf32> to vector<8x256xf32>
      %29 = arith.mulf %28, %26 : vector<8x256xf32>
      %30 = arith.addf %25, %29 : vector<8x256xf32>
      %c16_i32 = arith.constant 16 : i32
      %31 = tpu.dynamic_rotate %arg6 by %c16_i32 dim 1 : vector<8x256xf32>, i32 -> vector<8x256xf32>
      %c1_24 = arith.constant 1 : index
      %c0_25 = arith.constant 0 : index
      %c0_26 = arith.constant 0 : index
      %c0_27 = arith.constant 0 : index
      %32 = vector.load %arg2[%c1_24, %c0_25, %c0_26, %c0_27] : memref<9x4x8x256xf32, #tpu.memory_space<vmem>>, vector<1x1x8x256xf32>
      %33 = vector.shape_cast %32 : vector<1x1x8x256xf32> to vector<8x256xf32>
      %34 = arith.mulf %33, %31 : vector<8x256xf32>
      %35 = arith.addf %30, %34 : vector<8x256xf32>
      %c16_i32_28 = arith.constant 16 : i32
      %36 = tpu.dynamic_rotate %8 by %c16_i32_28 dim 1 : vector<8x256xf32>, i32 -> vector<8x256xf32>
      %c1_29 = arith.constant 1 : index
      %c1_30 = arith.constant 1 : index
      %c0_31 = arith.constant 0 : index
      %c0_32 = arith.constant 0 : index
      %37 = vector.load %arg2[%c1_29, %c1_30, %c0_31, %c0_32] : memref<9x4x8x256xf32, #tpu.memory_space<vmem>>, vector<1x1x8x256xf32>
      %38 = vector.shape_cast %37 : vector<1x1x8x256xf32> to vector<8x256xf32>
      %39 = arith.mulf %38, %36 : vector<8x256xf32>
      %40 = arith.addf %35, %39 : vector<8x256xf32>
      %c16_i32_33 = arith.constant 16 : i32
      %41 = tpu.dynamic_rotate %9 by %c16_i32_33 dim 1 : vector<8x256xf32>, i32 -> vector<8x256xf32>
      %c1_34 = arith.constant 1 : index
      %c2_35 = arith.constant 2 : index
      %c0_36 = arith.constant 0 : index
      %c0_37 = arith.constant 0 : index
      %42 = vector.load %arg2[%c1_34, %c2_35, %c0_36, %c0_37] : memref<9x4x8x256xf32, #tpu.memory_space<vmem>>, vector<1x1x8x256xf32>
      %43 = vector.shape_cast %42 : vector<1x1x8x256xf32> to vector<8x256xf32>
      %44 = arith.mulf %43, %41 : vector<8x256xf32>
      %45 = arith.addf %40, %44 : vector<8x256xf32>
      %c16_i32_38 = arith.constant 16 : i32
      %46 = tpu.dynamic_rotate %10 by %c16_i32_38 dim 1 : vector<8x256xf32>, i32 -> vector<8x256xf32>
      %c1_39 = arith.constant 1 : index
      %c3_40 = arith.constant 3 : index
      %c0_41 = arith.constant 0 : index
      %c0_42 = arith.constant 0 : index
      %47 = vector.load %arg2[%c1_39, %c3_40, %c0_41, %c0_42] : memref<9x4x8x256xf32, #tpu.memory_space<vmem>>, vector<1x1x8x256xf32>
      %48 = vector.shape_cast %47 : vector<1x1x8x256xf32> to vector<8x256xf32>
      %49 = arith.mulf %48, %46 : vector<8x256xf32>
      %50 = arith.addf %45, %49 : vector<8x256xf32>
      %c15_i32 = arith.constant 15 : i32
      %51 = tpu.dynamic_rotate %arg6 by %c15_i32 dim 1 : vector<8x256xf32>, i32 -> vector<8x256xf32>
      %c2_43 = arith.constant 2 : index
      %c0_44 = arith.constant 0 : index
      %c0_45 = arith.constant 0 : index
      %c0_46 = arith.constant 0 : index
      %52 = vector.load %arg2[%c2_43, %c0_44, %c0_45, %c0_46] : memref<9x4x8x256xf32, #tpu.memory_space<vmem>>, vector<1x1x8x256xf32>
      %53 = vector.shape_cast %52 : vector<1x1x8x256xf32> to vector<8x256xf32>
      %54 = arith.mulf %53, %51 : vector<8x256xf32>
      %55 = arith.addf %50, %54 : vector<8x256xf32>
      %c15_i32_47 = arith.constant 15 : i32
      %56 = tpu.dynamic_rotate %8 by %c15_i32_47 dim 1 : vector<8x256xf32>, i32 -> vector<8x256xf32>
      %c2_48 = arith.constant 2 : index
      %c1_49 = arith.constant 1 : index
      %c0_50 = arith.constant 0 : index
      %c0_51 = arith.constant 0 : index
      %57 = vector.load %arg2[%c2_48, %c1_49, %c0_50, %c0_51] : memref<9x4x8x256xf32, #tpu.memory_space<vmem>>, vector<1x1x8x256xf32>
      %58 = vector.shape_cast %57 : vector<1x1x8x256xf32> to vector<8x256xf32>
      %59 = arith.mulf %58, %56 : vector<8x256xf32>
      %60 = arith.addf %55, %59 : vector<8x256xf32>
      %c15_i32_52 = arith.constant 15 : i32
      %61 = tpu.dynamic_rotate %9 by %c15_i32_52 dim 1 : vector<8x256xf32>, i32 -> vector<8x256xf32>
      %c2_53 = arith.constant 2 : index
      %c2_54 = arith.constant 2 : index
      %c0_55 = arith.constant 0 : index
      %c0_56 = arith.constant 0 : index
      %62 = vector.load %arg2[%c2_53, %c2_54, %c0_55, %c0_56] : memref<9x4x8x256xf32, #tpu.memory_space<vmem>>, vector<1x1x8x256xf32>
      %63 = vector.shape_cast %62 : vector<1x1x8x256xf32> to vector<8x256xf32>
      %64 = arith.mulf %63, %61 : vector<8x256xf32>
      %65 = arith.addf %60, %64 : vector<8x256xf32>
      %c15_i32_57 = arith.constant 15 : i32
      %66 = tpu.dynamic_rotate %10 by %c15_i32_57 dim 1 : vector<8x256xf32>, i32 -> vector<8x256xf32>
      %c2_58 = arith.constant 2 : index
      %c3_59 = arith.constant 3 : index
      %c0_60 = arith.constant 0 : index
      %c0_61 = arith.constant 0 : index
      %67 = vector.load %arg2[%c2_58, %c3_59, %c0_60, %c0_61] : memref<9x4x8x256xf32, #tpu.memory_space<vmem>>, vector<1x1x8x256xf32>
      %68 = vector.shape_cast %67 : vector<1x1x8x256xf32> to vector<8x256xf32>
      %69 = arith.mulf %68, %66 : vector<8x256xf32>
      %70 = arith.addf %65, %69 : vector<8x256xf32>
      %c1_i32_62 = arith.constant 1 : i32
      %71 = tpu.dynamic_rotate %arg6 by %c1_i32_62 dim 1 : vector<8x256xf32>, i32 -> vector<8x256xf32>
      %c3_63 = arith.constant 3 : index
      %c0_64 = arith.constant 0 : index
      %c0_65 = arith.constant 0 : index
      %c0_66 = arith.constant 0 : index
      %72 = vector.load %arg2[%c3_63, %c0_64, %c0_65, %c0_66] : memref<9x4x8x256xf32, #tpu.memory_space<vmem>>, vector<1x1x8x256xf32>
      %73 = vector.shape_cast %72 : vector<1x1x8x256xf32> to vector<8x256xf32>
      %74 = arith.mulf %73, %71 : vector<8x256xf32>
      %75 = arith.addf %70, %74 : vector<8x256xf32>
      %c1_i32_67 = arith.constant 1 : i32
      %76 = tpu.dynamic_rotate %8 by %c1_i32_67 dim 1 : vector<8x256xf32>, i32 -> vector<8x256xf32>
      %c3_68 = arith.constant 3 : index
      %c1_69 = arith.constant 1 : index
      %c0_70 = arith.constant 0 : index
      %c0_71 = arith.constant 0 : index
      %77 = vector.load %arg2[%c3_68, %c1_69, %c0_70, %c0_71] : memref<9x4x8x256xf32, #tpu.memory_space<vmem>>, vector<1x1x8x256xf32>
      %78 = vector.shape_cast %77 : vector<1x1x8x256xf32> to vector<8x256xf32>
      %79 = arith.mulf %78, %76 : vector<8x256xf32>
      %80 = arith.addf %75, %79 : vector<8x256xf32>
      %c1_i32_72 = arith.constant 1 : i32
      %81 = tpu.dynamic_rotate %9 by %c1_i32_72 dim 1 : vector<8x256xf32>, i32 -> vector<8x256xf32>
      %c3_73 = arith.constant 3 : index
      %c2_74 = arith.constant 2 : index
      %c0_75 = arith.constant 0 : index
      %c0_76 = arith.constant 0 : index
      %82 = vector.load %arg2[%c3_73, %c2_74, %c0_75, %c0_76] : memref<9x4x8x256xf32, #tpu.memory_space<vmem>>, vector<1x1x8x256xf32>
      %83 = vector.shape_cast %82 : vector<1x1x8x256xf32> to vector<8x256xf32>
      %84 = arith.mulf %83, %81 : vector<8x256xf32>
      %85 = arith.addf %80, %84 : vector<8x256xf32>
      %c1_i32_77 = arith.constant 1 : i32
      %86 = tpu.dynamic_rotate %10 by %c1_i32_77 dim 1 : vector<8x256xf32>, i32 -> vector<8x256xf32>
      %c3_78 = arith.constant 3 : index
      %c3_79 = arith.constant 3 : index
      %c0_80 = arith.constant 0 : index
      %c0_81 = arith.constant 0 : index
      %87 = vector.load %arg2[%c3_78, %c3_79, %c0_80, %c0_81] : memref<9x4x8x256xf32, #tpu.memory_space<vmem>>, vector<1x1x8x256xf32>
      %88 = vector.shape_cast %87 : vector<1x1x8x256xf32> to vector<8x256xf32>
      %89 = arith.mulf %88, %86 : vector<8x256xf32>
      %90 = arith.addf %85, %89 : vector<8x256xf32>
      %c4 = arith.constant 4 : index
      %c0_82 = arith.constant 0 : index
      %c0_83 = arith.constant 0 : index
      %c0_84 = arith.constant 0 : index
      %91 = vector.load %arg2[%c4, %c0_82, %c0_83, %c0_84] : memref<9x4x8x256xf32, #tpu.memory_space<vmem>>, vector<1x1x8x256xf32>
      %92 = vector.shape_cast %91 : vector<1x1x8x256xf32> to vector<8x256xf32>
      %93 = arith.mulf %92, %arg6 : vector<8x256xf32>
      %94 = arith.addf %90, %93 : vector<8x256xf32>
      %c4_85 = arith.constant 4 : index
      %c1_86 = arith.constant 1 : index
      %c0_87 = arith.constant 0 : index
      %c0_88 = arith.constant 0 : index
      %95 = vector.load %arg2[%c4_85, %c1_86, %c0_87, %c0_88] : memref<9x4x8x256xf32, #tpu.memory_space<vmem>>, vector<1x1x8x256xf32>
      %96 = vector.shape_cast %95 : vector<1x1x8x256xf32> to vector<8x256xf32>
      %97 = arith.mulf %96, %8 : vector<8x256xf32>
      %98 = arith.addf %94, %97 : vector<8x256xf32>
      %c4_89 = arith.constant 4 : index
      %c2_90 = arith.constant 2 : index
      %c0_91 = arith.constant 0 : index
      %c0_92 = arith.constant 0 : index
      %99 = vector.load %arg2[%c4_89, %c2_90, %c0_91, %c0_92] : memref<9x4x8x256xf32, #tpu.memory_space<vmem>>, vector<1x1x8x256xf32>
      %100 = vector.shape_cast %99 : vector<1x1x8x256xf32> to vector<8x256xf32>
      %101 = arith.mulf %100, %9 : vector<8x256xf32>
      %102 = arith.addf %98, %101 : vector<8x256xf32>
      %c4_93 = arith.constant 4 : index
      %c3_94 = arith.constant 3 : index
      %c0_95 = arith.constant 0 : index
      %c0_96 = arith.constant 0 : index
      %103 = vector.load %arg2[%c4_93, %c3_94, %c0_95, %c0_96] : memref<9x4x8x256xf32, #tpu.memory_space<vmem>>, vector<1x1x8x256xf32>
      %104 = vector.shape_cast %103 : vector<1x1x8x256xf32> to vector<8x256xf32>
      %105 = arith.mulf %104, %10 : vector<8x256xf32>
      %106 = arith.addf %102, %105 : vector<8x256xf32>
      %c255_i32 = arith.constant 255 : i32
      %107 = tpu.dynamic_rotate %arg6 by %c255_i32 dim 1 : vector<8x256xf32>, i32 -> vector<8x256xf32>
      %c5 = arith.constant 5 : index
      %c0_97 = arith.constant 0 : index
      %c0_98 = arith.constant 0 : index
      %c0_99 = arith.constant 0 : index
      %108 = vector.load %arg2[%c5, %c0_97, %c0_98, %c0_99] : memref<9x4x8x256xf32, #tpu.memory_space<vmem>>, vector<1x1x8x256xf32>
      %109 = vector.shape_cast %108 : vector<1x1x8x256xf32> to vector<8x256xf32>
      %110 = arith.mulf %109, %107 : vector<8x256xf32>
      %111 = arith.addf %106, %110 : vector<8x256xf32>
      %c255_i32_100 = arith.constant 255 : i32
      %112 = tpu.dynamic_rotate %8 by %c255_i32_100 dim 1 : vector<8x256xf32>, i32 -> vector<8x256xf32>
      %c5_101 = arith.constant 5 : index
      %c1_102 = arith.constant 1 : index
      %c0_103 = arith.constant 0 : index
      %c0_104 = arith.constant 0 : index
      %113 = vector.load %arg2[%c5_101, %c1_102, %c0_103, %c0_104] : memref<9x4x8x256xf32, #tpu.memory_space<vmem>>, vector<1x1x8x256xf32>
      %114 = vector.shape_cast %113 : vector<1x1x8x256xf32> to vector<8x256xf32>
      %115 = arith.mulf %114, %112 : vector<8x256xf32>
      %116 = arith.addf %111, %115 : vector<8x256xf32>
      %c255_i32_105 = arith.constant 255 : i32
      %117 = tpu.dynamic_rotate %9 by %c255_i32_105 dim 1 : vector<8x256xf32>, i32 -> vector<8x256xf32>
      %c5_106 = arith.constant 5 : index
      %c2_107 = arith.constant 2 : index
      %c0_108 = arith.constant 0 : index
      %c0_109 = arith.constant 0 : index
      %118 = vector.load %arg2[%c5_106, %c2_107, %c0_108, %c0_109] : memref<9x4x8x256xf32, #tpu.memory_space<vmem>>, vector<1x1x8x256xf32>
      %119 = vector.shape_cast %118 : vector<1x1x8x256xf32> to vector<8x256xf32>
      %120 = arith.mulf %119, %117 : vector<8x256xf32>
      %121 = arith.addf %116, %120 : vector<8x256xf32>
      %c255_i32_110 = arith.constant 255 : i32
      %122 = tpu.dynamic_rotate %10 by %c255_i32_110 dim 1 : vector<8x256xf32>, i32 -> vector<8x256xf32>
      %c5_111 = arith.constant 5 : index
      %c3_112 = arith.constant 3 : index
      %c0_113 = arith.constant 0 : index
      %c0_114 = arith.constant 0 : index
      %123 = vector.load %arg2[%c5_111, %c3_112, %c0_113, %c0_114] : memref<9x4x8x256xf32, #tpu.memory_space<vmem>>, vector<1x1x8x256xf32>
      %124 = vector.shape_cast %123 : vector<1x1x8x256xf32> to vector<8x256xf32>
      %125 = arith.mulf %124, %122 : vector<8x256xf32>
      %126 = arith.addf %121, %125 : vector<8x256xf32>
      %c241_i32 = arith.constant 241 : i32
      %127 = tpu.dynamic_rotate %arg6 by %c241_i32 dim 1 : vector<8x256xf32>, i32 -> vector<8x256xf32>
      %c6 = arith.constant 6 : index
      %c0_115 = arith.constant 0 : index
      %c0_116 = arith.constant 0 : index
      %c0_117 = arith.constant 0 : index
      %128 = vector.load %arg2[%c6, %c0_115, %c0_116, %c0_117] : memref<9x4x8x256xf32, #tpu.memory_space<vmem>>, vector<1x1x8x256xf32>
      %129 = vector.shape_cast %128 : vector<1x1x8x256xf32> to vector<8x256xf32>
      %130 = arith.mulf %129, %127 : vector<8x256xf32>
      %131 = arith.addf %126, %130 : vector<8x256xf32>
      %c241_i32_118 = arith.constant 241 : i32
      %132 = tpu.dynamic_rotate %8 by %c241_i32_118 dim 1 : vector<8x256xf32>, i32 -> vector<8x256xf32>
      %c6_119 = arith.constant 6 : index
      %c1_120 = arith.constant 1 : index
      %c0_121 = arith.constant 0 : index
      %c0_122 = arith.constant 0 : index
      %133 = vector.load %arg2[%c6_119, %c1_120, %c0_121, %c0_122] : memref<9x4x8x256xf32, #tpu.memory_space<vmem>>, vector<1x1x8x256xf32>
      %134 = vector.shape_cast %133 : vector<1x1x8x256xf32> to vector<8x256xf32>
      %135 = arith.mulf %134, %132 : vector<8x256xf32>
      %136 = arith.addf %131, %135 : vector<8x256xf32>
      %c241_i32_123 = arith.constant 241 : i32
      %137 = tpu.dynamic_rotate %9 by %c241_i32_123 dim 1 : vector<8x256xf32>, i32 -> vector<8x256xf32>
      %c6_124 = arith.constant 6 : index
      %c2_125 = arith.constant 2 : index
      %c0_126 = arith.constant 0 : index
      %c0_127 = arith.constant 0 : index
      %138 = vector.load %arg2[%c6_124, %c2_125, %c0_126, %c0_127] : memref<9x4x8x256xf32, #tpu.memory_space<vmem>>, vector<1x1x8x256xf32>
      %139 = vector.shape_cast %138 : vector<1x1x8x256xf32> to vector<8x256xf32>
      %140 = arith.mulf %139, %137 : vector<8x256xf32>
      %141 = arith.addf %136, %140 : vector<8x256xf32>
      %c241_i32_128 = arith.constant 241 : i32
      %142 = tpu.dynamic_rotate %10 by %c241_i32_128 dim 1 : vector<8x256xf32>, i32 -> vector<8x256xf32>
      %c6_129 = arith.constant 6 : index
      %c3_130 = arith.constant 3 : index
      %c0_131 = arith.constant 0 : index
      %c0_132 = arith.constant 0 : index
      %143 = vector.load %arg2[%c6_129, %c3_130, %c0_131, %c0_132] : memref<9x4x8x256xf32, #tpu.memory_space<vmem>>, vector<1x1x8x256xf32>
      %144 = vector.shape_cast %143 : vector<1x1x8x256xf32> to vector<8x256xf32>
      %145 = arith.mulf %144, %142 : vector<8x256xf32>
      %146 = arith.addf %141, %145 : vector<8x256xf32>
      %c240_i32 = arith.constant 240 : i32
      %147 = tpu.dynamic_rotate %arg6 by %c240_i32 dim 1 : vector<8x256xf32>, i32 -> vector<8x256xf32>
      %c7 = arith.constant 7 : index
      %c0_133 = arith.constant 0 : index
      %c0_134 = arith.constant 0 : index
      %c0_135 = arith.constant 0 : index
      %148 = vector.load %arg2[%c7, %c0_133, %c0_134, %c0_135] : memref<9x4x8x256xf32, #tpu.memory_space<vmem>>, vector<1x1x8x256xf32>
      %149 = vector.shape_cast %148 : vector<1x1x8x256xf32> to vector<8x256xf32>
      %150 = arith.mulf %149, %147 : vector<8x256xf32>
      %151 = arith.addf %146, %150 : vector<8x256xf32>
      %c240_i32_136 = arith.constant 240 : i32
      %152 = tpu.dynamic_rotate %8 by %c240_i32_136 dim 1 : vector<8x256xf32>, i32 -> vector<8x256xf32>
      %c7_137 = arith.constant 7 : index
      %c1_138 = arith.constant 1 : index
      %c0_139 = arith.constant 0 : index
      %c0_140 = arith.constant 0 : index
      %153 = vector.load %arg2[%c7_137, %c1_138, %c0_139, %c0_140] : memref<9x4x8x256xf32, #tpu.memory_space<vmem>>, vector<1x1x8x256xf32>
      %154 = vector.shape_cast %153 : vector<1x1x8x256xf32> to vector<8x256xf32>
      %155 = arith.mulf %154, %152 : vector<8x256xf32>
      %156 = arith.addf %151, %155 : vector<8x256xf32>
      %c240_i32_141 = arith.constant 240 : i32
      %157 = tpu.dynamic_rotate %9 by %c240_i32_141 dim 1 : vector<8x256xf32>, i32 -> vector<8x256xf32>
      %c7_142 = arith.constant 7 : index
      %c2_143 = arith.constant 2 : index
      %c0_144 = arith.constant 0 : index
      %c0_145 = arith.constant 0 : index
      %158 = vector.load %arg2[%c7_142, %c2_143, %c0_144, %c0_145] : memref<9x4x8x256xf32, #tpu.memory_space<vmem>>, vector<1x1x8x256xf32>
      %159 = vector.shape_cast %158 : vector<1x1x8x256xf32> to vector<8x256xf32>
      %160 = arith.mulf %159, %157 : vector<8x256xf32>
      %161 = arith.addf %156, %160 : vector<8x256xf32>
      %c240_i32_146 = arith.constant 240 : i32
      %162 = tpu.dynamic_rotate %10 by %c240_i32_146 dim 1 : vector<8x256xf32>, i32 -> vector<8x256xf32>
      %c7_147 = arith.constant 7 : index
      %c3_148 = arith.constant 3 : index
      %c0_149 = arith.constant 0 : index
      %c0_150 = arith.constant 0 : index
      %163 = vector.load %arg2[%c7_147, %c3_148, %c0_149, %c0_150] : memref<9x4x8x256xf32, #tpu.memory_space<vmem>>, vector<1x1x8x256xf32>
      %164 = vector.shape_cast %163 : vector<1x1x8x256xf32> to vector<8x256xf32>
      %165 = arith.mulf %164, %162 : vector<8x256xf32>
      %166 = arith.addf %161, %165 : vector<8x256xf32>
      %c239_i32 = arith.constant 239 : i32
      %167 = tpu.dynamic_rotate %arg6 by %c239_i32 dim 1 : vector<8x256xf32>, i32 -> vector<8x256xf32>
      %c8 = arith.constant 8 : index
      %c0_151 = arith.constant 0 : index
      %c0_152 = arith.constant 0 : index
      %c0_153 = arith.constant 0 : index
      %168 = vector.load %arg2[%c8, %c0_151, %c0_152, %c0_153] : memref<9x4x8x256xf32, #tpu.memory_space<vmem>>, vector<1x1x8x256xf32>
      %169 = vector.shape_cast %168 : vector<1x1x8x256xf32> to vector<8x256xf32>
      %170 = arith.mulf %169, %167 : vector<8x256xf32>
      %171 = arith.addf %166, %170 : vector<8x256xf32>
      %c239_i32_154 = arith.constant 239 : i32
      %172 = tpu.dynamic_rotate %8 by %c239_i32_154 dim 1 : vector<8x256xf32>, i32 -> vector<8x256xf32>
      %c8_155 = arith.constant 8 : index
      %c1_156 = arith.constant 1 : index
      %c0_157 = arith.constant 0 : index
      %c0_158 = arith.constant 0 : index
      %173 = vector.load %arg2[%c8_155, %c1_156, %c0_157, %c0_158] : memref<9x4x8x256xf32, #tpu.memory_space<vmem>>, vector<1x1x8x256xf32>
      %174 = vector.shape_cast %173 : vector<1x1x8x256xf32> to vector<8x256xf32>
      %175 = arith.mulf %174, %172 : vector<8x256xf32>
      %176 = arith.addf %171, %175 : vector<8x256xf32>
      %c239_i32_159 = arith.constant 239 : i32
      %177 = tpu.dynamic_rotate %9 by %c239_i32_159 dim 1 : vector<8x256xf32>, i32 -> vector<8x256xf32>
      %c8_160 = arith.constant 8 : index
      %c2_161 = arith.constant 2 : index
      %c0_162 = arith.constant 0 : index
      %c0_163 = arith.constant 0 : index
      %178 = vector.load %arg2[%c8_160, %c2_161, %c0_162, %c0_163] : memref<9x4x8x256xf32, #tpu.memory_space<vmem>>, vector<1x1x8x256xf32>
      %179 = vector.shape_cast %178 : vector<1x1x8x256xf32> to vector<8x256xf32>
      %180 = arith.mulf %179, %177 : vector<8x256xf32>
      %181 = arith.addf %176, %180 : vector<8x256xf32>
      %c239_i32_164 = arith.constant 239 : i32
      %182 = tpu.dynamic_rotate %10 by %c239_i32_164 dim 1 : vector<8x256xf32>, i32 -> vector<8x256xf32>
      %c8_165 = arith.constant 8 : index
      %c3_166 = arith.constant 3 : index
      %c0_167 = arith.constant 0 : index
      %c0_168 = arith.constant 0 : index
      %183 = vector.load %arg2[%c8_165, %c3_166, %c0_167, %c0_168] : memref<9x4x8x256xf32, #tpu.memory_space<vmem>>, vector<1x1x8x256xf32>
      %184 = vector.shape_cast %183 : vector<1x1x8x256xf32> to vector<8x256xf32>
      %185 = arith.mulf %184, %182 : vector<8x256xf32>
      %186 = arith.addf %181, %185 : vector<8x256xf32>
      %cst = arith.constant 0.000000e+00 : f32
      %187 = vector.broadcast %cst : f32 to vector<8x256xf32>
      %188 = arith.maximumf %186, %187 : vector<8x256xf32>
      %cst_169 = arith.constant 1.250000e-01 : f32
      %189 = vector.broadcast %cst_169 : f32 to vector<8x256xf32>
      %190 = arith.mulf %189, %188 : vector<8x256xf32>
      %191 = arith.addf %arg6, %190 : vector<8x256xf32>
      %c2_i32_170 = arith.constant 2 : i32
      %192 = tpu.dynamic_rotate %191 by %c2_i32_170 dim 0 : vector<8x256xf32>, i32 -> vector<8x256xf32>
      %c4_i32_171 = arith.constant 4 : i32
      %193 = tpu.dynamic_rotate %191 by %c4_i32_171 dim 0 : vector<8x256xf32>, i32 -> vector<8x256xf32>
      %c6_i32_172 = arith.constant 6 : i32
      %194 = tpu.dynamic_rotate %191 by %c6_i32_172 dim 0 : vector<8x256xf32>, i32 -> vector<8x256xf32>
      %c17_i32_173 = arith.constant 17 : i32
      %195 = tpu.dynamic_rotate %191 by %c17_i32_173 dim 1 : vector<8x256xf32>, i32 -> vector<8x256xf32>
      %c0_174 = arith.constant 0 : index
      %c0_175 = arith.constant 0 : index
      %c0_176 = arith.constant 0 : index
      %c0_177 = arith.constant 0 : index
      %196 = vector.load %arg2[%c0_174, %c0_175, %c0_176, %c0_177] : memref<9x4x8x256xf32, #tpu.memory_space<vmem>>, vector<1x1x8x256xf32>
      %197 = vector.shape_cast %196 : vector<1x1x8x256xf32> to vector<8x256xf32>
      %198 = arith.mulf %197, %195 : vector<8x256xf32>
      %199 = arith.addf %0, %198 : vector<8x256xf32>
      %c17_i32_178 = arith.constant 17 : i32
      %200 = tpu.dynamic_rotate %192 by %c17_i32_178 dim 1 : vector<8x256xf32>, i32 -> vector<8x256xf32>
      %c0_179 = arith.constant 0 : index
      %c1_180 = arith.constant 1 : index
      %c0_181 = arith.constant 0 : index
      %c0_182 = arith.constant 0 : index
      %201 = vector.load %arg2[%c0_179, %c1_180, %c0_181, %c0_182] : memref<9x4x8x256xf32, #tpu.memory_space<vmem>>, vector<1x1x8x256xf32>
      %202 = vector.shape_cast %201 : vector<1x1x8x256xf32> to vector<8x256xf32>
      %203 = arith.mulf %202, %200 : vector<8x256xf32>
      %204 = arith.addf %199, %203 : vector<8x256xf32>
      %c17_i32_183 = arith.constant 17 : i32
      %205 = tpu.dynamic_rotate %193 by %c17_i32_183 dim 1 : vector<8x256xf32>, i32 -> vector<8x256xf32>
      %c0_184 = arith.constant 0 : index
      %c2_185 = arith.constant 2 : index
      %c0_186 = arith.constant 0 : index
      %c0_187 = arith.constant 0 : index
      %206 = vector.load %arg2[%c0_184, %c2_185, %c0_186, %c0_187] : memref<9x4x8x256xf32, #tpu.memory_space<vmem>>, vector<1x1x8x256xf32>
      %207 = vector.shape_cast %206 : vector<1x1x8x256xf32> to vector<8x256xf32>
      %208 = arith.mulf %207, %205 : vector<8x256xf32>
      %209 = arith.addf %204, %208 : vector<8x256xf32>
      %c17_i32_188 = arith.constant 17 : i32
      %210 = tpu.dynamic_rotate %194 by %c17_i32_188 dim 1 : vector<8x256xf32>, i32 -> vector<8x256xf32>
      %c0_189 = arith.constant 0 : index
      %c3_190 = arith.constant 3 : index
      %c0_191 = arith.constant 0 : index
      %c0_192 = arith.constant 0 : index
      %211 = vector.load %arg2[%c0_189, %c3_190, %c0_191, %c0_192] : memref<9x4x8x256xf32, #tpu.memory_space<vmem>>, vector<1x1x8x256xf32>
      %212 = vector.shape_cast %211 : vector<1x1x8x256xf32> to vector<8x256xf32>
      %213 = arith.mulf %212, %210 : vector<8x256xf32>
      %214 = arith.addf %209, %213 : vector<8x256xf32>
      %c16_i32_193 = arith.constant 16 : i32
      %215 = tpu.dynamic_rotate %191 by %c16_i32_193 dim 1 : vector<8x256xf32>, i32 -> vector<8x256xf32>
      %c1_194 = arith.constant 1 : index
      %c0_195 = arith.constant 0 : index
      %c0_196 = arith.constant 0 : index
      %c0_197 = arith.constant 0 : index
      %216 = vector.load %arg2[%c1_194, %c0_195, %c0_196, %c0_197] : memref<9x4x8x256xf32, #tpu.memory_space<vmem>>, vector<1x1x8x256xf32>
      %217 = vector.shape_cast %216 : vector<1x1x8x256xf32> to vector<8x256xf32>
      %218 = arith.mulf %217, %215 : vector<8x256xf32>
      %219 = arith.addf %214, %218 : vector<8x256xf32>
      %c16_i32_198 = arith.constant 16 : i32
      %220 = tpu.dynamic_rotate %192 by %c16_i32_198 dim 1 : vector<8x256xf32>, i32 -> vector<8x256xf32>
      %c1_199 = arith.constant 1 : index
      %c1_200 = arith.constant 1 : index
      %c0_201 = arith.constant 0 : index
      %c0_202 = arith.constant 0 : index
      %221 = vector.load %arg2[%c1_199, %c1_200, %c0_201, %c0_202] : memref<9x4x8x256xf32, #tpu.memory_space<vmem>>, vector<1x1x8x256xf32>
      %222 = vector.shape_cast %221 : vector<1x1x8x256xf32> to vector<8x256xf32>
      %223 = arith.mulf %222, %220 : vector<8x256xf32>
      %224 = arith.addf %219, %223 : vector<8x256xf32>
      %c16_i32_203 = arith.constant 16 : i32
      %225 = tpu.dynamic_rotate %193 by %c16_i32_203 dim 1 : vector<8x256xf32>, i32 -> vector<8x256xf32>
      %c1_204 = arith.constant 1 : index
      %c2_205 = arith.constant 2 : index
      %c0_206 = arith.constant 0 : index
      %c0_207 = arith.constant 0 : index
      %226 = vector.load %arg2[%c1_204, %c2_205, %c0_206, %c0_207] : memref<9x4x8x256xf32, #tpu.memory_space<vmem>>, vector<1x1x8x256xf32>
      %227 = vector.shape_cast %226 : vector<1x1x8x256xf32> to vector<8x256xf32>
      %228 = arith.mulf %227, %225 : vector<8x256xf32>
      %229 = arith.addf %224, %228 : vector<8x256xf32>
      %c16_i32_208 = arith.constant 16 : i32
      %230 = tpu.dynamic_rotate %194 by %c16_i32_208 dim 1 : vector<8x256xf32>, i32 -> vector<8x256xf32>
      %c1_209 = arith.constant 1 : index
      %c3_210 = arith.constant 3 : index
      %c0_211 = arith.constant 0 : index
      %c0_212 = arith.constant 0 : index
      %231 = vector.load %arg2[%c1_209, %c3_210, %c0_211, %c0_212] : memref<9x4x8x256xf32, #tpu.memory_space<vmem>>, vector<1x1x8x256xf32>
      %232 = vector.shape_cast %231 : vector<1x1x8x256xf32> to vector<8x256xf32>
      %233 = arith.mulf %232, %230 : vector<8x256xf32>
      %234 = arith.addf %229, %233 : vector<8x256xf32>
      %c15_i32_213 = arith.constant 15 : i32
      %235 = tpu.dynamic_rotate %191 by %c15_i32_213 dim 1 : vector<8x256xf32>, i32 -> vector<8x256xf32>
      %c2_214 = arith.constant 2 : index
      %c0_215 = arith.constant 0 : index
      %c0_216 = arith.constant 0 : index
      %c0_217 = arith.constant 0 : index
      %236 = vector.load %arg2[%c2_214, %c0_215, %c0_216, %c0_217] : memref<9x4x8x256xf32, #tpu.memory_space<vmem>>, vector<1x1x8x256xf32>
      %237 = vector.shape_cast %236 : vector<1x1x8x256xf32> to vector<8x256xf32>
      %238 = arith.mulf %237, %235 : vector<8x256xf32>
      %239 = arith.addf %234, %238 : vector<8x256xf32>
      %c15_i32_218 = arith.constant 15 : i32
      %240 = tpu.dynamic_rotate %192 by %c15_i32_218 dim 1 : vector<8x256xf32>, i32 -> vector<8x256xf32>
      %c2_219 = arith.constant 2 : index
      %c1_220 = arith.constant 1 : index
      %c0_221 = arith.constant 0 : index
      %c0_222 = arith.constant 0 : index
      %241 = vector.load %arg2[%c2_219, %c1_220, %c0_221, %c0_222] : memref<9x4x8x256xf32, #tpu.memory_space<vmem>>, vector<1x1x8x256xf32>
      %242 = vector.shape_cast %241 : vector<1x1x8x256xf32> to vector<8x256xf32>
      %243 = arith.mulf %242, %240 : vector<8x256xf32>
      %244 = arith.addf %239, %243 : vector<8x256xf32>
      %c15_i32_223 = arith.constant 15 : i32
      %245 = tpu.dynamic_rotate %193 by %c15_i32_223 dim 1 : vector<8x256xf32>, i32 -> vector<8x256xf32>
      %c2_224 = arith.constant 2 : index
      %c2_225 = arith.constant 2 : index
      %c0_226 = arith.constant 0 : index
      %c0_227 = arith.constant 0 : index
      %246 = vector.load %arg2[%c2_224, %c2_225, %c0_226, %c0_227] : memref<9x4x8x256xf32, #tpu.memory_space<vmem>>, vector<1x1x8x256xf32>
      %247 = vector.shape_cast %246 : vector<1x1x8x256xf32> to vector<8x256xf32>
      %248 = arith.mulf %247, %245 : vector<8x256xf32>
      %249 = arith.addf %244, %248 : vector<8x256xf32>
      %c15_i32_228 = arith.constant 15 : i32
      %250 = tpu.dynamic_rotate %194 by %c15_i32_228 dim 1 : vector<8x256xf32>, i32 -> vector<8x256xf32>
      %c2_229 = arith.constant 2 : index
      %c3_230 = arith.constant 3 : index
      %c0_231 = arith.constant 0 : index
      %c0_232 = arith.constant 0 : index
      %251 = vector.load %arg2[%c2_229, %c3_230, %c0_231, %c0_232] : memref<9x4x8x256xf32, #tpu.memory_space<vmem>>, vector<1x1x8x256xf32>
      %252 = vector.shape_cast %251 : vector<1x1x8x256xf32> to vector<8x256xf32>
      %253 = arith.mulf %252, %250 : vector<8x256xf32>
      %254 = arith.addf %249, %253 : vector<8x256xf32>
      %c1_i32_233 = arith.constant 1 : i32
      %255 = tpu.dynamic_rotate %191 by %c1_i32_233 dim 1 : vector<8x256xf32>, i32 -> vector<8x256xf32>
      %c3_234 = arith.constant 3 : index
      %c0_235 = arith.constant 0 : index
      %c0_236 = arith.constant 0 : index
      %c0_237 = arith.constant 0 : index
      %256 = vector.load %arg2[%c3_234, %c0_235, %c0_236, %c0_237] : memref<9x4x8x256xf32, #tpu.memory_space<vmem>>, vector<1x1x8x256xf32>
      %257 = vector.shape_cast %256 : vector<1x1x8x256xf32> to vector<8x256xf32>
      %258 = arith.mulf %257, %255 : vector<8x256xf32>
      %259 = arith.addf %254, %258 : vector<8x256xf32>
      %c1_i32_238 = arith.constant 1 : i32
      %260 = tpu.dynamic_rotate %192 by %c1_i32_238 dim 1 : vector<8x256xf32>, i32 -> vector<8x256xf32>
      %c3_239 = arith.constant 3 : index
      %c1_240 = arith.constant 1 : index
      %c0_241 = arith.constant 0 : index
      %c0_242 = arith.constant 0 : index
      %261 = vector.load %arg2[%c3_239, %c1_240, %c0_241, %c0_242] : memref<9x4x8x256xf32, #tpu.memory_space<vmem>>, vector<1x1x8x256xf32>
      %262 = vector.shape_cast %261 : vector<1x1x8x256xf32> to vector<8x256xf32>
      %263 = arith.mulf %262, %260 : vector<8x256xf32>
      %264 = arith.addf %259, %263 : vector<8x256xf32>
      %c1_i32_243 = arith.constant 1 : i32
      %265 = tpu.dynamic_rotate %193 by %c1_i32_243 dim 1 : vector<8x256xf32>, i32 -> vector<8x256xf32>
      %c3_244 = arith.constant 3 : index
      %c2_245 = arith.constant 2 : index
      %c0_246 = arith.constant 0 : index
      %c0_247 = arith.constant 0 : index
      %266 = vector.load %arg2[%c3_244, %c2_245, %c0_246, %c0_247] : memref<9x4x8x256xf32, #tpu.memory_space<vmem>>, vector<1x1x8x256xf32>
      %267 = vector.shape_cast %266 : vector<1x1x8x256xf32> to vector<8x256xf32>
      %268 = arith.mulf %267, %265 : vector<8x256xf32>
      %269 = arith.addf %264, %268 : vector<8x256xf32>
      %c1_i32_248 = arith.constant 1 : i32
      %270 = tpu.dynamic_rotate %194 by %c1_i32_248 dim 1 : vector<8x256xf32>, i32 -> vector<8x256xf32>
      %c3_249 = arith.constant 3 : index
      %c3_250 = arith.constant 3 : index
      %c0_251 = arith.constant 0 : index
      %c0_252 = arith.constant 0 : index
      %271 = vector.load %arg2[%c3_249, %c3_250, %c0_251, %c0_252] : memref<9x4x8x256xf32, #tpu.memory_space<vmem>>, vector<1x1x8x256xf32>
      %272 = vector.shape_cast %271 : vector<1x1x8x256xf32> to vector<8x256xf32>
      %273 = arith.mulf %272, %270 : vector<8x256xf32>
      %274 = arith.addf %269, %273 : vector<8x256xf32>
      %c4_253 = arith.constant 4 : index
      %c0_254 = arith.constant 0 : index
      %c0_255 = arith.constant 0 : index
      %c0_256 = arith.constant 0 : index
      %275 = vector.load %arg2[%c4_253, %c0_254, %c0_255, %c0_256] : memref<9x4x8x256xf32, #tpu.memory_space<vmem>>, vector<1x1x8x256xf32>
      %276 = vector.shape_cast %275 : vector<1x1x8x256xf32> to vector<8x256xf32>
      %277 = arith.mulf %276, %191 : vector<8x256xf32>
      %278 = arith.addf %274, %277 : vector<8x256xf32>
      %c4_257 = arith.constant 4 : index
      %c1_258 = arith.constant 1 : index
      %c0_259 = arith.constant 0 : index
      %c0_260 = arith.constant 0 : index
      %279 = vector.load %arg2[%c4_257, %c1_258, %c0_259, %c0_260] : memref<9x4x8x256xf32, #tpu.memory_space<vmem>>, vector<1x1x8x256xf32>
      %280 = vector.shape_cast %279 : vector<1x1x8x256xf32> to vector<8x256xf32>
      %281 = arith.mulf %280, %192 : vector<8x256xf32>
      %282 = arith.addf %278, %281 : vector<8x256xf32>
      %c4_261 = arith.constant 4 : index
      %c2_262 = arith.constant 2 : index
      %c0_263 = arith.constant 0 : index
      %c0_264 = arith.constant 0 : index
      %283 = vector.load %arg2[%c4_261, %c2_262, %c0_263, %c0_264] : memref<9x4x8x256xf32, #tpu.memory_space<vmem>>, vector<1x1x8x256xf32>
      %284 = vector.shape_cast %283 : vector<1x1x8x256xf32> to vector<8x256xf32>
      %285 = arith.mulf %284, %193 : vector<8x256xf32>
      %286 = arith.addf %282, %285 : vector<8x256xf32>
      %c4_265 = arith.constant 4 : index
      %c3_266 = arith.constant 3 : index
      %c0_267 = arith.constant 0 : index
      %c0_268 = arith.constant 0 : index
      %287 = vector.load %arg2[%c4_265, %c3_266, %c0_267, %c0_268] : memref<9x4x8x256xf32, #tpu.memory_space<vmem>>, vector<1x1x8x256xf32>
      %288 = vector.shape_cast %287 : vector<1x1x8x256xf32> to vector<8x256xf32>
      %289 = arith.mulf %288, %194 : vector<8x256xf32>
      %290 = arith.addf %286, %289 : vector<8x256xf32>
      %c255_i32_269 = arith.constant 255 : i32
      %291 = tpu.dynamic_rotate %191 by %c255_i32_269 dim 1 : vector<8x256xf32>, i32 -> vector<8x256xf32>
      %c5_270 = arith.constant 5 : index
      %c0_271 = arith.constant 0 : index
      %c0_272 = arith.constant 0 : index
      %c0_273 = arith.constant 0 : index
      %292 = vector.load %arg2[%c5_270, %c0_271, %c0_272, %c0_273] : memref<9x4x8x256xf32, #tpu.memory_space<vmem>>, vector<1x1x8x256xf32>
      %293 = vector.shape_cast %292 : vector<1x1x8x256xf32> to vector<8x256xf32>
      %294 = arith.mulf %293, %291 : vector<8x256xf32>
      %295 = arith.addf %290, %294 : vector<8x256xf32>
      %c255_i32_274 = arith.constant 255 : i32
      %296 = tpu.dynamic_rotate %192 by %c255_i32_274 dim 1 : vector<8x256xf32>, i32 -> vector<8x256xf32>
      %c5_275 = arith.constant 5 : index
      %c1_276 = arith.constant 1 : index
      %c0_277 = arith.constant 0 : index
      %c0_278 = arith.constant 0 : index
      %297 = vector.load %arg2[%c5_275, %c1_276, %c0_277, %c0_278] : memref<9x4x8x256xf32, #tpu.memory_space<vmem>>, vector<1x1x8x256xf32>
      %298 = vector.shape_cast %297 : vector<1x1x8x256xf32> to vector<8x256xf32>
      %299 = arith.mulf %298, %296 : vector<8x256xf32>
      %300 = arith.addf %295, %299 : vector<8x256xf32>
      %c255_i32_279 = arith.constant 255 : i32
      %301 = tpu.dynamic_rotate %193 by %c255_i32_279 dim 1 : vector<8x256xf32>, i32 -> vector<8x256xf32>
      %c5_280 = arith.constant 5 : index
      %c2_281 = arith.constant 2 : index
      %c0_282 = arith.constant 0 : index
      %c0_283 = arith.constant 0 : index
      %302 = vector.load %arg2[%c5_280, %c2_281, %c0_282, %c0_283] : memref<9x4x8x256xf32, #tpu.memory_space<vmem>>, vector<1x1x8x256xf32>
      %303 = vector.shape_cast %302 : vector<1x1x8x256xf32> to vector<8x256xf32>
      %304 = arith.mulf %303, %301 : vector<8x256xf32>
      %305 = arith.addf %300, %304 : vector<8x256xf32>
      %c255_i32_284 = arith.constant 255 : i32
      %306 = tpu.dynamic_rotate %194 by %c255_i32_284 dim 1 : vector<8x256xf32>, i32 -> vector<8x256xf32>
      %c5_285 = arith.constant 5 : index
      %c3_286 = arith.constant 3 : index
      %c0_287 = arith.constant 0 : index
      %c0_288 = arith.constant 0 : index
      %307 = vector.load %arg2[%c5_285, %c3_286, %c0_287, %c0_288] : memref<9x4x8x256xf32, #tpu.memory_space<vmem>>, vector<1x1x8x256xf32>
      %308 = vector.shape_cast %307 : vector<1x1x8x256xf32> to vector<8x256xf32>
      %309 = arith.mulf %308, %306 : vector<8x256xf32>
      %310 = arith.addf %305, %309 : vector<8x256xf32>
      %c241_i32_289 = arith.constant 241 : i32
      %311 = tpu.dynamic_rotate %191 by %c241_i32_289 dim 1 : vector<8x256xf32>, i32 -> vector<8x256xf32>
      %c6_290 = arith.constant 6 : index
      %c0_291 = arith.constant 0 : index
      %c0_292 = arith.constant 0 : index
      %c0_293 = arith.constant 0 : index
      %312 = vector.load %arg2[%c6_290, %c0_291, %c0_292, %c0_293] : memref<9x4x8x256xf32, #tpu.memory_space<vmem>>, vector<1x1x8x256xf32>
      %313 = vector.shape_cast %312 : vector<1x1x8x256xf32> to vector<8x256xf32>
      %314 = arith.mulf %313, %311 : vector<8x256xf32>
      %315 = arith.addf %310, %314 : vector<8x256xf32>
      %c241_i32_294 = arith.constant 241 : i32
      %316 = tpu.dynamic_rotate %192 by %c241_i32_294 dim 1 : vector<8x256xf32>, i32 -> vector<8x256xf32>
      %c6_295 = arith.constant 6 : index
      %c1_296 = arith.constant 1 : index
      %c0_297 = arith.constant 0 : index
      %c0_298 = arith.constant 0 : index
      %317 = vector.load %arg2[%c6_295, %c1_296, %c0_297, %c0_298] : memref<9x4x8x256xf32, #tpu.memory_space<vmem>>, vector<1x1x8x256xf32>
      %318 = vector.shape_cast %317 : vector<1x1x8x256xf32> to vector<8x256xf32>
      %319 = arith.mulf %318, %316 : vector<8x256xf32>
      %320 = arith.addf %315, %319 : vector<8x256xf32>
      %c241_i32_299 = arith.constant 241 : i32
      %321 = tpu.dynamic_rotate %193 by %c241_i32_299 dim 1 : vector<8x256xf32>, i32 -> vector<8x256xf32>
      %c6_300 = arith.constant 6 : index
      %c2_301 = arith.constant 2 : index
      %c0_302 = arith.constant 0 : index
      %c0_303 = arith.constant 0 : index
      %322 = vector.load %arg2[%c6_300, %c2_301, %c0_302, %c0_303] : memref<9x4x8x256xf32, #tpu.memory_space<vmem>>, vector<1x1x8x256xf32>
      %323 = vector.shape_cast %322 : vector<1x1x8x256xf32> to vector<8x256xf32>
      %324 = arith.mulf %323, %321 : vector<8x256xf32>
      %325 = arith.addf %320, %324 : vector<8x256xf32>
      %c241_i32_304 = arith.constant 241 : i32
      %326 = tpu.dynamic_rotate %194 by %c241_i32_304 dim 1 : vector<8x256xf32>, i32 -> vector<8x256xf32>
      %c6_305 = arith.constant 6 : index
      %c3_306 = arith.constant 3 : index
      %c0_307 = arith.constant 0 : index
      %c0_308 = arith.constant 0 : index
      %327 = vector.load %arg2[%c6_305, %c3_306, %c0_307, %c0_308] : memref<9x4x8x256xf32, #tpu.memory_space<vmem>>, vector<1x1x8x256xf32>
      %328 = vector.shape_cast %327 : vector<1x1x8x256xf32> to vector<8x256xf32>
      %329 = arith.mulf %328, %326 : vector<8x256xf32>
      %330 = arith.addf %325, %329 : vector<8x256xf32>
      %c240_i32_309 = arith.constant 240 : i32
      %331 = tpu.dynamic_rotate %191 by %c240_i32_309 dim 1 : vector<8x256xf32>, i32 -> vector<8x256xf32>
      %c7_310 = arith.constant 7 : index
      %c0_311 = arith.constant 0 : index
      %c0_312 = arith.constant 0 : index
      %c0_313 = arith.constant 0 : index
      %332 = vector.load %arg2[%c7_310, %c0_311, %c0_312, %c0_313] : memref<9x4x8x256xf32, #tpu.memory_space<vmem>>, vector<1x1x8x256xf32>
      %333 = vector.shape_cast %332 : vector<1x1x8x256xf32> to vector<8x256xf32>
      %334 = arith.mulf %333, %331 : vector<8x256xf32>
      %335 = arith.addf %330, %334 : vector<8x256xf32>
      %c240_i32_314 = arith.constant 240 : i32
      %336 = tpu.dynamic_rotate %192 by %c240_i32_314 dim 1 : vector<8x256xf32>, i32 -> vector<8x256xf32>
      %c7_315 = arith.constant 7 : index
      %c1_316 = arith.constant 1 : index
      %c0_317 = arith.constant 0 : index
      %c0_318 = arith.constant 0 : index
      %337 = vector.load %arg2[%c7_315, %c1_316, %c0_317, %c0_318] : memref<9x4x8x256xf32, #tpu.memory_space<vmem>>, vector<1x1x8x256xf32>
      %338 = vector.shape_cast %337 : vector<1x1x8x256xf32> to vector<8x256xf32>
      %339 = arith.mulf %338, %336 : vector<8x256xf32>
      %340 = arith.addf %335, %339 : vector<8x256xf32>
      %c240_i32_319 = arith.constant 240 : i32
      %341 = tpu.dynamic_rotate %193 by %c240_i32_319 dim 1 : vector<8x256xf32>, i32 -> vector<8x256xf32>
      %c7_320 = arith.constant 7 : index
      %c2_321 = arith.constant 2 : index
      %c0_322 = arith.constant 0 : index
      %c0_323 = arith.constant 0 : index
      %342 = vector.load %arg2[%c7_320, %c2_321, %c0_322, %c0_323] : memref<9x4x8x256xf32, #tpu.memory_space<vmem>>, vector<1x1x8x256xf32>
      %343 = vector.shape_cast %342 : vector<1x1x8x256xf32> to vector<8x256xf32>
      %344 = arith.mulf %343, %341 : vector<8x256xf32>
      %345 = arith.addf %340, %344 : vector<8x256xf32>
      %c240_i32_324 = arith.constant 240 : i32
      %346 = tpu.dynamic_rotate %194 by %c240_i32_324 dim 1 : vector<8x256xf32>, i32 -> vector<8x256xf32>
      %c7_325 = arith.constant 7 : index
      %c3_326 = arith.constant 3 : index
      %c0_327 = arith.constant 0 : index
      %c0_328 = arith.constant 0 : index
      %347 = vector.load %arg2[%c7_325, %c3_326, %c0_327, %c0_328] : memref<9x4x8x256xf32, #tpu.memory_space<vmem>>, vector<1x1x8x256xf32>
      %348 = vector.shape_cast %347 : vector<1x1x8x256xf32> to vector<8x256xf32>
      %349 = arith.mulf %348, %346 : vector<8x256xf32>
      %350 = arith.addf %345, %349 : vector<8x256xf32>
      %c239_i32_329 = arith.constant 239 : i32
      %351 = tpu.dynamic_rotate %191 by %c239_i32_329 dim 1 : vector<8x256xf32>, i32 -> vector<8x256xf32>
      %c8_330 = arith.constant 8 : index
      %c0_331 = arith.constant 0 : index
      %c0_332 = arith.constant 0 : index
      %c0_333 = arith.constant 0 : index
      %352 = vector.load %arg2[%c8_330, %c0_331, %c0_332, %c0_333] : memref<9x4x8x256xf32, #tpu.memory_space<vmem>>, vector<1x1x8x256xf32>
      %353 = vector.shape_cast %352 : vector<1x1x8x256xf32> to vector<8x256xf32>
      %354 = arith.mulf %353, %351 : vector<8x256xf32>
      %355 = arith.addf %350, %354 : vector<8x256xf32>
      %c239_i32_334 = arith.constant 239 : i32
      %356 = tpu.dynamic_rotate %192 by %c239_i32_334 dim 1 : vector<8x256xf32>, i32 -> vector<8x256xf32>
      %c8_335 = arith.constant 8 : index
      %c1_336 = arith.constant 1 : index
      %c0_337 = arith.constant 0 : index
      %c0_338 = arith.constant 0 : index
      %357 = vector.load %arg2[%c8_335, %c1_336, %c0_337, %c0_338] : memref<9x4x8x256xf32, #tpu.memory_space<vmem>>, vector<1x1x8x256xf32>
      %358 = vector.shape_cast %357 : vector<1x1x8x256xf32> to vector<8x256xf32>
      %359 = arith.mulf %358, %356 : vector<8x256xf32>
      %360 = arith.addf %355, %359 : vector<8x256xf32>
      %c239_i32_339 = arith.constant 239 : i32
      %361 = tpu.dynamic_rotate %193 by %c239_i32_339 dim 1 : vector<8x256xf32>, i32 -> vector<8x256xf32>
      %c8_340 = arith.constant 8 : index
      %c2_341 = arith.constant 2 : index
      %c0_342 = arith.constant 0 : index
      %c0_343 = arith.constant 0 : index
      %362 = vector.load %arg2[%c8_340, %c2_341, %c0_342, %c0_343] : memref<9x4x8x256xf32, #tpu.memory_space<vmem>>, vector<1x1x8x256xf32>
      %363 = vector.shape_cast %362 : vector<1x1x8x256xf32> to vector<8x256xf32>
      %364 = arith.mulf %363, %361 : vector<8x256xf32>
      %365 = arith.addf %360, %364 : vector<8x256xf32>
      %c239_i32_344 = arith.constant 239 : i32
      %366 = tpu.dynamic_rotate %194 by %c239_i32_344 dim 1 : vector<8x256xf32>, i32 -> vector<8x256xf32>
      %c8_345 = arith.constant 8 : index
      %c3_346 = arith.constant 3 : index
      %c0_347 = arith.constant 0 : index
      %c0_348 = arith.constant 0 : index
      %367 = vector.load %arg2[%c8_345, %c3_346, %c0_347, %c0_348] : memref<9x4x8x256xf32, #tpu.memory_space<vmem>>, vector<1x1x8x256xf32>
      %368 = vector.shape_cast %367 : vector<1x1x8x256xf32> to vector<8x256xf32>
      %369 = arith.mulf %368, %366 : vector<8x256xf32>
      %370 = arith.addf %365, %369 : vector<8x256xf32>
      %cst_349 = arith.constant 0.000000e+00 : f32
      %371 = vector.broadcast %cst_349 : f32 to vector<8x256xf32>
      %372 = arith.maximumf %370, %371 : vector<8x256xf32>
      %cst_350 = arith.constant 2.000000e+00 : f32
      %373 = vector.broadcast %cst_350 : f32 to vector<8x256xf32>
      %374 = arith.mulf %373, %372 : vector<8x256xf32>
      %375 = arith.addf %188, %374 : vector<8x256xf32>
      %cst_351 = arith.constant 1.250000e-01 : f32
      %376 = vector.broadcast %cst_351 : f32 to vector<8x256xf32>
      %377 = arith.mulf %376, %372 : vector<8x256xf32>
      %378 = arith.addf %arg6, %377 : vector<8x256xf32>
      %c2_i32_352 = arith.constant 2 : i32
      %379 = tpu.dynamic_rotate %378 by %c2_i32_352 dim 0 : vector<8x256xf32>, i32 -> vector<8x256xf32>
      %c4_i32_353 = arith.constant 4 : i32
      %380 = tpu.dynamic_rotate %378 by %c4_i32_353 dim 0 : vector<8x256xf32>, i32 -> vector<8x256xf32>
      %c6_i32_354 = arith.constant 6 : i32
      %381 = tpu.dynamic_rotate %378 by %c6_i32_354 dim 0 : vector<8x256xf32>, i32 -> vector<8x256xf32>
      %c17_i32_355 = arith.constant 17 : i32
      %382 = tpu.dynamic_rotate %378 by %c17_i32_355 dim 1 : vector<8x256xf32>, i32 -> vector<8x256xf32>
      %c0_356 = arith.constant 0 : index
      %c0_357 = arith.constant 0 : index
      %c0_358 = arith.constant 0 : index
      %c0_359 = arith.constant 0 : index
      %383 = vector.load %arg2[%c0_356, %c0_357, %c0_358, %c0_359] : memref<9x4x8x256xf32, #tpu.memory_space<vmem>>, vector<1x1x8x256xf32>
      %384 = vector.shape_cast %383 : vector<1x1x8x256xf32> to vector<8x256xf32>
      %385 = arith.mulf %384, %382 : vector<8x256xf32>
      %386 = arith.addf %0, %385 : vector<8x256xf32>
      %c17_i32_360 = arith.constant 17 : i32
      %387 = tpu.dynamic_rotate %379 by %c17_i32_360 dim 1 : vector<8x256xf32>, i32 -> vector<8x256xf32>
      %c0_361 = arith.constant 0 : index
      %c1_362 = arith.constant 1 : index
      %c0_363 = arith.constant 0 : index
      %c0_364 = arith.constant 0 : index
      %388 = vector.load %arg2[%c0_361, %c1_362, %c0_363, %c0_364] : memref<9x4x8x256xf32, #tpu.memory_space<vmem>>, vector<1x1x8x256xf32>
      %389 = vector.shape_cast %388 : vector<1x1x8x256xf32> to vector<8x256xf32>
      %390 = arith.mulf %389, %387 : vector<8x256xf32>
      %391 = arith.addf %386, %390 : vector<8x256xf32>
      %c17_i32_365 = arith.constant 17 : i32
      %392 = tpu.dynamic_rotate %380 by %c17_i32_365 dim 1 : vector<8x256xf32>, i32 -> vector<8x256xf32>
      %c0_366 = arith.constant 0 : index
      %c2_367 = arith.constant 2 : index
      %c0_368 = arith.constant 0 : index
      %c0_369 = arith.constant 0 : index
      %393 = vector.load %arg2[%c0_366, %c2_367, %c0_368, %c0_369] : memref<9x4x8x256xf32, #tpu.memory_space<vmem>>, vector<1x1x8x256xf32>
      %394 = vector.shape_cast %393 : vector<1x1x8x256xf32> to vector<8x256xf32>
      %395 = arith.mulf %394, %392 : vector<8x256xf32>
      %396 = arith.addf %391, %395 : vector<8x256xf32>
      %c17_i32_370 = arith.constant 17 : i32
      %397 = tpu.dynamic_rotate %381 by %c17_i32_370 dim 1 : vector<8x256xf32>, i32 -> vector<8x256xf32>
      %c0_371 = arith.constant 0 : index
      %c3_372 = arith.constant 3 : index
      %c0_373 = arith.constant 0 : index
      %c0_374 = arith.constant 0 : index
      %398 = vector.load %arg2[%c0_371, %c3_372, %c0_373, %c0_374] : memref<9x4x8x256xf32, #tpu.memory_space<vmem>>, vector<1x1x8x256xf32>
      %399 = vector.shape_cast %398 : vector<1x1x8x256xf32> to vector<8x256xf32>
      %400 = arith.mulf %399, %397 : vector<8x256xf32>
      %401 = arith.addf %396, %400 : vector<8x256xf32>
      %c16_i32_375 = arith.constant 16 : i32
      %402 = tpu.dynamic_rotate %378 by %c16_i32_375 dim 1 : vector<8x256xf32>, i32 -> vector<8x256xf32>
      %c1_376 = arith.constant 1 : index
      %c0_377 = arith.constant 0 : index
      %c0_378 = arith.constant 0 : index
      %c0_379 = arith.constant 0 : index
      %403 = vector.load %arg2[%c1_376, %c0_377, %c0_378, %c0_379] : memref<9x4x8x256xf32, #tpu.memory_space<vmem>>, vector<1x1x8x256xf32>
      %404 = vector.shape_cast %403 : vector<1x1x8x256xf32> to vector<8x256xf32>
      %405 = arith.mulf %404, %402 : vector<8x256xf32>
      %406 = arith.addf %401, %405 : vector<8x256xf32>
      %c16_i32_380 = arith.constant 16 : i32
      %407 = tpu.dynamic_rotate %379 by %c16_i32_380 dim 1 : vector<8x256xf32>, i32 -> vector<8x256xf32>
      %c1_381 = arith.constant 1 : index
      %c1_382 = arith.constant 1 : index
      %c0_383 = arith.constant 0 : index
      %c0_384 = arith.constant 0 : index
      %408 = vector.load %arg2[%c1_381, %c1_382, %c0_383, %c0_384] : memref<9x4x8x256xf32, #tpu.memory_space<vmem>>, vector<1x1x8x256xf32>
      %409 = vector.shape_cast %408 : vector<1x1x8x256xf32> to vector<8x256xf32>
      %410 = arith.mulf %409, %407 : vector<8x256xf32>
      %411 = arith.addf %406, %410 : vector<8x256xf32>
      %c16_i32_385 = arith.constant 16 : i32
      %412 = tpu.dynamic_rotate %380 by %c16_i32_385 dim 1 : vector<8x256xf32>, i32 -> vector<8x256xf32>
      %c1_386 = arith.constant 1 : index
      %c2_387 = arith.constant 2 : index
      %c0_388 = arith.constant 0 : index
      %c0_389 = arith.constant 0 : index
      %413 = vector.load %arg2[%c1_386, %c2_387, %c0_388, %c0_389] : memref<9x4x8x256xf32, #tpu.memory_space<vmem>>, vector<1x1x8x256xf32>
      %414 = vector.shape_cast %413 : vector<1x1x8x256xf32> to vector<8x256xf32>
      %415 = arith.mulf %414, %412 : vector<8x256xf32>
      %416 = arith.addf %411, %415 : vector<8x256xf32>
      %c16_i32_390 = arith.constant 16 : i32
      %417 = tpu.dynamic_rotate %381 by %c16_i32_390 dim 1 : vector<8x256xf32>, i32 -> vector<8x256xf32>
      %c1_391 = arith.constant 1 : index
      %c3_392 = arith.constant 3 : index
      %c0_393 = arith.constant 0 : index
      %c0_394 = arith.constant 0 : index
      %418 = vector.load %arg2[%c1_391, %c3_392, %c0_393, %c0_394] : memref<9x4x8x256xf32, #tpu.memory_space<vmem>>, vector<1x1x8x256xf32>
      %419 = vector.shape_cast %418 : vector<1x1x8x256xf32> to vector<8x256xf32>
      %420 = arith.mulf %419, %417 : vector<8x256xf32>
      %421 = arith.addf %416, %420 : vector<8x256xf32>
      %c15_i32_395 = arith.constant 15 : i32
      %422 = tpu.dynamic_rotate %378 by %c15_i32_395 dim 1 : vector<8x256xf32>, i32 -> vector<8x256xf32>
      %c2_396 = arith.constant 2 : index
      %c0_397 = arith.constant 0 : index
      %c0_398 = arith.constant 0 : index
      %c0_399 = arith.constant 0 : index
      %423 = vector.load %arg2[%c2_396, %c0_397, %c0_398, %c0_399] : memref<9x4x8x256xf32, #tpu.memory_space<vmem>>, vector<1x1x8x256xf32>
      %424 = vector.shape_cast %423 : vector<1x1x8x256xf32> to vector<8x256xf32>
      %425 = arith.mulf %424, %422 : vector<8x256xf32>
      %426 = arith.addf %421, %425 : vector<8x256xf32>
      %c15_i32_400 = arith.constant 15 : i32
      %427 = tpu.dynamic_rotate %379 by %c15_i32_400 dim 1 : vector<8x256xf32>, i32 -> vector<8x256xf32>
      %c2_401 = arith.constant 2 : index
      %c1_402 = arith.constant 1 : index
      %c0_403 = arith.constant 0 : index
      %c0_404 = arith.constant 0 : index
      %428 = vector.load %arg2[%c2_401, %c1_402, %c0_403, %c0_404] : memref<9x4x8x256xf32, #tpu.memory_space<vmem>>, vector<1x1x8x256xf32>
      %429 = vector.shape_cast %428 : vector<1x1x8x256xf32> to vector<8x256xf32>
      %430 = arith.mulf %429, %427 : vector<8x256xf32>
      %431 = arith.addf %426, %430 : vector<8x256xf32>
      %c15_i32_405 = arith.constant 15 : i32
      %432 = tpu.dynamic_rotate %380 by %c15_i32_405 dim 1 : vector<8x256xf32>, i32 -> vector<8x256xf32>
      %c2_406 = arith.constant 2 : index
      %c2_407 = arith.constant 2 : index
      %c0_408 = arith.constant 0 : index
      %c0_409 = arith.constant 0 : index
      %433 = vector.load %arg2[%c2_406, %c2_407, %c0_408, %c0_409] : memref<9x4x8x256xf32, #tpu.memory_space<vmem>>, vector<1x1x8x256xf32>
      %434 = vector.shape_cast %433 : vector<1x1x8x256xf32> to vector<8x256xf32>
      %435 = arith.mulf %434, %432 : vector<8x256xf32>
      %436 = arith.addf %431, %435 : vector<8x256xf32>
      %c15_i32_410 = arith.constant 15 : i32
      %437 = tpu.dynamic_rotate %381 by %c15_i32_410 dim 1 : vector<8x256xf32>, i32 -> vector<8x256xf32>
      %c2_411 = arith.constant 2 : index
      %c3_412 = arith.constant 3 : index
      %c0_413 = arith.constant 0 : index
      %c0_414 = arith.constant 0 : index
      %438 = vector.load %arg2[%c2_411, %c3_412, %c0_413, %c0_414] : memref<9x4x8x256xf32, #tpu.memory_space<vmem>>, vector<1x1x8x256xf32>
      %439 = vector.shape_cast %438 : vector<1x1x8x256xf32> to vector<8x256xf32>
      %440 = arith.mulf %439, %437 : vector<8x256xf32>
      %441 = arith.addf %436, %440 : vector<8x256xf32>
      %c1_i32_415 = arith.constant 1 : i32
      %442 = tpu.dynamic_rotate %378 by %c1_i32_415 dim 1 : vector<8x256xf32>, i32 -> vector<8x256xf32>
      %c3_416 = arith.constant 3 : index
      %c0_417 = arith.constant 0 : index
      %c0_418 = arith.constant 0 : index
      %c0_419 = arith.constant 0 : index
      %443 = vector.load %arg2[%c3_416, %c0_417, %c0_418, %c0_419] : memref<9x4x8x256xf32, #tpu.memory_space<vmem>>, vector<1x1x8x256xf32>
      %444 = vector.shape_cast %443 : vector<1x1x8x256xf32> to vector<8x256xf32>
      %445 = arith.mulf %444, %442 : vector<8x256xf32>
      %446 = arith.addf %441, %445 : vector<8x256xf32>
      %c1_i32_420 = arith.constant 1 : i32
      %447 = tpu.dynamic_rotate %379 by %c1_i32_420 dim 1 : vector<8x256xf32>, i32 -> vector<8x256xf32>
      %c3_421 = arith.constant 3 : index
      %c1_422 = arith.constant 1 : index
      %c0_423 = arith.constant 0 : index
      %c0_424 = arith.constant 0 : index
      %448 = vector.load %arg2[%c3_421, %c1_422, %c0_423, %c0_424] : memref<9x4x8x256xf32, #tpu.memory_space<vmem>>, vector<1x1x8x256xf32>
      %449 = vector.shape_cast %448 : vector<1x1x8x256xf32> to vector<8x256xf32>
      %450 = arith.mulf %449, %447 : vector<8x256xf32>
      %451 = arith.addf %446, %450 : vector<8x256xf32>
      %c1_i32_425 = arith.constant 1 : i32
      %452 = tpu.dynamic_rotate %380 by %c1_i32_425 dim 1 : vector<8x256xf32>, i32 -> vector<8x256xf32>
      %c3_426 = arith.constant 3 : index
      %c2_427 = arith.constant 2 : index
      %c0_428 = arith.constant 0 : index
      %c0_429 = arith.constant 0 : index
      %453 = vector.load %arg2[%c3_426, %c2_427, %c0_428, %c0_429] : memref<9x4x8x256xf32, #tpu.memory_space<vmem>>, vector<1x1x8x256xf32>
      %454 = vector.shape_cast %453 : vector<1x1x8x256xf32> to vector<8x256xf32>
      %455 = arith.mulf %454, %452 : vector<8x256xf32>
      %456 = arith.addf %451, %455 : vector<8x256xf32>
      %c1_i32_430 = arith.constant 1 : i32
      %457 = tpu.dynamic_rotate %381 by %c1_i32_430 dim 1 : vector<8x256xf32>, i32 -> vector<8x256xf32>
      %c3_431 = arith.constant 3 : index
      %c3_432 = arith.constant 3 : index
      %c0_433 = arith.constant 0 : index
      %c0_434 = arith.constant 0 : index
      %458 = vector.load %arg2[%c3_431, %c3_432, %c0_433, %c0_434] : memref<9x4x8x256xf32, #tpu.memory_space<vmem>>, vector<1x1x8x256xf32>
      %459 = vector.shape_cast %458 : vector<1x1x8x256xf32> to vector<8x256xf32>
      %460 = arith.mulf %459, %457 : vector<8x256xf32>
      %461 = arith.addf %456, %460 : vector<8x256xf32>
      %c4_435 = arith.constant 4 : index
      %c0_436 = arith.constant 0 : index
      %c0_437 = arith.constant 0 : index
      %c0_438 = arith.constant 0 : index
      %462 = vector.load %arg2[%c4_435, %c0_436, %c0_437, %c0_438] : memref<9x4x8x256xf32, #tpu.memory_space<vmem>>, vector<1x1x8x256xf32>
      %463 = vector.shape_cast %462 : vector<1x1x8x256xf32> to vector<8x256xf32>
      %464 = arith.mulf %463, %378 : vector<8x256xf32>
      %465 = arith.addf %461, %464 : vector<8x256xf32>
      %c4_439 = arith.constant 4 : index
      %c1_440 = arith.constant 1 : index
      %c0_441 = arith.constant 0 : index
      %c0_442 = arith.constant 0 : index
      %466 = vector.load %arg2[%c4_439, %c1_440, %c0_441, %c0_442] : memref<9x4x8x256xf32, #tpu.memory_space<vmem>>, vector<1x1x8x256xf32>
      %467 = vector.shape_cast %466 : vector<1x1x8x256xf32> to vector<8x256xf32>
      %468 = arith.mulf %467, %379 : vector<8x256xf32>
      %469 = arith.addf %465, %468 : vector<8x256xf32>
      %c4_443 = arith.constant 4 : index
      %c2_444 = arith.constant 2 : index
      %c0_445 = arith.constant 0 : index
      %c0_446 = arith.constant 0 : index
      %470 = vector.load %arg2[%c4_443, %c2_444, %c0_445, %c0_446] : memref<9x4x8x256xf32, #tpu.memory_space<vmem>>, vector<1x1x8x256xf32>
      %471 = vector.shape_cast %470 : vector<1x1x8x256xf32> to vector<8x256xf32>
      %472 = arith.mulf %471, %380 : vector<8x256xf32>
      %473 = arith.addf %469, %472 : vector<8x256xf32>
      %c4_447 = arith.constant 4 : index
      %c3_448 = arith.constant 3 : index
      %c0_449 = arith.constant 0 : index
      %c0_450 = arith.constant 0 : index
      %474 = vector.load %arg2[%c4_447, %c3_448, %c0_449, %c0_450] : memref<9x4x8x256xf32, #tpu.memory_space<vmem>>, vector<1x1x8x256xf32>
      %475 = vector.shape_cast %474 : vector<1x1x8x256xf32> to vector<8x256xf32>
      %476 = arith.mulf %475, %381 : vector<8x256xf32>
      %477 = arith.addf %473, %476 : vector<8x256xf32>
      %c255_i32_451 = arith.constant 255 : i32
      %478 = tpu.dynamic_rotate %378 by %c255_i32_451 dim 1 : vector<8x256xf32>, i32 -> vector<8x256xf32>
      %c5_452 = arith.constant 5 : index
      %c0_453 = arith.constant 0 : index
      %c0_454 = arith.constant 0 : index
      %c0_455 = arith.constant 0 : index
      %479 = vector.load %arg2[%c5_452, %c0_453, %c0_454, %c0_455] : memref<9x4x8x256xf32, #tpu.memory_space<vmem>>, vector<1x1x8x256xf32>
      %480 = vector.shape_cast %479 : vector<1x1x8x256xf32> to vector<8x256xf32>
      %481 = arith.mulf %480, %478 : vector<8x256xf32>
      %482 = arith.addf %477, %481 : vector<8x256xf32>
      %c255_i32_456 = arith.constant 255 : i32
      %483 = tpu.dynamic_rotate %379 by %c255_i32_456 dim 1 : vector<8x256xf32>, i32 -> vector<8x256xf32>
      %c5_457 = arith.constant 5 : index
      %c1_458 = arith.constant 1 : index
      %c0_459 = arith.constant 0 : index
      %c0_460 = arith.constant 0 : index
      %484 = vector.load %arg2[%c5_457, %c1_458, %c0_459, %c0_460] : memref<9x4x8x256xf32, #tpu.memory_space<vmem>>, vector<1x1x8x256xf32>
      %485 = vector.shape_cast %484 : vector<1x1x8x256xf32> to vector<8x256xf32>
      %486 = arith.mulf %485, %483 : vector<8x256xf32>
      %487 = arith.addf %482, %486 : vector<8x256xf32>
      %c255_i32_461 = arith.constant 255 : i32
      %488 = tpu.dynamic_rotate %380 by %c255_i32_461 dim 1 : vector<8x256xf32>, i32 -> vector<8x256xf32>
      %c5_462 = arith.constant 5 : index
      %c2_463 = arith.constant 2 : index
      %c0_464 = arith.constant 0 : index
      %c0_465 = arith.constant 0 : index
      %489 = vector.load %arg2[%c5_462, %c2_463, %c0_464, %c0_465] : memref<9x4x8x256xf32, #tpu.memory_space<vmem>>, vector<1x1x8x256xf32>
      %490 = vector.shape_cast %489 : vector<1x1x8x256xf32> to vector<8x256xf32>
      %491 = arith.mulf %490, %488 : vector<8x256xf32>
      %492 = arith.addf %487, %491 : vector<8x256xf32>
      %c255_i32_466 = arith.constant 255 : i32
      %493 = tpu.dynamic_rotate %381 by %c255_i32_466 dim 1 : vector<8x256xf32>, i32 -> vector<8x256xf32>
      %c5_467 = arith.constant 5 : index
      %c3_468 = arith.constant 3 : index
      %c0_469 = arith.constant 0 : index
      %c0_470 = arith.constant 0 : index
      %494 = vector.load %arg2[%c5_467, %c3_468, %c0_469, %c0_470] : memref<9x4x8x256xf32, #tpu.memory_space<vmem>>, vector<1x1x8x256xf32>
      %495 = vector.shape_cast %494 : vector<1x1x8x256xf32> to vector<8x256xf32>
      %496 = arith.mulf %495, %493 : vector<8x256xf32>
      %497 = arith.addf %492, %496 : vector<8x256xf32>
      %c241_i32_471 = arith.constant 241 : i32
      %498 = tpu.dynamic_rotate %378 by %c241_i32_471 dim 1 : vector<8x256xf32>, i32 -> vector<8x256xf32>
      %c6_472 = arith.constant 6 : index
      %c0_473 = arith.constant 0 : index
      %c0_474 = arith.constant 0 : index
      %c0_475 = arith.constant 0 : index
      %499 = vector.load %arg2[%c6_472, %c0_473, %c0_474, %c0_475] : memref<9x4x8x256xf32, #tpu.memory_space<vmem>>, vector<1x1x8x256xf32>
      %500 = vector.shape_cast %499 : vector<1x1x8x256xf32> to vector<8x256xf32>
      %501 = arith.mulf %500, %498 : vector<8x256xf32>
      %502 = arith.addf %497, %501 : vector<8x256xf32>
      %c241_i32_476 = arith.constant 241 : i32
      %503 = tpu.dynamic_rotate %379 by %c241_i32_476 dim 1 : vector<8x256xf32>, i32 -> vector<8x256xf32>
      %c6_477 = arith.constant 6 : index
      %c1_478 = arith.constant 1 : index
      %c0_479 = arith.constant 0 : index
      %c0_480 = arith.constant 0 : index
      %504 = vector.load %arg2[%c6_477, %c1_478, %c0_479, %c0_480] : memref<9x4x8x256xf32, #tpu.memory_space<vmem>>, vector<1x1x8x256xf32>
      %505 = vector.shape_cast %504 : vector<1x1x8x256xf32> to vector<8x256xf32>
      %506 = arith.mulf %505, %503 : vector<8x256xf32>
      %507 = arith.addf %502, %506 : vector<8x256xf32>
      %c241_i32_481 = arith.constant 241 : i32
      %508 = tpu.dynamic_rotate %380 by %c241_i32_481 dim 1 : vector<8x256xf32>, i32 -> vector<8x256xf32>
      %c6_482 = arith.constant 6 : index
      %c2_483 = arith.constant 2 : index
      %c0_484 = arith.constant 0 : index
      %c0_485 = arith.constant 0 : index
      %509 = vector.load %arg2[%c6_482, %c2_483, %c0_484, %c0_485] : memref<9x4x8x256xf32, #tpu.memory_space<vmem>>, vector<1x1x8x256xf32>
      %510 = vector.shape_cast %509 : vector<1x1x8x256xf32> to vector<8x256xf32>
      %511 = arith.mulf %510, %508 : vector<8x256xf32>
      %512 = arith.addf %507, %511 : vector<8x256xf32>
      %c241_i32_486 = arith.constant 241 : i32
      %513 = tpu.dynamic_rotate %381 by %c241_i32_486 dim 1 : vector<8x256xf32>, i32 -> vector<8x256xf32>
      %c6_487 = arith.constant 6 : index
      %c3_488 = arith.constant 3 : index
      %c0_489 = arith.constant 0 : index
      %c0_490 = arith.constant 0 : index
      %514 = vector.load %arg2[%c6_487, %c3_488, %c0_489, %c0_490] : memref<9x4x8x256xf32, #tpu.memory_space<vmem>>, vector<1x1x8x256xf32>
      %515 = vector.shape_cast %514 : vector<1x1x8x256xf32> to vector<8x256xf32>
      %516 = arith.mulf %515, %513 : vector<8x256xf32>
      %517 = arith.addf %512, %516 : vector<8x256xf32>
      %c240_i32_491 = arith.constant 240 : i32
      %518 = tpu.dynamic_rotate %378 by %c240_i32_491 dim 1 : vector<8x256xf32>, i32 -> vector<8x256xf32>
      %c7_492 = arith.constant 7 : index
      %c0_493 = arith.constant 0 : index
      %c0_494 = arith.constant 0 : index
      %c0_495 = arith.constant 0 : index
      %519 = vector.load %arg2[%c7_492, %c0_493, %c0_494, %c0_495] : memref<9x4x8x256xf32, #tpu.memory_space<vmem>>, vector<1x1x8x256xf32>
      %520 = vector.shape_cast %519 : vector<1x1x8x256xf32> to vector<8x256xf32>
      %521 = arith.mulf %520, %518 : vector<8x256xf32>
      %522 = arith.addf %517, %521 : vector<8x256xf32>
      %c240_i32_496 = arith.constant 240 : i32
      %523 = tpu.dynamic_rotate %379 by %c240_i32_496 dim 1 : vector<8x256xf32>, i32 -> vector<8x256xf32>
      %c7_497 = arith.constant 7 : index
      %c1_498 = arith.constant 1 : index
      %c0_499 = arith.constant 0 : index
      %c0_500 = arith.constant 0 : index
      %524 = vector.load %arg2[%c7_497, %c1_498, %c0_499, %c0_500] : memref<9x4x8x256xf32, #tpu.memory_space<vmem>>, vector<1x1x8x256xf32>
      %525 = vector.shape_cast %524 : vector<1x1x8x256xf32> to vector<8x256xf32>
      %526 = arith.mulf %525, %523 : vector<8x256xf32>
      %527 = arith.addf %522, %526 : vector<8x256xf32>
      %c240_i32_501 = arith.constant 240 : i32
      %528 = tpu.dynamic_rotate %380 by %c240_i32_501 dim 1 : vector<8x256xf32>, i32 -> vector<8x256xf32>
      %c7_502 = arith.constant 7 : index
      %c2_503 = arith.constant 2 : index
      %c0_504 = arith.constant 0 : index
      %c0_505 = arith.constant 0 : index
      %529 = vector.load %arg2[%c7_502, %c2_503, %c0_504, %c0_505] : memref<9x4x8x256xf32, #tpu.memory_space<vmem>>, vector<1x1x8x256xf32>
      %530 = vector.shape_cast %529 : vector<1x1x8x256xf32> to vector<8x256xf32>
      %531 = arith.mulf %530, %528 : vector<8x256xf32>
      %532 = arith.addf %527, %531 : vector<8x256xf32>
      %c240_i32_506 = arith.constant 240 : i32
      %533 = tpu.dynamic_rotate %381 by %c240_i32_506 dim 1 : vector<8x256xf32>, i32 -> vector<8x256xf32>
      %c7_507 = arith.constant 7 : index
      %c3_508 = arith.constant 3 : index
      %c0_509 = arith.constant 0 : index
      %c0_510 = arith.constant 0 : index
      %534 = vector.load %arg2[%c7_507, %c3_508, %c0_509, %c0_510] : memref<9x4x8x256xf32, #tpu.memory_space<vmem>>, vector<1x1x8x256xf32>
      %535 = vector.shape_cast %534 : vector<1x1x8x256xf32> to vector<8x256xf32>
      %536 = arith.mulf %535, %533 : vector<8x256xf32>
      %537 = arith.addf %532, %536 : vector<8x256xf32>
      %c239_i32_511 = arith.constant 239 : i32
      %538 = tpu.dynamic_rotate %378 by %c239_i32_511 dim 1 : vector<8x256xf32>, i32 -> vector<8x256xf32>
      %c8_512 = arith.constant 8 : index
      %c0_513 = arith.constant 0 : index
      %c0_514 = arith.constant 0 : index
      %c0_515 = arith.constant 0 : index
      %539 = vector.load %arg2[%c8_512, %c0_513, %c0_514, %c0_515] : memref<9x4x8x256xf32, #tpu.memory_space<vmem>>, vector<1x1x8x256xf32>
      %540 = vector.shape_cast %539 : vector<1x1x8x256xf32> to vector<8x256xf32>
      %541 = arith.mulf %540, %538 : vector<8x256xf32>
      %542 = arith.addf %537, %541 : vector<8x256xf32>
      %c239_i32_516 = arith.constant 239 : i32
      %543 = tpu.dynamic_rotate %379 by %c239_i32_516 dim 1 : vector<8x256xf32>, i32 -> vector<8x256xf32>
      %c8_517 = arith.constant 8 : index
      %c1_518 = arith.constant 1 : index
      %c0_519 = arith.constant 0 : index
      %c0_520 = arith.constant 0 : index
      %544 = vector.load %arg2[%c8_517, %c1_518, %c0_519, %c0_520] : memref<9x4x8x256xf32, #tpu.memory_space<vmem>>, vector<1x1x8x256xf32>
      %545 = vector.shape_cast %544 : vector<1x1x8x256xf32> to vector<8x256xf32>
      %546 = arith.mulf %545, %543 : vector<8x256xf32>
      %547 = arith.addf %542, %546 : vector<8x256xf32>
      %c239_i32_521 = arith.constant 239 : i32
      %548 = tpu.dynamic_rotate %380 by %c239_i32_521 dim 1 : vector<8x256xf32>, i32 -> vector<8x256xf32>
      %c8_522 = arith.constant 8 : index
      %c2_523 = arith.constant 2 : index
      %c0_524 = arith.constant 0 : index
      %c0_525 = arith.constant 0 : index
      %549 = vector.load %arg2[%c8_522, %c2_523, %c0_524, %c0_525] : memref<9x4x8x256xf32, #tpu.memory_space<vmem>>, vector<1x1x8x256xf32>
      %550 = vector.shape_cast %549 : vector<1x1x8x256xf32> to vector<8x256xf32>
      %551 = arith.mulf %550, %548 : vector<8x256xf32>
      %552 = arith.addf %547, %551 : vector<8x256xf32>
      %c239_i32_526 = arith.constant 239 : i32
      %553 = tpu.dynamic_rotate %381 by %c239_i32_526 dim 1 : vector<8x256xf32>, i32 -> vector<8x256xf32>
      %c8_527 = arith.constant 8 : index
      %c3_528 = arith.constant 3 : index
      %c0_529 = arith.constant 0 : index
      %c0_530 = arith.constant 0 : index
      %554 = vector.load %arg2[%c8_527, %c3_528, %c0_529, %c0_530] : memref<9x4x8x256xf32, #tpu.memory_space<vmem>>, vector<1x1x8x256xf32>
      %555 = vector.shape_cast %554 : vector<1x1x8x256xf32> to vector<8x256xf32>
      %556 = arith.mulf %555, %553 : vector<8x256xf32>
      %557 = arith.addf %552, %556 : vector<8x256xf32>
      %cst_531 = arith.constant 0.000000e+00 : f32
      %558 = vector.broadcast %cst_531 : f32 to vector<8x256xf32>
      %559 = arith.maximumf %557, %558 : vector<8x256xf32>
      %cst_532 = arith.constant 2.000000e+00 : f32
      %560 = vector.broadcast %cst_532 : f32 to vector<8x256xf32>
      %561 = arith.mulf %560, %559 : vector<8x256xf32>
      %562 = arith.addf %375, %561 : vector<8x256xf32>
      %cst_533 = arith.constant 2.500000e-01 : f32
      %563 = vector.broadcast %cst_533 : f32 to vector<8x256xf32>
      %564 = arith.mulf %563, %559 : vector<8x256xf32>
      %565 = arith.addf %arg6, %564 : vector<8x256xf32>
      %c2_i32_534 = arith.constant 2 : i32
      %566 = tpu.dynamic_rotate %565 by %c2_i32_534 dim 0 : vector<8x256xf32>, i32 -> vector<8x256xf32>
      %c4_i32_535 = arith.constant 4 : i32
      %567 = tpu.dynamic_rotate %565 by %c4_i32_535 dim 0 : vector<8x256xf32>, i32 -> vector<8x256xf32>
      %c6_i32_536 = arith.constant 6 : i32
      %568 = tpu.dynamic_rotate %565 by %c6_i32_536 dim 0 : vector<8x256xf32>, i32 -> vector<8x256xf32>
      %c17_i32_537 = arith.constant 17 : i32
      %569 = tpu.dynamic_rotate %565 by %c17_i32_537 dim 1 : vector<8x256xf32>, i32 -> vector<8x256xf32>
      %c0_538 = arith.constant 0 : index
      %c0_539 = arith.constant 0 : index
      %c0_540 = arith.constant 0 : index
      %c0_541 = arith.constant 0 : index
      %570 = vector.load %arg2[%c0_538, %c0_539, %c0_540, %c0_541] : memref<9x4x8x256xf32, #tpu.memory_space<vmem>>, vector<1x1x8x256xf32>
      %571 = vector.shape_cast %570 : vector<1x1x8x256xf32> to vector<8x256xf32>
      %572 = arith.mulf %571, %569 : vector<8x256xf32>
      %573 = arith.addf %0, %572 : vector<8x256xf32>
      %c17_i32_542 = arith.constant 17 : i32
      %574 = tpu.dynamic_rotate %566 by %c17_i32_542 dim 1 : vector<8x256xf32>, i32 -> vector<8x256xf32>
      %c0_543 = arith.constant 0 : index
      %c1_544 = arith.constant 1 : index
      %c0_545 = arith.constant 0 : index
      %c0_546 = arith.constant 0 : index
      %575 = vector.load %arg2[%c0_543, %c1_544, %c0_545, %c0_546] : memref<9x4x8x256xf32, #tpu.memory_space<vmem>>, vector<1x1x8x256xf32>
      %576 = vector.shape_cast %575 : vector<1x1x8x256xf32> to vector<8x256xf32>
      %577 = arith.mulf %576, %574 : vector<8x256xf32>
      %578 = arith.addf %573, %577 : vector<8x256xf32>
      %c17_i32_547 = arith.constant 17 : i32
      %579 = tpu.dynamic_rotate %567 by %c17_i32_547 dim 1 : vector<8x256xf32>, i32 -> vector<8x256xf32>
      %c0_548 = arith.constant 0 : index
      %c2_549 = arith.constant 2 : index
      %c0_550 = arith.constant 0 : index
      %c0_551 = arith.constant 0 : index
      %580 = vector.load %arg2[%c0_548, %c2_549, %c0_550, %c0_551] : memref<9x4x8x256xf32, #tpu.memory_space<vmem>>, vector<1x1x8x256xf32>
      %581 = vector.shape_cast %580 : vector<1x1x8x256xf32> to vector<8x256xf32>
      %582 = arith.mulf %581, %579 : vector<8x256xf32>
      %583 = arith.addf %578, %582 : vector<8x256xf32>
      %c17_i32_552 = arith.constant 17 : i32
      %584 = tpu.dynamic_rotate %568 by %c17_i32_552 dim 1 : vector<8x256xf32>, i32 -> vector<8x256xf32>
      %c0_553 = arith.constant 0 : index
      %c3_554 = arith.constant 3 : index
      %c0_555 = arith.constant 0 : index
      %c0_556 = arith.constant 0 : index
      %585 = vector.load %arg2[%c0_553, %c3_554, %c0_555, %c0_556] : memref<9x4x8x256xf32, #tpu.memory_space<vmem>>, vector<1x1x8x256xf32>
      %586 = vector.shape_cast %585 : vector<1x1x8x256xf32> to vector<8x256xf32>
      %587 = arith.mulf %586, %584 : vector<8x256xf32>
      %588 = arith.addf %583, %587 : vector<8x256xf32>
      %c16_i32_557 = arith.constant 16 : i32
      %589 = tpu.dynamic_rotate %565 by %c16_i32_557 dim 1 : vector<8x256xf32>, i32 -> vector<8x256xf32>
      %c1_558 = arith.constant 1 : index
      %c0_559 = arith.constant 0 : index
      %c0_560 = arith.constant 0 : index
      %c0_561 = arith.constant 0 : index
      %590 = vector.load %arg2[%c1_558, %c0_559, %c0_560, %c0_561] : memref<9x4x8x256xf32, #tpu.memory_space<vmem>>, vector<1x1x8x256xf32>
      %591 = vector.shape_cast %590 : vector<1x1x8x256xf32> to vector<8x256xf32>
      %592 = arith.mulf %591, %589 : vector<8x256xf32>
      %593 = arith.addf %588, %592 : vector<8x256xf32>
      %c16_i32_562 = arith.constant 16 : i32
      %594 = tpu.dynamic_rotate %566 by %c16_i32_562 dim 1 : vector<8x256xf32>, i32 -> vector<8x256xf32>
      %c1_563 = arith.constant 1 : index
      %c1_564 = arith.constant 1 : index
      %c0_565 = arith.constant 0 : index
      %c0_566 = arith.constant 0 : index
      %595 = vector.load %arg2[%c1_563, %c1_564, %c0_565, %c0_566] : memref<9x4x8x256xf32, #tpu.memory_space<vmem>>, vector<1x1x8x256xf32>
      %596 = vector.shape_cast %595 : vector<1x1x8x256xf32> to vector<8x256xf32>
      %597 = arith.mulf %596, %594 : vector<8x256xf32>
      %598 = arith.addf %593, %597 : vector<8x256xf32>
      %c16_i32_567 = arith.constant 16 : i32
      %599 = tpu.dynamic_rotate %567 by %c16_i32_567 dim 1 : vector<8x256xf32>, i32 -> vector<8x256xf32>
      %c1_568 = arith.constant 1 : index
      %c2_569 = arith.constant 2 : index
      %c0_570 = arith.constant 0 : index
      %c0_571 = arith.constant 0 : index
      %600 = vector.load %arg2[%c1_568, %c2_569, %c0_570, %c0_571] : memref<9x4x8x256xf32, #tpu.memory_space<vmem>>, vector<1x1x8x256xf32>
      %601 = vector.shape_cast %600 : vector<1x1x8x256xf32> to vector<8x256xf32>
      %602 = arith.mulf %601, %599 : vector<8x256xf32>
      %603 = arith.addf %598, %602 : vector<8x256xf32>
      %c16_i32_572 = arith.constant 16 : i32
      %604 = tpu.dynamic_rotate %568 by %c16_i32_572 dim 1 : vector<8x256xf32>, i32 -> vector<8x256xf32>
      %c1_573 = arith.constant 1 : index
      %c3_574 = arith.constant 3 : index
      %c0_575 = arith.constant 0 : index
      %c0_576 = arith.constant 0 : index
      %605 = vector.load %arg2[%c1_573, %c3_574, %c0_575, %c0_576] : memref<9x4x8x256xf32, #tpu.memory_space<vmem>>, vector<1x1x8x256xf32>
      %606 = vector.shape_cast %605 : vector<1x1x8x256xf32> to vector<8x256xf32>
      %607 = arith.mulf %606, %604 : vector<8x256xf32>
      %608 = arith.addf %603, %607 : vector<8x256xf32>
      %c15_i32_577 = arith.constant 15 : i32
      %609 = tpu.dynamic_rotate %565 by %c15_i32_577 dim 1 : vector<8x256xf32>, i32 -> vector<8x256xf32>
      %c2_578 = arith.constant 2 : index
      %c0_579 = arith.constant 0 : index
      %c0_580 = arith.constant 0 : index
      %c0_581 = arith.constant 0 : index
      %610 = vector.load %arg2[%c2_578, %c0_579, %c0_580, %c0_581] : memref<9x4x8x256xf32, #tpu.memory_space<vmem>>, vector<1x1x8x256xf32>
      %611 = vector.shape_cast %610 : vector<1x1x8x256xf32> to vector<8x256xf32>
      %612 = arith.mulf %611, %609 : vector<8x256xf32>
      %613 = arith.addf %608, %612 : vector<8x256xf32>
      %c15_i32_582 = arith.constant 15 : i32
      %614 = tpu.dynamic_rotate %566 by %c15_i32_582 dim 1 : vector<8x256xf32>, i32 -> vector<8x256xf32>
      %c2_583 = arith.constant 2 : index
      %c1_584 = arith.constant 1 : index
      %c0_585 = arith.constant 0 : index
      %c0_586 = arith.constant 0 : index
      %615 = vector.load %arg2[%c2_583, %c1_584, %c0_585, %c0_586] : memref<9x4x8x256xf32, #tpu.memory_space<vmem>>, vector<1x1x8x256xf32>
      %616 = vector.shape_cast %615 : vector<1x1x8x256xf32> to vector<8x256xf32>
      %617 = arith.mulf %616, %614 : vector<8x256xf32>
      %618 = arith.addf %613, %617 : vector<8x256xf32>
      %c15_i32_587 = arith.constant 15 : i32
      %619 = tpu.dynamic_rotate %567 by %c15_i32_587 dim 1 : vector<8x256xf32>, i32 -> vector<8x256xf32>
      %c2_588 = arith.constant 2 : index
      %c2_589 = arith.constant 2 : index
      %c0_590 = arith.constant 0 : index
      %c0_591 = arith.constant 0 : index
      %620 = vector.load %arg2[%c2_588, %c2_589, %c0_590, %c0_591] : memref<9x4x8x256xf32, #tpu.memory_space<vmem>>, vector<1x1x8x256xf32>
      %621 = vector.shape_cast %620 : vector<1x1x8x256xf32> to vector<8x256xf32>
      %622 = arith.mulf %621, %619 : vector<8x256xf32>
      %623 = arith.addf %618, %622 : vector<8x256xf32>
      %c15_i32_592 = arith.constant 15 : i32
      %624 = tpu.dynamic_rotate %568 by %c15_i32_592 dim 1 : vector<8x256xf32>, i32 -> vector<8x256xf32>
      %c2_593 = arith.constant 2 : index
      %c3_594 = arith.constant 3 : index
      %c0_595 = arith.constant 0 : index
      %c0_596 = arith.constant 0 : index
      %625 = vector.load %arg2[%c2_593, %c3_594, %c0_595, %c0_596] : memref<9x4x8x256xf32, #tpu.memory_space<vmem>>, vector<1x1x8x256xf32>
      %626 = vector.shape_cast %625 : vector<1x1x8x256xf32> to vector<8x256xf32>
      %627 = arith.mulf %626, %624 : vector<8x256xf32>
      %628 = arith.addf %623, %627 : vector<8x256xf32>
      %c1_i32_597 = arith.constant 1 : i32
      %629 = tpu.dynamic_rotate %565 by %c1_i32_597 dim 1 : vector<8x256xf32>, i32 -> vector<8x256xf32>
      %c3_598 = arith.constant 3 : index
      %c0_599 = arith.constant 0 : index
      %c0_600 = arith.constant 0 : index
      %c0_601 = arith.constant 0 : index
      %630 = vector.load %arg2[%c3_598, %c0_599, %c0_600, %c0_601] : memref<9x4x8x256xf32, #tpu.memory_space<vmem>>, vector<1x1x8x256xf32>
      %631 = vector.shape_cast %630 : vector<1x1x8x256xf32> to vector<8x256xf32>
      %632 = arith.mulf %631, %629 : vector<8x256xf32>
      %633 = arith.addf %628, %632 : vector<8x256xf32>
      %c1_i32_602 = arith.constant 1 : i32
      %634 = tpu.dynamic_rotate %566 by %c1_i32_602 dim 1 : vector<8x256xf32>, i32 -> vector<8x256xf32>
      %c3_603 = arith.constant 3 : index
      %c1_604 = arith.constant 1 : index
      %c0_605 = arith.constant 0 : index
      %c0_606 = arith.constant 0 : index
      %635 = vector.load %arg2[%c3_603, %c1_604, %c0_605, %c0_606] : memref<9x4x8x256xf32, #tpu.memory_space<vmem>>, vector<1x1x8x256xf32>
      %636 = vector.shape_cast %635 : vector<1x1x8x256xf32> to vector<8x256xf32>
      %637 = arith.mulf %636, %634 : vector<8x256xf32>
      %638 = arith.addf %633, %637 : vector<8x256xf32>
      %c1_i32_607 = arith.constant 1 : i32
      %639 = tpu.dynamic_rotate %567 by %c1_i32_607 dim 1 : vector<8x256xf32>, i32 -> vector<8x256xf32>
      %c3_608 = arith.constant 3 : index
      %c2_609 = arith.constant 2 : index
      %c0_610 = arith.constant 0 : index
      %c0_611 = arith.constant 0 : index
      %640 = vector.load %arg2[%c3_608, %c2_609, %c0_610, %c0_611] : memref<9x4x8x256xf32, #tpu.memory_space<vmem>>, vector<1x1x8x256xf32>
      %641 = vector.shape_cast %640 : vector<1x1x8x256xf32> to vector<8x256xf32>
      %642 = arith.mulf %641, %639 : vector<8x256xf32>
      %643 = arith.addf %638, %642 : vector<8x256xf32>
      %c1_i32_612 = arith.constant 1 : i32
      %644 = tpu.dynamic_rotate %568 by %c1_i32_612 dim 1 : vector<8x256xf32>, i32 -> vector<8x256xf32>
      %c3_613 = arith.constant 3 : index
      %c3_614 = arith.constant 3 : index
      %c0_615 = arith.constant 0 : index
      %c0_616 = arith.constant 0 : index
      %645 = vector.load %arg2[%c3_613, %c3_614, %c0_615, %c0_616] : memref<9x4x8x256xf32, #tpu.memory_space<vmem>>, vector<1x1x8x256xf32>
      %646 = vector.shape_cast %645 : vector<1x1x8x256xf32> to vector<8x256xf32>
      %647 = arith.mulf %646, %644 : vector<8x256xf32>
      %648 = arith.addf %643, %647 : vector<8x256xf32>
      %c4_617 = arith.constant 4 : index
      %c0_618 = arith.constant 0 : index
      %c0_619 = arith.constant 0 : index
      %c0_620 = arith.constant 0 : index
      %649 = vector.load %arg2[%c4_617, %c0_618, %c0_619, %c0_620] : memref<9x4x8x256xf32, #tpu.memory_space<vmem>>, vector<1x1x8x256xf32>
      %650 = vector.shape_cast %649 : vector<1x1x8x256xf32> to vector<8x256xf32>
      %651 = arith.mulf %650, %565 : vector<8x256xf32>
      %652 = arith.addf %648, %651 : vector<8x256xf32>
      %c4_621 = arith.constant 4 : index
      %c1_622 = arith.constant 1 : index
      %c0_623 = arith.constant 0 : index
      %c0_624 = arith.constant 0 : index
      %653 = vector.load %arg2[%c4_621, %c1_622, %c0_623, %c0_624] : memref<9x4x8x256xf32, #tpu.memory_space<vmem>>, vector<1x1x8x256xf32>
      %654 = vector.shape_cast %653 : vector<1x1x8x256xf32> to vector<8x256xf32>
      %655 = arith.mulf %654, %566 : vector<8x256xf32>
      %656 = arith.addf %652, %655 : vector<8x256xf32>
      %c4_625 = arith.constant 4 : index
      %c2_626 = arith.constant 2 : index
      %c0_627 = arith.constant 0 : index
      %c0_628 = arith.constant 0 : index
      %657 = vector.load %arg2[%c4_625, %c2_626, %c0_627, %c0_628] : memref<9x4x8x256xf32, #tpu.memory_space<vmem>>, vector<1x1x8x256xf32>
      %658 = vector.shape_cast %657 : vector<1x1x8x256xf32> to vector<8x256xf32>
      %659 = arith.mulf %658, %567 : vector<8x256xf32>
      %660 = arith.addf %656, %659 : vector<8x256xf32>
      %c4_629 = arith.constant 4 : index
      %c3_630 = arith.constant 3 : index
      %c0_631 = arith.constant 0 : index
      %c0_632 = arith.constant 0 : index
      %661 = vector.load %arg2[%c4_629, %c3_630, %c0_631, %c0_632] : memref<9x4x8x256xf32, #tpu.memory_space<vmem>>, vector<1x1x8x256xf32>
      %662 = vector.shape_cast %661 : vector<1x1x8x256xf32> to vector<8x256xf32>
      %663 = arith.mulf %662, %568 : vector<8x256xf32>
      %664 = arith.addf %660, %663 : vector<8x256xf32>
      %c255_i32_633 = arith.constant 255 : i32
      %665 = tpu.dynamic_rotate %565 by %c255_i32_633 dim 1 : vector<8x256xf32>, i32 -> vector<8x256xf32>
      %c5_634 = arith.constant 5 : index
      %c0_635 = arith.constant 0 : index
      %c0_636 = arith.constant 0 : index
      %c0_637 = arith.constant 0 : index
      %666 = vector.load %arg2[%c5_634, %c0_635, %c0_636, %c0_637] : memref<9x4x8x256xf32, #tpu.memory_space<vmem>>, vector<1x1x8x256xf32>
      %667 = vector.shape_cast %666 : vector<1x1x8x256xf32> to vector<8x256xf32>
      %668 = arith.mulf %667, %665 : vector<8x256xf32>
      %669 = arith.addf %664, %668 : vector<8x256xf32>
      %c255_i32_638 = arith.constant 255 : i32
      %670 = tpu.dynamic_rotate %566 by %c255_i32_638 dim 1 : vector<8x256xf32>, i32 -> vector<8x256xf32>
      %c5_639 = arith.constant 5 : index
      %c1_640 = arith.constant 1 : index
      %c0_641 = arith.constant 0 : index
      %c0_642 = arith.constant 0 : index
      %671 = vector.load %arg2[%c5_639, %c1_640, %c0_641, %c0_642] : memref<9x4x8x256xf32, #tpu.memory_space<vmem>>, vector<1x1x8x256xf32>
      %672 = vector.shape_cast %671 : vector<1x1x8x256xf32> to vector<8x256xf32>
      %673 = arith.mulf %672, %670 : vector<8x256xf32>
      %674 = arith.addf %669, %673 : vector<8x256xf32>
      %c255_i32_643 = arith.constant 255 : i32
      %675 = tpu.dynamic_rotate %567 by %c255_i32_643 dim 1 : vector<8x256xf32>, i32 -> vector<8x256xf32>
      %c5_644 = arith.constant 5 : index
      %c2_645 = arith.constant 2 : index
      %c0_646 = arith.constant 0 : index
      %c0_647 = arith.constant 0 : index
      %676 = vector.load %arg2[%c5_644, %c2_645, %c0_646, %c0_647] : memref<9x4x8x256xf32, #tpu.memory_space<vmem>>, vector<1x1x8x256xf32>
      %677 = vector.shape_cast %676 : vector<1x1x8x256xf32> to vector<8x256xf32>
      %678 = arith.mulf %677, %675 : vector<8x256xf32>
      %679 = arith.addf %674, %678 : vector<8x256xf32>
      %c255_i32_648 = arith.constant 255 : i32
      %680 = tpu.dynamic_rotate %568 by %c255_i32_648 dim 1 : vector<8x256xf32>, i32 -> vector<8x256xf32>
      %c5_649 = arith.constant 5 : index
      %c3_650 = arith.constant 3 : index
      %c0_651 = arith.constant 0 : index
      %c0_652 = arith.constant 0 : index
      %681 = vector.load %arg2[%c5_649, %c3_650, %c0_651, %c0_652] : memref<9x4x8x256xf32, #tpu.memory_space<vmem>>, vector<1x1x8x256xf32>
      %682 = vector.shape_cast %681 : vector<1x1x8x256xf32> to vector<8x256xf32>
      %683 = arith.mulf %682, %680 : vector<8x256xf32>
      %684 = arith.addf %679, %683 : vector<8x256xf32>
      %c241_i32_653 = arith.constant 241 : i32
      %685 = tpu.dynamic_rotate %565 by %c241_i32_653 dim 1 : vector<8x256xf32>, i32 -> vector<8x256xf32>
      %c6_654 = arith.constant 6 : index
      %c0_655 = arith.constant 0 : index
      %c0_656 = arith.constant 0 : index
      %c0_657 = arith.constant 0 : index
      %686 = vector.load %arg2[%c6_654, %c0_655, %c0_656, %c0_657] : memref<9x4x8x256xf32, #tpu.memory_space<vmem>>, vector<1x1x8x256xf32>
      %687 = vector.shape_cast %686 : vector<1x1x8x256xf32> to vector<8x256xf32>
      %688 = arith.mulf %687, %685 : vector<8x256xf32>
      %689 = arith.addf %684, %688 : vector<8x256xf32>
      %c241_i32_658 = arith.constant 241 : i32
      %690 = tpu.dynamic_rotate %566 by %c241_i32_658 dim 1 : vector<8x256xf32>, i32 -> vector<8x256xf32>
      %c6_659 = arith.constant 6 : index
      %c1_660 = arith.constant 1 : index
      %c0_661 = arith.constant 0 : index
      %c0_662 = arith.constant 0 : index
      %691 = vector.load %arg2[%c6_659, %c1_660, %c0_661, %c0_662] : memref<9x4x8x256xf32, #tpu.memory_space<vmem>>, vector<1x1x8x256xf32>
      %692 = vector.shape_cast %691 : vector<1x1x8x256xf32> to vector<8x256xf32>
      %693 = arith.mulf %692, %690 : vector<8x256xf32>
      %694 = arith.addf %689, %693 : vector<8x256xf32>
      %c241_i32_663 = arith.constant 241 : i32
      %695 = tpu.dynamic_rotate %567 by %c241_i32_663 dim 1 : vector<8x256xf32>, i32 -> vector<8x256xf32>
      %c6_664 = arith.constant 6 : index
      %c2_665 = arith.constant 2 : index
      %c0_666 = arith.constant 0 : index
      %c0_667 = arith.constant 0 : index
      %696 = vector.load %arg2[%c6_664, %c2_665, %c0_666, %c0_667] : memref<9x4x8x256xf32, #tpu.memory_space<vmem>>, vector<1x1x8x256xf32>
      %697 = vector.shape_cast %696 : vector<1x1x8x256xf32> to vector<8x256xf32>
      %698 = arith.mulf %697, %695 : vector<8x256xf32>
      %699 = arith.addf %694, %698 : vector<8x256xf32>
      %c241_i32_668 = arith.constant 241 : i32
      %700 = tpu.dynamic_rotate %568 by %c241_i32_668 dim 1 : vector<8x256xf32>, i32 -> vector<8x256xf32>
      %c6_669 = arith.constant 6 : index
      %c3_670 = arith.constant 3 : index
      %c0_671 = arith.constant 0 : index
      %c0_672 = arith.constant 0 : index
      %701 = vector.load %arg2[%c6_669, %c3_670, %c0_671, %c0_672] : memref<9x4x8x256xf32, #tpu.memory_space<vmem>>, vector<1x1x8x256xf32>
      %702 = vector.shape_cast %701 : vector<1x1x8x256xf32> to vector<8x256xf32>
      %703 = arith.mulf %702, %700 : vector<8x256xf32>
      %704 = arith.addf %699, %703 : vector<8x256xf32>
      %c240_i32_673 = arith.constant 240 : i32
      %705 = tpu.dynamic_rotate %565 by %c240_i32_673 dim 1 : vector<8x256xf32>, i32 -> vector<8x256xf32>
      %c7_674 = arith.constant 7 : index
      %c0_675 = arith.constant 0 : index
      %c0_676 = arith.constant 0 : index
      %c0_677 = arith.constant 0 : index
      %706 = vector.load %arg2[%c7_674, %c0_675, %c0_676, %c0_677] : memref<9x4x8x256xf32, #tpu.memory_space<vmem>>, vector<1x1x8x256xf32>
      %707 = vector.shape_cast %706 : vector<1x1x8x256xf32> to vector<8x256xf32>
      %708 = arith.mulf %707, %705 : vector<8x256xf32>
      %709 = arith.addf %704, %708 : vector<8x256xf32>
      %c240_i32_678 = arith.constant 240 : i32
      %710 = tpu.dynamic_rotate %566 by %c240_i32_678 dim 1 : vector<8x256xf32>, i32 -> vector<8x256xf32>
      %c7_679 = arith.constant 7 : index
      %c1_680 = arith.constant 1 : index
      %c0_681 = arith.constant 0 : index
      %c0_682 = arith.constant 0 : index
      %711 = vector.load %arg2[%c7_679, %c1_680, %c0_681, %c0_682] : memref<9x4x8x256xf32, #tpu.memory_space<vmem>>, vector<1x1x8x256xf32>
      %712 = vector.shape_cast %711 : vector<1x1x8x256xf32> to vector<8x256xf32>
      %713 = arith.mulf %712, %710 : vector<8x256xf32>
      %714 = arith.addf %709, %713 : vector<8x256xf32>
      %c240_i32_683 = arith.constant 240 : i32
      %715 = tpu.dynamic_rotate %567 by %c240_i32_683 dim 1 : vector<8x256xf32>, i32 -> vector<8x256xf32>
      %c7_684 = arith.constant 7 : index
      %c2_685 = arith.constant 2 : index
      %c0_686 = arith.constant 0 : index
      %c0_687 = arith.constant 0 : index
      %716 = vector.load %arg2[%c7_684, %c2_685, %c0_686, %c0_687] : memref<9x4x8x256xf32, #tpu.memory_space<vmem>>, vector<1x1x8x256xf32>
      %717 = vector.shape_cast %716 : vector<1x1x8x256xf32> to vector<8x256xf32>
      %718 = arith.mulf %717, %715 : vector<8x256xf32>
      %719 = arith.addf %714, %718 : vector<8x256xf32>
      %c240_i32_688 = arith.constant 240 : i32
      %720 = tpu.dynamic_rotate %568 by %c240_i32_688 dim 1 : vector<8x256xf32>, i32 -> vector<8x256xf32>
      %c7_689 = arith.constant 7 : index
      %c3_690 = arith.constant 3 : index
      %c0_691 = arith.constant 0 : index
      %c0_692 = arith.constant 0 : index
      %721 = vector.load %arg2[%c7_689, %c3_690, %c0_691, %c0_692] : memref<9x4x8x256xf32, #tpu.memory_space<vmem>>, vector<1x1x8x256xf32>
      %722 = vector.shape_cast %721 : vector<1x1x8x256xf32> to vector<8x256xf32>
      %723 = arith.mulf %722, %720 : vector<8x256xf32>
      %724 = arith.addf %719, %723 : vector<8x256xf32>
      %c239_i32_693 = arith.constant 239 : i32
      %725 = tpu.dynamic_rotate %565 by %c239_i32_693 dim 1 : vector<8x256xf32>, i32 -> vector<8x256xf32>
      %c8_694 = arith.constant 8 : index
      %c0_695 = arith.constant 0 : index
      %c0_696 = arith.constant 0 : index
      %c0_697 = arith.constant 0 : index
      %726 = vector.load %arg2[%c8_694, %c0_695, %c0_696, %c0_697] : memref<9x4x8x256xf32, #tpu.memory_space<vmem>>, vector<1x1x8x256xf32>
      %727 = vector.shape_cast %726 : vector<1x1x8x256xf32> to vector<8x256xf32>
      %728 = arith.mulf %727, %725 : vector<8x256xf32>
      %729 = arith.addf %724, %728 : vector<8x256xf32>
      %c239_i32_698 = arith.constant 239 : i32
      %730 = tpu.dynamic_rotate %566 by %c239_i32_698 dim 1 : vector<8x256xf32>, i32 -> vector<8x256xf32>
      %c8_699 = arith.constant 8 : index
      %c1_700 = arith.constant 1 : index
      %c0_701 = arith.constant 0 : index
      %c0_702 = arith.constant 0 : index
      %731 = vector.load %arg2[%c8_699, %c1_700, %c0_701, %c0_702] : memref<9x4x8x256xf32, #tpu.memory_space<vmem>>, vector<1x1x8x256xf32>
      %732 = vector.shape_cast %731 : vector<1x1x8x256xf32> to vector<8x256xf32>
      %733 = arith.mulf %732, %730 : vector<8x256xf32>
      %734 = arith.addf %729, %733 : vector<8x256xf32>
      %c239_i32_703 = arith.constant 239 : i32
      %735 = tpu.dynamic_rotate %567 by %c239_i32_703 dim 1 : vector<8x256xf32>, i32 -> vector<8x256xf32>
      %c8_704 = arith.constant 8 : index
      %c2_705 = arith.constant 2 : index
      %c0_706 = arith.constant 0 : index
      %c0_707 = arith.constant 0 : index
      %736 = vector.load %arg2[%c8_704, %c2_705, %c0_706, %c0_707] : memref<9x4x8x256xf32, #tpu.memory_space<vmem>>, vector<1x1x8x256xf32>
      %737 = vector.shape_cast %736 : vector<1x1x8x256xf32> to vector<8x256xf32>
      %738 = arith.mulf %737, %735 : vector<8x256xf32>
      %739 = arith.addf %734, %738 : vector<8x256xf32>
      %c239_i32_708 = arith.constant 239 : i32
      %740 = tpu.dynamic_rotate %568 by %c239_i32_708 dim 1 : vector<8x256xf32>, i32 -> vector<8x256xf32>
      %c8_709 = arith.constant 8 : index
      %c3_710 = arith.constant 3 : index
      %c0_711 = arith.constant 0 : index
      %c0_712 = arith.constant 0 : index
      %741 = vector.load %arg2[%c8_709, %c3_710, %c0_711, %c0_712] : memref<9x4x8x256xf32, #tpu.memory_space<vmem>>, vector<1x1x8x256xf32>
      %742 = vector.shape_cast %741 : vector<1x1x8x256xf32> to vector<8x256xf32>
      %743 = arith.mulf %742, %740 : vector<8x256xf32>
      %744 = arith.addf %739, %743 : vector<8x256xf32>
      %cst_713 = arith.constant 0.000000e+00 : f32
      %745 = vector.broadcast %cst_713 : f32 to vector<8x256xf32>
      %746 = arith.maximumf %744, %745 : vector<8x256xf32>
      %747 = arith.addf %562, %746 : vector<8x256xf32>
      %cst_714 = arith.constant 0.0416666679 : f32
      %748 = vector.broadcast %cst_714 : f32 to vector<8x256xf32>
      %749 = arith.mulf %748, %747 : vector<8x256xf32>
      %750 = arith.addf %arg6, %749 : vector<8x256xf32>
      scf.yield %750 : vector<8x256xf32>
    }
    %c0_4 = arith.constant 0 : index
    %c0_5 = arith.constant 0 : index
    %c0_6 = arith.constant 0 : index
    %5 = vector.load %arg4[%c0_4, %c0_5, %c0_6] : memref<1x8x256xf32, #tpu.memory_space<vmem>>, vector<1x8x256xf32>
    %6 = vector.shape_cast %5 : vector<1x8x256xf32> to vector<8x256xf32>
    %7 = vector.shape_cast %4 : vector<8x256xf32> to vector<1x8x256xf32>
    tpu.vector_store %arg4[%c0_4, %c0_5, %c0_6], %7 {strides = array<i32>} : memref<1x8x256xf32, #tpu.memory_space<vmem>>, vector<1x8x256xf32>,
    return
  }
  func.func @transform_0(%arg0: i32) -> (i32, i32, i32) {
    %c0_i32 = arith.constant 0 : i32
    %c0_i32_0 = arith.constant 0 : i32
    %c0_i32_1 = arith.constant 0 : i32
    return %arg0, %c0_i32, %c0_i32_0 : i32, i32, i32
  }
  func.func @transform_1(%arg0: i32) -> (i32, i32, i32, i32) {
    %c0_i32 = arith.constant 0 : i32
    %c0_i32_0 = arith.constant 0 : i32
    %c0_i32_1 = arith.constant 0 : i32
    %c0_i32_2 = arith.constant 0 : i32
    %c0_i32_3 = arith.constant 0 : i32
    return %c0_i32, %c0_i32_0, %c0_i32_1, %c0_i32_2 : i32, i32, i32, i32
  }
  func.func @transform_2(%arg0: i32) -> (i32, i32) {
    %c0_i32 = arith.constant 0 : i32
    %c0_i32_0 = arith.constant 0 : i32
    %c0_i32_1 = arith.constant 0 : i32
    return %c0_i32, %c0_i32_0 : i32, i32
  }
  func.func @transform_3(%arg0: i32) -> (i32, i32, i32) {
    %c0_i32 = arith.constant 0 : i32
    %c0_i32_0 = arith.constant 0 : i32
    %c0_i32_1 = arith.constant 0 : i32
    return %arg0, %c0_i32, %c0_i32_0 : i32, i32, i32
  }
}

</mosaic_0001>

<llo_original>
// kernel: tpu_custom_call.1
$region0: #{tpu_custom_call.1}
  #allocation0 [shape = 'u32[]', space=smem, size = 0x4, offset = 0x4, fixed_abs, tag = 'smem constant byte address 0x4 - core index']
  #allocation1 [shape = 'u32[144,128]{1,0:T(1,128)}', space=vmem, size = 0x12000, scoped, tag = 'internal scratch']
  %s0 = inlined_call_operand.hbm [shape: f32[1,8,256], index: 0, kind: input, shape index: {}]
  %s1 = inlined_call_operand.hbm [shape: f32[9,4,8,256], index: 1, kind: input, shape index: {}]
  %s2 = inlined_call_operand.hbm [shape: f32[8,256], index: 2, kind: input, shape index: {}]
  %s3 = inlined_call_operand.hbm [shape: f32[1,8,256], index: 3, kind: output, shape index: {}]
  %s4 = sld [smem:[#allocation0]]
  $region41: #{tpu_custom_call.1} parent=0
    _
  %s6 = ssub.s32 1, %s4
  %s7 = scalar_select 0, %s6, %s4
  $region1: #{tpu_custom_call.1} parent=0
    #allocation2 [shape = 'u8[8192]{0}', space=vmem, size = 0x2000, scoped, tag = 'input window, operand 0, single buffered']
    #allocation3 [shape = 's32[1]{0}', space=sflag, size = 0x4, scoped, tag = 'scoped memory for tpu_custom_call.1']
    #allocation4 [shape = 's32[1]{0}', space=sflag, size = 0x4, scoped, tag = 'scoped memory for tpu_custom_call.1']
    #allocation5 [shape = 'u8[294912]{0}', space=vmem, size = 0x48000, scoped, tag = 'input window, operand 1, single buffered']
    #allocation6 [shape = 's32[1]{0}', space=sflag, size = 0x4, scoped, tag = 'scoped memory for tpu_custom_call.1']
    #allocation7 [shape = 'u8[8192]{0}', space=vmem, size = 0x2000, scoped, tag = 'input window, operand 2, single buffered']
    #allocation8 [shape = 'u8[8192]{0}', space=vmem, size = 0x2000, scoped, tag = 'output window, operand 0, single buffered']
    %8 = vsyncpa [#allocation3], 0
    %9 = vsyncpa [#allocation6], 0
    %10 = vsyncpa [#allocation4], 0
    // Predicated region
    $region2: #{tpu_custom_call.1} parent=1 // pred_check
      _
    $region3: #{tpu_custom_call.1} parent=1 // pred_check_branch
      %12 = sbr.rel (0) target = $region5
    $region4: #{tpu_custom_call.1} parent=1 // pred_region
      %s14 = ssub.s32 256, 256
      %15 = vsyncadd [#allocation3], %s14
      %s17 = sshll.u32 [#allocation2], 4
      %s18 = int_to_ptr.vmem [resolvable:$true] %s17
      %20 = dma.hbm_to_vmem [thread:$0]  %s0, 256, %s18, [#allocation3]
    $region5: #{tpu_custom_call.1} parent=1 // pred_fallthru
      _
    // Predicated region
    $region6: #{tpu_custom_call.1} parent=1 // pred_check
      _
    $region7: #{tpu_custom_call.1} parent=1 // pred_check_branch
      %22 = sbr.rel (0) target = $region9
    $region8: #{tpu_custom_call.1} parent=1 // pred_region
      %s24 = ssub.s32 9216, 9216
      %25 = vsyncadd [#allocation6], %s24
      %s26 = sshll.u32 [#allocation5], 4
      %s27 = int_to_ptr.vmem [resolvable:$true] %s26
      %32 = dma.hbm_to_vmem [thread:$0]  %s1, 9216, %s27, [#allocation6], 256, 256, 16
    $region9: #{tpu_custom_call.1} parent=1 // pred_fallthru
      _
    // Predicated region
    $region10: #{tpu_custom_call.1} parent=1 // pred_check
      _
    $region11: #{tpu_custom_call.1} parent=1 // pred_check_branch
      %34 = sbr.rel (0) target = $region13
    $region12: #{tpu_custom_call.1} parent=1 // pred_region
      %s36 = ssub.s32 256, 256
      %37 = vsyncadd [#allocation6], %s36
      %s39 = sshll.u32 [#allocation7], 4
      %s40 = int_to_ptr.vmem [resolvable:$true] %s39
      %42 = dma.hbm_to_vmem [thread:$0]  %s2, 256, %s40, [#allocation6]
    $region13: #{tpu_custom_call.1} parent=1 // pred_fallthru
      _
    // Predicated region
    $region14: #{tpu_custom_call.1} parent=1 // pred_check
      _
    $region15: #{tpu_custom_call.1} parent=1 // pred_check_branch
      %44 = sbr.rel (0) target = $region17
    $region16: #{tpu_custom_call.1} parent=1 // pred_region
      %45 = dma.done [#allocation3], 256
    $region17: #{tpu_custom_call.1} parent=1 // pred_fallthru
      _
    // Predicated region
    $region18: #{tpu_custom_call.1} parent=1 // pred_check
      _
    $region19: #{tpu_custom_call.1} parent=1 // pred_check_branch
      %47 = sbr.rel (0) target = $region21
    $region20: #{tpu_custom_call.1} parent=1 // pred_region
      %48 = dma.done [#allocation6], 9216
    $region21: #{tpu_custom_call.1} parent=1 // pred_fallthru
      _
    // Predicated region
    $region22: #{tpu_custom_call.1} parent=1 // pred_check
      _
    $region23: #{tpu_custom_call.1} parent=1 // pred_check_branch
      %50 = sbr.rel (0) target = $region25
    $region24: #{tpu_custom_call.1} parent=1 // pred_region
      %51 = dma.done [#allocation6], 256
    $region25: #{tpu_custom_call.1} parent=1 // pred_fallthru
      _
    %v52 = vld [vmem:[#allocation7] sm:$0xff]
    %v53 = vld [vmem:[#allocation7 + $0x8] sm:$0xff]
    %v54 = vld [vmem:[#allocation2] sm:$0xff]
    %v55 = vld [vmem:[#allocation2 + $0x8] sm:$0xff]
    loop: start=0, step=1, limit=4
    $region26: #{tpu_custom_call.1} parent=1 // loop_pre_header
      _
    $region27: #{tpu_custom_call.1} parent=1 // loop_header
      %s57 = sphi 0, %s61
      %p58 = scmp.ge.s32.totalorder %s57, 4
      %v62 = vphi %v54, %v1581
      %v63 = vphi %v55, %v1582
    $region28: #{tpu_custom_call.1} parent=1 // loop_header_branch
      %60 = sbr.rel (%p58) target = $region32
    $region29: #{tpu_custom_call.1} parent=1 // loop_body
      %v64 = vrot.slane %v62, 6
      %v65 = vrot.slane %v63, 6
      %v66 = vrot.slane %v62, 4
      %v67 = vrot.slane %v63, 4
      %v68 = vrot.slane %v62, 2
      %v69 = vrot.slane %v63, 2
      %70 = vrot.lane.b32.xlu0 %v62, 17
      %v71 = vpop.permute.xlu0 %70
      %72 = vrot.lane.b32.xlu0 %v63, 17
      %v73 = vpop.permute.xlu0 %72
      %v74 = vlaneseq
      %v75 = vand.u32 %v74, 127
      %vm76 = vcmp.lt.s32.totalorder %v75, 17
      %v77 = vsel %vm76, %v71, %v73
      %v78 = vsel %vm76, %v73, %v71
      %v79 = vld [vmem:[#allocation5] sm:$0xff]
      %v80 = vld [vmem:[#allocation5 + $0x8] sm:$0xff]
      %v81 = vmul.f32 %v79, %v78
      %v82 = vmul.f32 %v80, %v77
      %v83 = vadd.f32 %v52, %v81
      %v84 = vadd.f32 %v53, %v82
      %85 = vrot.lane.b32.xlu0 %v64, 17
      %v86 = vpop.permute.xlu0 %85
      %87 = vrot.lane.b32.xlu0 %v65, 17
      %v88 = vpop.permute.xlu0 %87
      %v89 = vsel %vm76, %v86, %v88
      %v90 = vsel %vm76, %v88, %v86
      %s91 = scalar_lea.vmem [#allocation5], 16
      %v92 = vld [vmem:[%s91] sm:$0xff]
      %v93 = vld [vmem:[%s91 + $0x8] sm:$0xff]
      %v94 = vmul.f32 %v92, %v90
      %v95 = vmul.f32 %v93, %v89
      %v96 = vadd.f32 %v83, %v94
      %v97 = vadd.f32 %v84, %v95
      %98 = vrot.lane.b32.xlu0 %v66, 17
      %v99 = vpop.permute.xlu0 %98
      %100 = vrot.lane.b32.xlu0 %v67, 17
      %v101 = vpop.permute.xlu0 %100
      %v102 = vsel %vm76, %v99, %v101
      %v103 = vsel %vm76, %v101, %v99
      %s104 = scalar_lea.vmem [#allocation5], 32
      %v105 = vld [vmem:[%s104] sm:$0xff]
      %v106 = vld [vmem:[%s104 + $0x8] sm:$0xff]
      %v107 = vmul.f32 %v105, %v103
      %v108 = vmul.f32 %v106, %v102
      %v109 = vadd.f32 %v96, %v107
      %v110 = vadd.f32 %v97, %v108
      %111 = vrot.lane.b32.xlu0 %v68, 17
      %v112 = vpop.permute.xlu0 %111
      %113 = vrot.lane.b32.xlu0 %v69, 17
      %v114 = vpop.permute.xlu0 %113
      %v115 = vsel %vm76, %v112, %v114
      %v116 = vsel %vm76, %v114, %v112
      %s117 = scalar_lea.vmem [#allocation5], 48
      %v118 = vld [vmem:[%s117] sm:$0xff]
      %v119 = vld [vmem:[%s117 + $0x8] sm:$0xff]
      %v120 = vmul.f32 %v118, %v116
      %v121 = vmul.f32 %v119, %v115
      %v122 = vadd.f32 %v109, %v120
      %v123 = vadd.f32 %v110, %v121
      %124 = vrot.lane.b32.xlu0 %v62, 16
      %v125 = vpop.permute.xlu0 %124
      %126 = vrot.lane.b32.xlu0 %v63, 16
      %v127 = vpop.permute.xlu0 %126
      %vm128 = vcmp.lt.s32.totalorder %v75, 16
      %v129 = vsel %vm128, %v125, %v127
      %v130 = vsel %vm128, %v127, %v125
      %s131 = scalar_lea.vmem [#allocation5], 64
      %v132 = vld [vmem:[%s131] sm:$0xff]
      %v133 = vld [vmem:[%s131 + $0x8] sm:$0xff]
      %v134 = vmul.f32 %v132, %v130
      %v135 = vmul.f32 %v133, %v129
      %v136 = vadd.f32 %v122, %v134
      %v137 = vadd.f32 %v123, %v135
      %138 = vrot.lane.b32.xlu0 %v64, 16
      %v139 = vpop.permute.xlu0 %138
      %140 = vrot.lane.b32.xlu0 %v65, 16
      %v141 = vpop.permute.xlu0 %140
      %v142 = vsel %vm128, %v139, %v141
      %v143 = vsel %vm128, %v141, %v139
      %s144 = scalar_lea.vmem [#allocation5], 80
      %v145 = vld [vmem:[%s144] sm:$0xff]
      %v146 = vld [vmem:[%s144 + $0x8] sm:$0xff]
      %v147 = vmul.f32 %v145, %v143
      %v148 = vmul.f32 %v146, %v142
      %v149 = vadd.f32 %v136, %v147
      %v150 = vadd.f32 %v137, %v148
      %151 = vrot.lane.b32.xlu0 %v66, 16
      %v152 = vpop.permute.xlu0 %151
      %153 = vrot.lane.b32.xlu0 %v67, 16
      %v154 = vpop.permute.xlu0 %153
      %v155 = vsel %vm128, %v152, %v154
      %v156 = vsel %vm128, %v154, %v152
      %s157 = scalar_lea.vmem [#allocation5], 96
      %v158 = vld [vmem:[%s157] sm:$0xff]
      %v159 = vld [vmem:[%s157 + $0x8] sm:$0xff]
      %v160 = vmul.f32 %v158, %v156
      %v161 = vmul.f32 %v159, %v155
      %v162 = vadd.f32 %v149, %v160
      %v163 = vadd.f32 %v150, %v161
      %164 = vrot.lane.b32.xlu0 %v68, 16
      %v165 = vpop.permute.xlu0 %164
      %166 = vrot.lane.b32.xlu0 %v69, 16
      %v167 = vpop.permute.xlu0 %166
      %v168 = vsel %vm128, %v165, %v167
      %v169 = vsel %vm128, %v167, %v165
      %s170 = scalar_lea.vmem [#allocation5], 112
      %v171 = vld [vmem:[%s170] sm:$0xff]
      %v172 = vld [vmem:[%s170 + $0x8] sm:$0xff]
      %v173 = vmul.f32 %v171, %v169
      %v174 = vmul.f32 %v172, %v168
      %v175 = vadd.f32 %v162, %v173
      %v176 = vadd.f32 %v163, %v174
      %177 = vrot.lane.b32.xlu0 %v62, 15
      %v178 = vpop.permute.xlu0 %177
      %179 = vrot.lane.b32.xlu0 %v63, 15
      %v180 = vpop.permute.xlu0 %179
      %vm181 = vcmp.lt.s32.totalorder %v75, 15
      %v182 = vsel %vm181, %v178, %v180
      %v183 = vsel %vm181, %v180, %v178
      %s184 = scalar_lea.vmem [#allocation5], 128
      %v185 = vld [vmem:[%s184] sm:$0xff]
      %v186 = vld [vmem:[%s184 + $0x8] sm:$0xff]
      %v187 = vmul.f32 %v185, %v183
      %v188 = vmul.f32 %v186, %v182
      %v189 = vadd.f32 %v175, %v187
      %v190 = vadd.f32 %v176, %v188
      %191 = vrot.lane.b32.xlu0 %v64, 15
      %v192 = vpop.permute.xlu0 %191
      %193 = vrot.lane.b32.xlu0 %v65, 15
      %v194 = vpop.permute.xlu0 %193
      %v195 = vsel %vm181, %v192, %v194
      %v196 = vsel %vm181, %v194, %v192
      %s197 = scalar_lea.vmem [#allocation5], 144
      %v198 = vld [vmem:[%s197] sm:$0xff]
      %v199 = vld [vmem:[%s197 + $0x8] sm:$0xff]
      %v200 = vmul.f32 %v198, %v196
      %v201 = vmul.f32 %v199, %v195
      %v202 = vadd.f32 %v189, %v200
      %v203 = vadd.f32 %v190, %v201
      %204 = vrot.lane.b32.xlu0 %v66, 15
      %v205 = vpop.permute.xlu0 %204
      %206 = vrot.lane.b32.xlu0 %v67, 15
      %v207 = vpop.permute.xlu0 %206
      %v208 = vsel %vm181, %v205, %v207
      %v209 = vsel %vm181, %v207, %v205
      %s210 = scalar_lea.vmem [#allocation5], 160
      %v211 = vld [vmem:[%s210] sm:$0xff]
      %v212 = vld [vmem:[%s210 + $0x8] sm:$0xff]
      %v213 = vmul.f32 %v211, %v209
      %v214 = vmul.f32 %v212, %v208
      %v215 = vadd.f32 %v202, %v213
      %v216 = vadd.f32 %v203, %v214
      %217 = vrot.lane.b32.xlu0 %v68, 15
      %v218 = vpop.permute.xlu0 %217
      %219 = vrot.lane.b32.xlu0 %v69, 15
      %v220 = vpop.permute.xlu0 %219
      %v221 = vsel %vm181, %v218, %v220
      %v222 = vsel %vm181, %v220, %v218
      %s223 = scalar_lea.vmem [#allocation5], 176
      %v224 = vld [vmem:[%s223] sm:$0xff]
      %v225 = vld [vmem:[%s223 + $0x8] sm:$0xff]
      %v226 = vmul.f32 %v224, %v222
      %v227 = vmul.f32 %v225, %v221
      %v228 = vadd.f32 %v215, %v226
      %v229 = vadd.f32 %v216, %v227
      %230 = vrot.lane.b32.xlu0 %v62, 1
      %v231 = vpop.permute.xlu0 %230
      %232 = vrot.lane.b32.xlu0 %v63, 1
      %v233 = vpop.permute.xlu0 %232
      %vm234 = vcmp.lt.s32.totalorder %v75, 1
      %v235 = vsel %vm234, %v231, %v233
      %v236 = vsel %vm234, %v233, %v231
      %s237 = scalar_lea.vmem [#allocation5], 192
      %v238 = vld [vmem:[%s237] sm:$0xff]
      %v239 = vld [vmem:[%s237 + $0x8] sm:$0xff]
      %v240 = vmul.f32 %v238, %v236
      %v241 = vmul.f32 %v239, %v235
      %v242 = vadd.f32 %v228, %v240
      %v243 = vadd.f32 %v229, %v241
      %244 = vrot.lane.b32.xlu0 %v64, 1
      %v245 = vpop.permute.xlu0 %244
      %246 = vrot.lane.b32.xlu0 %v65, 1
      %v247 = vpop.permute.xlu0 %246
      %v248 = vsel %vm234, %v245, %v247
      %v249 = vsel %vm234, %v247, %v245
      %s250 = scalar_lea.vmem [#allocation5], 208
      %v251 = vld [vmem:[%s250] sm:$0xff]
      %v252 = vld [vmem:[%s250 + $0x8] sm:$0xff]
      %v253 = vmul.f32 %v251, %v249
      %v254 = vmul.f32 %v252, %v248
      %v255 = vadd.f32 %v242, %v253
      %v256 = vadd.f32 %v243, %v254
      %257 = vrot.lane.b32.xlu0 %v66, 1
      %v258 = vpop.permute.xlu0 %257
      %259 = vrot.lane.b32.xlu0 %v67, 1
      %v260 = vpop.permute.xlu0 %259
      %v261 = vsel %vm234, %v258, %v260
      %v262 = vsel %vm234, %v260, %v258
      %s263 = scalar_lea.vmem [#allocation5], 224
      %v264 = vld [vmem:[%s263] sm:$0xff]
      %v265 = vld [vmem:[%s263 + $0x8] sm:$0xff]
      %v266 = vmul.f32 %v264, %v262
      %v267 = vmul.f32 %v265, %v261
      %v268 = vadd.f32 %v255, %v266
      %v269 = vadd.f32 %v256, %v267
      %270 = vrot.lane.b32.xlu0 %v68, 1
      %v271 = vpop.permute.xlu0 %270
      %272 = vrot.lane.b32.xlu0 %v69, 1
      %v273 = vpop.permute.xlu0 %272
      %v274 = vsel %vm234, %v271, %v273
      %v275 = vsel %vm234, %v273, %v271
      %s276 = scalar_lea.vmem [#allocation5], 240
      %v277 = vld [vmem:[%s276] sm:$0xff]
      %v278 = vld [vmem:[%s276 + $0x8] sm:$0xff]
      %v279 = vmul.f32 %v277, %v275
      %v280 = vmul.f32 %v278, %v274
      %v281 = vadd.f32 %v268, %v279
      %v282 = vadd.f32 %v269, %v280
      %s283 = scalar_lea.vmem [#allocation5], 256
      %v284 = vld [vmem:[%s283] sm:$0xff]
      %v285 = vld [vmem:[%s283 + $0x8] sm:$0xff]
      %v286 = vmul.f32 %v284, %v62
      %v287 = vmul.f32 %v285, %v63
      %v288 = vadd.f32 %v281, %v286
      %v289 = vadd.f32 %v282, %v287
      %s290 = scalar_lea.vmem [#allocation5], 272
      %v291 = vld [vmem:[%s290] sm:$0xff]
      %v292 = vld [vmem:[%s290 + $0x8] sm:$0xff]
      %v293 = vmul.f32 %v291, %v64
      %v294 = vmul.f32 %v292, %v65
      %v295 = vadd.f32 %v288, %v293
      %v296 = vadd.f32 %v289, %v294
      %s297 = scalar_lea.vmem [#allocation5], 288
      %v298 = vld [vmem:[%s297] sm:$0xff]
      %v299 = vld [vmem:[%s297 + $0x8] sm:$0xff]
      %v300 = vmul.f32 %v298, %v66
      %v301 = vmul.f32 %v299, %v67
      %v302 = vadd.f32 %v295, %v300
      %v303 = vadd.f32 %v296, %v301
      %s304 = scalar_lea.vmem [#allocation5], 304
      %v305 = vld [vmem:[%s304] sm:$0xff]
      %v306 = vld [vmem:[%s304 + $0x8] sm:$0xff]
      %v307 = vmul.f32 %v305, %v68
      %v308 = vmul.f32 %v306, %v69
      %v309 = vadd.f32 %v302, %v307
      %v310 = vadd.f32 %v303, %v308
      %311 = vrot.lane.b32.xlu0 %v62, 127
      %v312 = vpop.permute.xlu0 %311
      %313 = vrot.lane.b32.xlu0 %v63, 127
      %v314 = vpop.permute.xlu0 %313
      %vm315 = vcmp.lt.s32.totalorder %v75, 127
      %v316 = vsel %vm315, %v312, %v314
      %v317 = vsel %vm315, %v314, %v312
      %s318 = scalar_lea.vmem [#allocation5], 320
      %v319 = vld [vmem:[%s318] sm:$0xff]
      %v320 = vld [vmem:[%s318 + $0x8] sm:$0xff]
      %v321 = vmul.f32 %v319, %v316
      %v322 = vmul.f32 %v320, %v317
      %v323 = vadd.f32 %v309, %v321
      %v324 = vadd.f32 %v310, %v322
      %325 = vrot.lane.b32.xlu0 %v64, 127
      %v326 = vpop.permute.xlu0 %325
      %327 = vrot.lane.b32.xlu0 %v65, 127
      %v328 = vpop.permute.xlu0 %327
      %v329 = vsel %vm315, %v326, %v328
      %v330 = vsel %vm315, %v328, %v326
      %s331 = scalar_lea.vmem [#allocation5], 336
      %v332 = vld [vmem:[%s331] sm:$0xff]
      %v333 = vld [vmem:[%s331 + $0x8] sm:$0xff]
      %v334 = vmul.f32 %v332, %v329
      %v335 = vmul.f32 %v333, %v330
      %v336 = vadd.f32 %v323, %v334
      %v337 = vadd.f32 %v324, %v335
      %338 = vrot.lane.b32.xlu0 %v66, 127
      %v339 = vpop.permute.xlu0 %338
      %340 = vrot.lane.b32.xlu0 %v67, 127
      %v341 = vpop.permute.xlu0 %340
      %v342 = vsel %vm315, %v339, %v341
      %v343 = vsel %vm315, %v341, %v339
      %s344 = scalar_lea.vmem [#allocation5], 352
      %v345 = vld [vmem:[%s344] sm:$0xff]
      %v346 = vld [vmem:[%s344 + $0x8] sm:$0xff]
      %v347 = vmul.f32 %v345, %v342
      %v348 = vmul.f32 %v346, %v343
      %v349 = vadd.f32 %v336, %v347
      %v350 = vadd.f32 %v337, %v348
      %351 = vrot.lane.b32.xlu0 %v68, 127
      %v352 = vpop.permute.xlu0 %351
      %353 = vrot.lane.b32.xlu0 %v69, 127
      %v354 = vpop.permute.xlu0 %353
      %v355 = vsel %vm315, %v352, %v354
      %v356 = vsel %vm315, %v354, %v352
      %s357 = scalar_lea.vmem [#allocation5], 368
      %v358 = vld [vmem:[%s357] sm:$0xff]
      %v359 = vld [vmem:[%s357 + $0x8] sm:$0xff]
      %v360 = vmul.f32 %v358, %v355
      %v361 = vmul.f32 %v359, %v356
      %v362 = vadd.f32 %v349, %v360
      %v363 = vadd.f32 %v350, %v361
      %364 = vrot.lane.b32.xlu0 %v62, 113
      %v365 = vpop.permute.xlu0 %364
      %366 = vrot.lane.b32.xlu0 %v63, 113
      %v367 = vpop.permute.xlu0 %366
      %vm368 = vcmp.lt.s32.totalorder %v75, 113
      %v369 = vsel %vm368, %v365, %v367
      %v370 = vsel %vm368, %v367, %v365
      %s371 = scalar_lea.vmem [#allocation5], 384
      %v372 = vld [vmem:[%s371] sm:$0xff]
      %v373 = vld [vmem:[%s371 + $0x8] sm:$0xff]
      %v374 = vmul.f32 %v372, %v369
      %v375 = vmul.f32 %v373, %v370
      %v376 = vadd.f32 %v362, %v374
      %v377 = vadd.f32 %v363, %v375
      %378 = vrot.lane.b32.xlu0 %v64, 113
      %v379 = vpop.permute.xlu0 %378
      %380 = vrot.lane.b32.xlu0 %v65, 113
      %v381 = vpop.permute.xlu0 %380
      %v382 = vsel %vm368, %v379, %v381
      %v383 = vsel %vm368, %v381, %v379
      %s384 = scalar_lea.vmem [#allocation5], 400
      %v385 = vld [vmem:[%s384] sm:$0xff]
      %v386 = vld [vmem:[%s384 + $0x8] sm:$0xff]
      %v387 = vmul.f32 %v385, %v382
      %v388 = vmul.f32 %v386, %v383
      %v389 = vadd.f32 %v376, %v387
      %v390 = vadd.f32 %v377, %v388
      %391 = vrot.lane.b32.xlu0 %v66, 113
      %v392 = vpop.permute.xlu0 %391
      %393 = vrot.lane.b32.xlu0 %v67, 113
      %v394 = vpop.permute.xlu0 %393
      %v395 = vsel %vm368, %v392, %v394
      %v396 = vsel %vm368, %v394, %v392
      %s397 = scalar_lea.vmem [#allocation5], 416
      %v398 = vld [vmem:[%s397] sm:$0xff]
      %v399 = vld [vmem:[%s397 + $0x8] sm:$0xff]
      %v400 = vmul.f32 %v398, %v395
      %v401 = vmul.f32 %v399, %v396
      %v402 = vadd.f32 %v389, %v400
      %v403 = vadd.f32 %v390, %v401
      %404 = vrot.lane.b32.xlu0 %v68, 113
      %v405 = vpop.permute.xlu0 %404
      %406 = vrot.lane.b32.xlu0 %v69, 113
      %v407 = vpop.permute.xlu0 %406
      %v408 = vsel %vm368, %v405, %v407
      %v409 = vsel %vm368, %v407, %v405
      %s410 = scalar_lea.vmem [#allocation5], 432
      %v411 = vld [vmem:[%s410] sm:$0xff]
      %v412 = vld [vmem:[%s410 + $0x8] sm:$0xff]
      %v413 = vmul.f32 %v411, %v408
      %v414 = vmul.f32 %v412, %v409
      %v415 = vadd.f32 %v402, %v413
      %v416 = vadd.f32 %v403, %v414
      %417 = vrot.lane.b32.xlu0 %v62, 112
      %v418 = vpop.permute.xlu0 %417
      %419 = vrot.lane.b32.xlu0 %v63, 112
      %v420 = vpop.permute.xlu0 %419
      %vm421 = vcmp.lt.s32.totalorder %v75, 112
      %v422 = vsel %vm421, %v418, %v420
      %v423 = vsel %vm421, %v420, %v418
      %s424 = scalar_lea.vmem [#allocation5], 448
      %v425 = vld [vmem:[%s424] sm:$0xff]
      %v426 = vld [vmem:[%s424 + $0x8] sm:$0xff]
      %v427 = vmul.f32 %v425, %v422
      %v428 = vmul.f32 %v426, %v423
      %v429 = vadd.f32 %v415, %v427
      %v430 = vadd.f32 %v416, %v428
      %431 = vrot.lane.b32.xlu0 %v64, 112
      %v432 = vpop.permute.xlu0 %431
      %433 = vrot.lane.b32.xlu0 %v65, 112
      %v434 = vpop.permute.xlu0 %433
      %v435 = vsel %vm421, %v432, %v434
      %v436 = vsel %vm421, %v434, %v432
      %s437 = scalar_lea.vmem [#allocation5], 464
      %v438 = vld [vmem:[%s437] sm:$0xff]
      %v439 = vld [vmem:[%s437 + $0x8] sm:$0xff]
      %v440 = vmul.f32 %v438, %v435
      %v441 = vmul.f32 %v439, %v436
      %v442 = vadd.f32 %v429, %v440
      %v443 = vadd.f32 %v430, %v441
      %444 = vrot.lane.b32.xlu0 %v66, 112
      %v445 = vpop.permute.xlu0 %444
      %446 = vrot.lane.b32.xlu0 %v67, 112
      %v447 = vpop.permute.xlu0 %446
      %v448 = vsel %vm421, %v445, %v447
      %v449 = vsel %vm421, %v447, %v445
      %s450 = scalar_lea.vmem [#allocation5], 480
      %v451 = vld [vmem:[%s450] sm:$0xff]
      %v452 = vld [vmem:[%s450 + $0x8] sm:$0xff]
      %v453 = vmul.f32 %v451, %v448
      %v454 = vmul.f32 %v452, %v449
      %v455 = vadd.f32 %v442, %v453
      %v456 = vadd.f32 %v443, %v454
      %457 = vrot.lane.b32.xlu0 %v68, 112
      %v458 = vpop.permute.xlu0 %457
      %459 = vrot.lane.b32.xlu0 %v69, 112
      %v460 = vpop.permute.xlu0 %459
      %v461 = vsel %vm421, %v458, %v460
      %v462 = vsel %vm421, %v460, %v458
      %s463 = scalar_lea.vmem [#allocation5], 496
      %v464 = vld [vmem:[%s463] sm:$0xff]
      %v465 = vld [vmem:[%s463 + $0x8] sm:$0xff]
      %v466 = vmul.f32 %v464, %v461
      %v467 = vmul.f32 %v465, %v462
      %v468 = vadd.f32 %v455, %v466
      %v469 = vadd.f32 %v456, %v467
      %470 = vrot.lane.b32.xlu0 %v62, 111
      %v471 = vpop.permute.xlu0 %470
      %472 = vrot.lane.b32.xlu0 %v63, 111
      %v473 = vpop.permute.xlu0 %472
      %vm474 = vcmp.lt.s32.totalorder %v75, 111
      %v475 = vsel %vm474, %v471, %v473
      %v476 = vsel %vm474, %v473, %v471
      %s477 = scalar_lea.vmem [#allocation5], 512
      %v478 = vld [vmem:[%s477] sm:$0xff]
      %v479 = vld [vmem:[%s477 + $0x8] sm:$0xff]
      %v480 = vmul.f32 %v478, %v475
      %v481 = vmul.f32 %v479, %v476
      %v482 = vadd.f32 %v468, %v480
      %v483 = vadd.f32 %v469, %v481
      %484 = vrot.lane.b32.xlu0 %v64, 111
      %v485 = vpop.permute.xlu0 %484
      %486 = vrot.lane.b32.xlu0 %v65, 111
      %v487 = vpop.permute.xlu0 %486
      %v488 = vsel %vm474, %v485, %v487
      %v489 = vsel %vm474, %v487, %v485
      %s490 = scalar_lea.vmem [#allocation5], 528
      %v491 = vld [vmem:[%s490] sm:$0xff]
      %v492 = vld [vmem:[%s490 + $0x8] sm:$0xff]
      %v493 = vmul.f32 %v491, %v488
      %v494 = vmul.f32 %v492, %v489
      %v495 = vadd.f32 %v482, %v493
      %v496 = vadd.f32 %v483, %v494
      %497 = vrot.lane.b32.xlu0 %v66, 111
      %v498 = vpop.permute.xlu0 %497
      %499 = vrot.lane.b32.xlu0 %v67, 111
      %v500 = vpop.permute.xlu0 %499
      %v501 = vsel %vm474, %v498, %v500
      %v502 = vsel %vm474, %v500, %v498
      %s503 = scalar_lea.vmem [#allocation5], 544
      %v504 = vld [vmem:[%s503] sm:$0xff]
      %v505 = vld [vmem:[%s503 + $0x8] sm:$0xff]
      %v506 = vmul.f32 %v504, %v501
      %v507 = vmul.f32 %v505, %v502
      %v508 = vadd.f32 %v495, %v506
      %v509 = vadd.f32 %v496, %v507
      %510 = vrot.lane.b32.xlu0 %v68, 111
      %v511 = vpop.permute.xlu0 %510
      %512 = vrot.lane.b32.xlu0 %v69, 111
      %v513 = vpop.permute.xlu0 %512
      %v514 = vsel %vm474, %v511, %v513
      %v515 = vsel %vm474, %v513, %v511
      %s516 = scalar_lea.vmem [#allocation5], 560
      %v517 = vld [vmem:[%s516] sm:$0xff]
      %v518 = vld [vmem:[%s516 + $0x8] sm:$0xff]
      %v519 = vmul.f32 %v517, %v514
      %v520 = vmul.f32 %v518, %v515
      %v521 = vadd.f32 %v508, %v519
      %v522 = vadd.f32 %v509, %v520
      %v523 = vmax.f32 %v521, 0.0
      %v524 = vmax.f32 %v522, 0.0
      %v525 = vmul.f32 %v523, 0.125
      %v526 = vmul.f32 %v524, 0.125
      %v527 = vadd.f32 %v62, %v525
      %v528 = vadd.f32 %v63, %v526
      %v529 = vrot.slane %v527, 6
      %v530 = vrot.slane %v528, 6
      %v531 = vrot.slane %v527, 4
      %v532 = vrot.slane %v528, 4
      %v533 = vrot.slane %v527, 2
      %v534 = vrot.slane %v528, 2
      %535 = vrot.lane.b32.xlu0 %v527, 17
      %v536 = vpop.permute.xlu0 %535
      %537 = vrot.lane.b32.xlu0 %v528, 17
      %v538 = vpop.permute.xlu0 %537
      %v539 = vsel %vm76, %v536, %v538
      %v540 = vsel %vm76, %v538, %v536
      %v541 = vmul.f32 %v79, %v540
      %v542 = vmul.f32 %v80, %v539
      %v543 = vadd.f32 %v52, %v541
      %v544 = vadd.f32 %v53, %v542
      %545 = vrot.lane.b32.xlu0 %v529, 17
      %v546 = vpop.permute.xlu0 %545
      %547 = vrot.lane.b32.xlu0 %v530, 17
      %v548 = vpop.permute.xlu0 %547
      %v549 = vsel %vm76, %v546, %v548
      %v550 = vsel %vm76, %v548, %v546
      %v551 = vmul.f32 %v92, %v550
      %v552 = vmul.f32 %v93, %v549
      %v553 = vadd.f32 %v543, %v551
      %v554 = vadd.f32 %v544, %v552
      %555 = vrot.lane.b32.xlu0 %v531, 17
      %v556 = vpop.permute.xlu0 %555
      %557 = vrot.lane.b32.xlu0 %v532, 17
      %v558 = vpop.permute.xlu0 %557
      %v559 = vsel %vm76, %v556, %v558
      %v560 = vsel %vm76, %v558, %v556
      %v561 = vmul.f32 %v105, %v560
      %v562 = vmul.f32 %v106, %v559
      %v563 = vadd.f32 %v553, %v561
      %v564 = vadd.f32 %v554, %v562
      %565 = vrot.lane.b32.xlu0 %v533, 17
      %v566 = vpop.permute.xlu0 %565
      %567 = vrot.lane.b32.xlu0 %v534, 17
      %v568 = vpop.permute.xlu0 %567
      %v569 = vsel %vm76, %v566, %v568
      %v570 = vsel %vm76, %v568, %v566
      %v571 = vmul.f32 %v118, %v570
      %v572 = vmul.f32 %v119, %v569
      %v573 = vadd.f32 %v563, %v571
      %v574 = vadd.f32 %v564, %v572
      %575 = vrot.lane.b32.xlu0 %v527, 16
      %v576 = vpop.permute.xlu0 %575
      %577 = vrot.lane.b32.xlu0 %v528, 16
      %v578 = vpop.permute.xlu0 %577
      %v579 = vsel %vm128, %v576, %v578
      %v580 = vsel %vm128, %v578, %v576
      %v581 = vmul.f32 %v132, %v580
      %v582 = vmul.f32 %v133, %v579
      %v583 = vadd.f32 %v573, %v581
      %v584 = vadd.f32 %v574, %v582
      %585 = vrot.lane.b32.xlu0 %v529, 16
      %v586 = vpop.permute.xlu0 %585
      %587 = vrot.lane.b32.xlu0 %v530, 16
      %v588 = vpop.permute.xlu0 %587
      %v589 = vsel %vm128, %v586, %v588
      %v590 = vsel %vm128, %v588, %v586
      %v591 = vmul.f32 %v145, %v590
      %v592 = vmul.f32 %v146, %v589
      %v593 = vadd.f32 %v583, %v591
      %v594 = vadd.f32 %v584, %v592
      %595 = vrot.lane.b32.xlu0 %v531, 16
      %v596 = vpop.permute.xlu0 %595
      %597 = vrot.lane.b32.xlu0 %v532, 16
      %v598 = vpop.permute.xlu0 %597
      %v599 = vsel %vm128, %v596, %v598
      %v600 = vsel %vm128, %v598, %v596
      %v601 = vmul.f32 %v158, %v600
      %v602 = vmul.f32 %v159, %v599
      %v603 = vadd.f32 %v593, %v601
      %v604 = vadd.f32 %v594, %v602
      %605 = vrot.lane.b32.xlu0 %v533, 16
      %v606 = vpop.permute.xlu0 %605
      %607 = vrot.lane.b32.xlu0 %v534, 16
      %v608 = vpop.permute.xlu0 %607
      %v609 = vsel %vm128, %v606, %v608
      %v610 = vsel %vm128, %v608, %v606
      %v611 = vmul.f32 %v171, %v610
      %v612 = vmul.f32 %v172, %v609
      %v613 = vadd.f32 %v603, %v611
      %v614 = vadd.f32 %v604, %v612
      %615 = vrot.lane.b32.xlu0 %v527, 15
      %v616 = vpop.permute.xlu0 %615
      %617 = vrot.lane.b32.xlu0 %v528, 15
      %v618 = vpop.permute.xlu0 %617
      %v619 = vsel %vm181, %v616, %v618
      %v620 = vsel %vm181, %v618, %v616
      %v621 = vmul.f32 %v185, %v620
      %v622 = vmul.f32 %v186, %v619
      %v623 = vadd.f32 %v613, %v621
      %v624 = vadd.f32 %v614, %v622
      %625 = vrot.lane.b32.xlu0 %v529, 15
      %v626 = vpop.permute.xlu0 %625
      %627 = vrot.lane.b32.xlu0 %v530, 15
      %v628 = vpop.permute.xlu0 %627
      %v629 = vsel %vm181, %v626, %v628
      %v630 = vsel %vm181, %v628, %v626
      %v631 = vmul.f32 %v198, %v630
      %v632 = vmul.f32 %v199, %v629
      %v633 = vadd.f32 %v623, %v631
      %v634 = vadd.f32 %v624, %v632
      %635 = vrot.lane.b32.xlu0 %v531, 15
      %v636 = vpop.permute.xlu0 %635
      %637 = vrot.lane.b32.xlu0 %v532, 15
      %v638 = vpop.permute.xlu0 %637
      %v639 = vsel %vm181, %v636, %v638
      %v640 = vsel %vm181, %v638, %v636
      %v641 = vmul.f32 %v211, %v640
      %v642 = vmul.f32 %v212, %v639
      %v643 = vadd.f32 %v633, %v641
      %v644 = vadd.f32 %v634, %v642
      %645 = vrot.lane.b32.xlu0 %v533, 15
      %v646 = vpop.permute.xlu0 %645
      %647 = vrot.lane.b32.xlu0 %v534, 15
      %v648 = vpop.permute.xlu0 %647
      %v649 = vsel %vm181, %v646, %v648
      %v650 = vsel %vm181, %v648, %v646
      %v651 = vmul.f32 %v224, %v650
      %v652 = vmul.f32 %v225, %v649
      %v653 = vadd.f32 %v643, %v651
      %v654 = vadd.f32 %v644, %v652
      %655 = vrot.lane.b32.xlu0 %v527, 1
      %v656 = vpop.permute.xlu0 %655
      %657 = vrot.lane.b32.xlu0 %v528, 1
      %v658 = vpop.permute.xlu0 %657
      %v659 = vsel %vm234, %v656, %v658
      %v660 = vsel %vm234, %v658, %v656
      %v661 = vmul.f32 %v238, %v660
      %v662 = vmul.f32 %v239, %v659
      %v663 = vadd.f32 %v653, %v661
      %v664 = vadd.f32 %v654, %v662
      %665 = vrot.lane.b32.xlu0 %v529, 1
      %v666 = vpop.permute.xlu0 %665
      %667 = vrot.lane.b32.xlu0 %v530, 1
      %v668 = vpop.permute.xlu0 %667
      %v669 = vsel %vm234, %v666, %v668
      %v670 = vsel %vm234, %v668, %v666
      %v671 = vmul.f32 %v251, %v670
      %v672 = vmul.f32 %v252, %v669
      %v673 = vadd.f32 %v663, %v671
      %v674 = vadd.f32 %v664, %v672
      %675 = vrot.lane.b32.xlu0 %v531, 1
      %v676 = vpop.permute.xlu0 %675
      %677 = vrot.lane.b32.xlu0 %v532, 1
      %v678 = vpop.permute.xlu0 %677
      %v679 = vsel %vm234, %v676, %v678
      %v680 = vsel %vm234, %v678, %v676
      %v681 = vmul.f32 %v264, %v680
      %v682 = vmul.f32 %v265, %v679
      %v683 = vadd.f32 %v673, %v681
      %v684 = vadd.f32 %v674, %v682
      %685 = vrot.lane.b32.xlu0 %v533, 1
      %v686 = vpop.permute.xlu0 %685
      %687 = vrot.lane.b32.xlu0 %v534, 1
      %v688 = vpop.permute.xlu0 %687
      %v689 = vsel %vm234, %v686, %v688
      %v690 = vsel %vm234, %v688, %v686
      %v691 = vmul.f32 %v277, %v690
      %v692 = vmul.f32 %v278, %v689
      %v693 = vadd.f32 %v683, %v691
      %v694 = vadd.f32 %v684, %v692
      %v695 = vmul.f32 %v284, %v527
      %v696 = vmul.f32 %v285, %v528
      %v697 = vadd.f32 %v693, %v695
      %v698 = vadd.f32 %v694, %v696
      %v699 = vmul.f32 %v291, %v529
      %v700 = vmul.f32 %v292, %v530
      %v701 = vadd.f32 %v697, %v699
      %v702 = vadd.f32 %v698, %v700
      %v703 = vmul.f32 %v298, %v531
      %v704 = vmul.f32 %v299, %v532
      %v705 = vadd.f32 %v701, %v703
      %v706 = vadd.f32 %v702, %v704
      %v707 = vmul.f32 %v305, %v533
      %v708 = vmul.f32 %v306, %v534
      %v709 = vadd.f32 %v705, %v707
      %v710 = vadd.f32 %v706, %v708
      %711 = vrot.lane.b32.xlu0 %v527, 127
      %v712 = vpop.permute.xlu0 %711
      %713 = vrot.lane.b32.xlu0 %v528, 127
      %v714 = vpop.permute.xlu0 %713
      %v715 = vsel %vm315, %v712, %v714
      %v716 = vsel %vm315, %v714, %v712
      %v717 = vmul.f32 %v319, %v715
      %v718 = vmul.f32 %v320, %v716
      %v719 = vadd.f32 %v709, %v717
      %v720 = vadd.f32 %v710, %v718
      %721 = vrot.lane.b32.xlu0 %v529, 127
      %v722 = vpop.permute.xlu0 %721
      %723 = vrot.lane.b32.xlu0 %v530, 127
      %v724 = vpop.permute.xlu0 %723
      %v725 = vsel %vm315, %v722, %v724
      %v726 = vsel %vm315, %v724, %v722
      %v727 = vmul.f32 %v332, %v725
      %v728 = vmul.f32 %v333, %v726
      %v729 = vadd.f32 %v719, %v727
      %v730 = vadd.f32 %v720, %v728
      %731 = vrot.lane.b32.xlu0 %v531, 127
      %v732 = vpop.permute.xlu0 %731
      %733 = vrot.lane.b32.xlu0 %v532, 127
      %v734 = vpop.permute.xlu0 %733
      %v735 = vsel %vm315, %v732, %v734
      %v736 = vsel %vm315, %v734, %v732
      %v737 = vmul.f32 %v345, %v735
      %v738 = vmul.f32 %v346, %v736
      %v739 = vadd.f32 %v729, %v737
      %v740 = vadd.f32 %v730, %v738
      %741 = vrot.lane.b32.xlu0 %v533, 127
      %v742 = vpop.permute.xlu0 %741
      %743 = vrot.lane.b32.xlu0 %v534, 127
      %v744 = vpop.permute.xlu0 %743
      %v745 = vsel %vm315, %v742, %v744
      %v746 = vsel %vm315, %v744, %v742
      %v747 = vmul.f32 %v358, %v745
      %v748 = vmul.f32 %v359, %v746
      %v749 = vadd.f32 %v739, %v747
      %v750 = vadd.f32 %v740, %v748
      %751 = vrot.lane.b32.xlu0 %v527, 113
      %v752 = vpop.permute.xlu0 %751
      %753 = vrot.lane.b32.xlu0 %v528, 113
      %v754 = vpop.permute.xlu0 %753
      %v755 = vsel %vm368, %v752, %v754
      %v756 = vsel %vm368, %v754, %v752
      %v757 = vmul.f32 %v372, %v755
      %v758 = vmul.f32 %v373, %v756
      %v759 = vadd.f32 %v749, %v757
      %v760 = vadd.f32 %v750, %v758
      %761 = vrot.lane.b32.xlu0 %v529, 113
      %v762 = vpop.permute.xlu0 %761
      %763 = vrot.lane.b32.xlu0 %v530, 113
      %v764 = vpop.permute.xlu0 %763
      %v765 = vsel %vm368, %v762, %v764
      %v766 = vsel %vm368, %v764, %v762
      %v767 = vmul.f32 %v385, %v765
      %v768 = vmul.f32 %v386, %v766
      %v769 = vadd.f32 %v759, %v767
      %v770 = vadd.f32 %v760, %v768
      %771 = vrot.lane.b32.xlu0 %v531, 113
      %v772 = vpop.permute.xlu0 %771
      %773 = vrot.lane.b32.xlu0 %v532, 113
      %v774 = vpop.permute.xlu0 %773
      %v775 = vsel %vm368, %v772, %v774
      %v776 = vsel %vm368, %v774, %v772
      %v777 = vmul.f32 %v398, %v775
      %v778 = vmul.f32 %v399, %v776
      %v779 = vadd.f32 %v769, %v777
      %v780 = vadd.f32 %v770, %v778
      %781 = vrot.lane.b32.xlu0 %v533, 113
      %v782 = vpop.permute.xlu0 %781
      %783 = vrot.lane.b32.xlu0 %v534, 113
      %v784 = vpop.permute.xlu0 %783
      %v785 = vsel %vm368, %v782, %v784
      %v786 = vsel %vm368, %v784, %v782
      %v787 = vmul.f32 %v411, %v785
      %v788 = vmul.f32 %v412, %v786
      %v789 = vadd.f32 %v779, %v787
      %v790 = vadd.f32 %v780, %v788
      %791 = vrot.lane.b32.xlu0 %v527, 112
      %v792 = vpop.permute.xlu0 %791
      %793 = vrot.lane.b32.xlu0 %v528, 112
      %v794 = vpop.permute.xlu0 %793
      %v795 = vsel %vm421, %v792, %v794
      %v796 = vsel %vm421, %v794, %v792
      %v797 = vmul.f32 %v425, %v795
      %v798 = vmul.f32 %v426, %v796
      %v799 = vadd.f32 %v789, %v797
      %v800 = vadd.f32 %v790, %v798
      %801 = vrot.lane.b32.xlu0 %v529, 112
      %v802 = vpop.permute.xlu0 %801
      %803 = vrot.lane.b32.xlu0 %v530, 112
      %v804 = vpop.permute.xlu0 %803
      %v805 = vsel %vm421, %v802, %v804
      %v806 = vsel %vm421, %v804, %v802
      %v807 = vmul.f32 %v438, %v805
      %v808 = vmul.f32 %v439, %v806
      %v809 = vadd.f32 %v799, %v807
      %v810 = vadd.f32 %v800, %v808
      %811 = vrot.lane.b32.xlu0 %v531, 112
      %v812 = vpop.permute.xlu0 %811
      %813 = vrot.lane.b32.xlu0 %v532, 112
      %v814 = vpop.permute.xlu0 %813
      %v815 = vsel %vm421, %v812, %v814
      %v816 = vsel %vm421, %v814, %v812
      %v817 = vmul.f32 %v451, %v815
      %v818 = vmul.f32 %v452, %v816
      %v819 = vadd.f32 %v809, %v817
      %v820 = vadd.f32 %v810, %v818
      %821 = vrot.lane.b32.xlu0 %v533, 112
      %v822 = vpop.permute.xlu0 %821
      %823 = vrot.lane.b32.xlu0 %v534, 112
      %v824 = vpop.permute.xlu0 %823
      %v825 = vsel %vm421, %v822, %v824
      %v826 = vsel %vm421, %v824, %v822
      %v827 = vmul.f32 %v464, %v825
      %v828 = vmul.f32 %v465, %v826
      %v829 = vadd.f32 %v819, %v827
      %v830 = vadd.f32 %v820, %v828
      %831 = vrot.lane.b32.xlu0 %v527, 111
      %v832 = vpop.permute.xlu0 %831
      %833 = vrot.lane.b32.xlu0 %v528, 111
      %v834 = vpop.permute.xlu0 %833
      %v835 = vsel %vm474, %v832, %v834
      %v836 = vsel %vm474, %v834, %v832
      %v837 = vmul.f32 %v478, %v835
      %v838 = vmul.f32 %v479, %v836
      %v839 = vadd.f32 %v829, %v837
      %v840 = vadd.f32 %v830, %v838
      %841 = vrot.lane.b32.xlu0 %v529, 111
      %v842 = vpop.permute.xlu0 %841
      %843 = vrot.lane.b32.xlu0 %v530, 111
      %v844 = vpop.permute.xlu0 %843
      %v845 = vsel %vm474, %v842, %v844
      %v846 = vsel %vm474, %v844, %v842
      %v847 = vmul.f32 %v491, %v845
      %v848 = vmul.f32 %v492, %v846
      %v849 = vadd.f32 %v839, %v847
      %v850 = vadd.f32 %v840, %v848
      %851 = vrot.lane.b32.xlu0 %v531, 111
      %v852 = vpop.permute.xlu0 %851
      %853 = vrot.lane.b32.xlu0 %v532, 111
      %v854 = vpop.permute.xlu0 %853
      %v855 = vsel %vm474, %v852, %v854
      %v856 = vsel %vm474, %v854, %v852
      %v857 = vmul.f32 %v504, %v855
      %v858 = vmul.f32 %v505, %v856
      %v859 = vadd.f32 %v849, %v857
      %v860 = vadd.f32 %v850, %v858
      %861 = vrot.lane.b32.xlu0 %v533, 111
      %v862 = vpop.permute.xlu0 %861
      %863 = vrot.lane.b32.xlu0 %v534, 111
      %v864 = vpop.permute.xlu0 %863
      %v865 = vsel %vm474, %v862, %v864
      %v866 = vsel %vm474, %v864, %v862
      %v867 = vmul.f32 %v517, %v865
      %v868 = vmul.f32 %v518, %v866
      %v869 = vadd.f32 %v859, %v867
      %v870 = vadd.f32 %v860, %v868
      %v871 = vmax.f32 %v869, 0.0
      %v872 = vmax.f32 %v870, 0.0
      %v873 = vmul.f32 %v871, 2.0
      %v874 = vmul.f32 %v872, 2.0
      %v875 = vadd.f32 %v523, %v873
      %v876 = vadd.f32 %v524, %v874
      %v877 = vmul.f32 %v871, 0.125
      %v878 = vmul.f32 %v872, 0.125
      %v879 = vadd.f32 %v62, %v877
      %v880 = vadd.f32 %v63, %v878
      %v881 = vrot.slane %v879, 6
      %v882 = vrot.slane %v880, 6
      %v883 = vrot.slane %v879, 4
      %v884 = vrot.slane %v880, 4
      %v885 = vrot.slane %v879, 2
      %v886 = vrot.slane %v880, 2
      %887 = vrot.lane.b32.xlu0 %v879, 17
      %v888 = vpop.permute.xlu0 %887
      %889 = vrot.lane.b32.xlu0 %v880, 17
      %v890 = vpop.permute.xlu0 %889
      %v891 = vsel %vm76, %v888, %v890
      %v892 = vsel %vm76, %v890, %v888
      %v893 = vmul.f32 %v79, %v892
      %v894 = vmul.f32 %v80, %v891
      %v895 = vadd.f32 %v52, %v893
      %v896 = vadd.f32 %v53, %v894
      %897 = vrot.lane.b32.xlu0 %v881, 17
      %v898 = vpop.permute.xlu0 %897
      %899 = vrot.lane.b32.xlu0 %v882, 17
      %v900 = vpop.permute.xlu0 %899
      %v901 = vsel %vm76, %v898, %v900
      %v902 = vsel %vm76, %v900, %v898
      %v903 = vmul.f32 %v92, %v902
      %v904 = vmul.f32 %v93, %v901
      %v905 = vadd.f32 %v895, %v903
      %v906 = vadd.f32 %v896, %v904
      %907 = vrot.lane.b32.xlu0 %v883, 17
      %v908 = vpop.permute.xlu0 %907
      %909 = vrot.lane.b32.xlu0 %v884, 17
      %v910 = vpop.permute.xlu0 %909
      %v911 = vsel %vm76, %v908, %v910
      %v912 = vsel %vm76, %v910, %v908
      %v913 = vmul.f32 %v105, %v912
      %v914 = vmul.f32 %v106, %v911
      %v915 = vadd.f32 %v905, %v913
      %v916 = vadd.f32 %v906, %v914
      %917 = vrot.lane.b32.xlu0 %v885, 17
      %v918 = vpop.permute.xlu0 %917
      %919 = vrot.lane.b32.xlu0 %v886, 17
      %v920 = vpop.permute.xlu0 %919
      %v921 = vsel %vm76, %v918, %v920
      %v922 = vsel %vm76, %v920, %v918
      %v923 = vmul.f32 %v118, %v922
      %v924 = vmul.f32 %v119, %v921
      %v925 = vadd.f32 %v915, %v923
      %v926 = vadd.f32 %v916, %v924
      %927 = vrot.lane.b32.xlu0 %v879, 16
      %v928 = vpop.permute.xlu0 %927
      %929 = vrot.lane.b32.xlu0 %v880, 16
      %v930 = vpop.permute.xlu0 %929
      %v931 = vsel %vm128, %v928, %v930
      %v932 = vsel %vm128, %v930, %v928
      %v933 = vmul.f32 %v132, %v932
      %v934 = vmul.f32 %v133, %v931
      %v935 = vadd.f32 %v925, %v933
      %v936 = vadd.f32 %v926, %v934
      %937 = vrot.lane.b32.xlu0 %v881, 16
      %v938 = vpop.permute.xlu0 %937
      %939 = vrot.lane.b32.xlu0 %v882, 16
      %v940 = vpop.permute.xlu0 %939
      %v941 = vsel %vm128, %v938, %v940
      %v942 = vsel %vm128, %v940, %v938
      %v943 = vmul.f32 %v145, %v942
      %v944 = vmul.f32 %v146, %v941
      %v945 = vadd.f32 %v935, %v943
      %v946 = vadd.f32 %v936, %v944
      %947 = vrot.lane.b32.xlu0 %v883, 16
      %v948 = vpop.permute.xlu0 %947
      %949 = vrot.lane.b32.xlu0 %v884, 16
      %v950 = vpop.permute.xlu0 %949
      %v951 = vsel %vm128, %v948, %v950
      %v952 = vsel %vm128, %v950, %v948
      %v953 = vmul.f32 %v158, %v952
      %v954 = vmul.f32 %v159, %v951
      %v955 = vadd.f32 %v945, %v953
      %v956 = vadd.f32 %v946, %v954
      %957 = vrot.lane.b32.xlu0 %v885, 16
      %v958 = vpop.permute.xlu0 %957
      %959 = vrot.lane.b32.xlu0 %v886, 16
      %v960 = vpop.permute.xlu0 %959
      %v961 = vsel %vm128, %v958, %v960
      %v962 = vsel %vm128, %v960, %v958
      %v963 = vmul.f32 %v171, %v962
      %v964 = vmul.f32 %v172, %v961
      %v965 = vadd.f32 %v955, %v963
      %v966 = vadd.f32 %v956, %v964
      %967 = vrot.lane.b32.xlu0 %v879, 15
      %v968 = vpop.permute.xlu0 %967
      %969 = vrot.lane.b32.xlu0 %v880, 15
      %v970 = vpop.permute.xlu0 %969
      %v971 = vsel %vm181, %v968, %v970
      %v972 = vsel %vm181, %v970, %v968
      %v973 = vmul.f32 %v185, %v972
      %v974 = vmul.f32 %v186, %v971
      %v975 = vadd.f32 %v965, %v973
      %v976 = vadd.f32 %v966, %v974
      %977 = vrot.lane.b32.xlu0 %v881, 15
      %v978 = vpop.permute.xlu0 %977
      %979 = vrot.lane.b32.xlu0 %v882, 15
      %v980 = vpop.permute.xlu0 %979
      %v981 = vsel %vm181, %v978, %v980
      %v982 = vsel %vm181, %v980, %v978
      %v983 = vmul.f32 %v198, %v982
      %v984 = vmul.f32 %v199, %v981
      %v985 = vadd.f32 %v975, %v983
      %v986 = vadd.f32 %v976, %v984
      %987 = vrot.lane.b32.xlu0 %v883, 15
      %v988 = vpop.permute.xlu0 %987
      %989 = vrot.lane.b32.xlu0 %v884, 15
      %v990 = vpop.permute.xlu0 %989
      %v991 = vsel %vm181, %v988, %v990
      %v992 = vsel %vm181, %v990, %v988
      %v993 = vmul.f32 %v211, %v992
      %v994 = vmul.f32 %v212, %v991
      %v995 = vadd.f32 %v985, %v993
      %v996 = vadd.f32 %v986, %v994
      %997 = vrot.lane.b32.xlu0 %v885, 15
      %v998 = vpop.permute.xlu0 %997
      %999 = vrot.lane.b32.xlu0 %v886, 15
      %v1000 = vpop.permute.xlu0 %999
      %v1001 = vsel %vm181, %v998, %v1000
      %v1002 = vsel %vm181, %v1000, %v998
      %v1003 = vmul.f32 %v224, %v1002
      %v1004 = vmul.f32 %v225, %v1001
      %v1005 = vadd.f32 %v995, %v1003
      %v1006 = vadd.f32 %v996, %v1004
      %1007 = vrot.lane.b32.xlu0 %v879, 1
      %v1008 = vpop.permute.xlu0 %1007
      %1009 = vrot.lane.b32.xlu0 %v880, 1
      %v1010 = vpop.permute.xlu0 %1009
      %v1011 = vsel %vm234, %v1008, %v1010
      %v1012 = vsel %vm234, %v1010, %v1008
      %v1013 = vmul.f32 %v238, %v1012
      %v1014 = vmul.f32 %v239, %v1011
      %v1015 = vadd.f32 %v1005, %v1013
      %v1016 = vadd.f32 %v1006, %v1014
      %1017 = vrot.lane.b32.xlu0 %v881, 1
      %v1018 = vpop.permute.xlu0 %1017
      %1019 = vrot.lane.b32.xlu0 %v882, 1
      %v1020 = vpop.permute.xlu0 %1019
      %v1021 = vsel %vm234, %v1018, %v1020
      %v1022 = vsel %vm234, %v1020, %v1018
      %v1023 = vmul.f32 %v251, %v1022
      %v1024 = vmul.f32 %v252, %v1021
      %v1025 = vadd.f32 %v1015, %v1023
      %v1026 = vadd.f32 %v1016, %v1024
      %1027 = vrot.lane.b32.xlu0 %v883, 1
      %v1028 = vpop.permute.xlu0 %1027
      %1029 = vrot.lane.b32.xlu0 %v884, 1
      %v1030 = vpop.permute.xlu0 %1029
      %v1031 = vsel %vm234, %v1028, %v1030
      %v1032 = vsel %vm234, %v1030, %v1028
      %v1033 = vmul.f32 %v264, %v1032
      %v1034 = vmul.f32 %v265, %v1031
      %v1035 = vadd.f32 %v1025, %v1033
      %v1036 = vadd.f32 %v1026, %v1034
      %1037 = vrot.lane.b32.xlu0 %v885, 1
      %v1038 = vpop.permute.xlu0 %1037
      %1039 = vrot.lane.b32.xlu0 %v886, 1
      %v1040 = vpop.permute.xlu0 %1039
      %v1041 = vsel %vm234, %v1038, %v1040
      %v1042 = vsel %vm234, %v1040, %v1038
      %v1043 = vmul.f32 %v277, %v1042
      %v1044 = vmul.f32 %v278, %v1041
      %v1045 = vadd.f32 %v1035, %v1043
      %v1046 = vadd.f32 %v1036, %v1044
      %v1047 = vmul.f32 %v284, %v879
      %v1048 = vmul.f32 %v285, %v880
      %v1049 = vadd.f32 %v1045, %v1047
      %v1050 = vadd.f32 %v1046, %v1048
      %v1051 = vmul.f32 %v291, %v881
      %v1052 = vmul.f32 %v292, %v882
      %v1053 = vadd.f32 %v1049, %v1051
      %v1054 = vadd.f32 %v1050, %v1052
      %v1055 = vmul.f32 %v298, %v883
      %v1056 = vmul.f32 %v299, %v884
      %v1057 = vadd.f32 %v1053, %v1055
      %v1058 = vadd.f32 %v1054, %v1056
      %v1059 = vmul.f32 %v305, %v885
      %v1060 = vmul.f32 %v306, %v886
      %v1061 = vadd.f32 %v1057, %v1059
      %v1062 = vadd.f32 %v1058, %v1060
      %1063 = vrot.lane.b32.xlu0 %v879, 127
      %v1064 = vpop.permute.xlu0 %1063
      %1065 = vrot.lane.b32.xlu0 %v880, 127
      %v1066 = vpop.permute.xlu0 %1065
      %v1067 = vsel %vm315, %v1064, %v1066
      %v1068 = vsel %vm315, %v1066, %v1064
      %v1069 = vmul.f32 %v319, %v1067
      %v1070 = vmul.f32 %v320, %v1068
      %v1071 = vadd.f32 %v1061, %v1069
      %v1072 = vadd.f32 %v1062, %v1070
      %1073 = vrot.lane.b32.xlu0 %v881, 127
      %v1074 = vpop.permute.xlu0 %1073
      %1075 = vrot.lane.b32.xlu0 %v882, 127
      %v1076 = vpop.permute.xlu0 %1075
      %v1077 = vsel %vm315, %v1074, %v1076
      %v1078 = vsel %vm315, %v1076, %v1074
      %v1079 = vmul.f32 %v332, %v1077
      %v1080 = vmul.f32 %v333, %v1078
      %v1081 = vadd.f32 %v1071, %v1079
      %v1082 = vadd.f32 %v1072, %v1080
      %1083 = vrot.lane.b32.xlu0 %v883, 127
      %v1084 = vpop.permute.xlu0 %1083
      %1085 = vrot.lane.b32.xlu0 %v884, 127
      %v1086 = vpop.permute.xlu0 %1085
      %v1087 = vsel %vm315, %v1084, %v1086
      %v1088 = vsel %vm315, %v1086, %v1084
      %v1089 = vmul.f32 %v345, %v1087
      %v1090 = vmul.f32 %v346, %v1088
      %v1091 = vadd.f32 %v1081, %v1089
      %v1092 = vadd.f32 %v1082, %v1090
      %1093 = vrot.lane.b32.xlu0 %v885, 127
      %v1094 = vpop.permute.xlu0 %1093
      %1095 = vrot.lane.b32.xlu0 %v886, 127
      %v1096 = vpop.permute.xlu0 %1095
      %v1097 = vsel %vm315, %v1094, %v1096
      %v1098 = vsel %vm315, %v1096, %v1094
      %v1099 = vmul.f32 %v358, %v1097
      %v1100 = vmul.f32 %v359, %v1098
      %v1101 = vadd.f32 %v1091, %v1099
      %v1102 = vadd.f32 %v1092, %v1100
      %1103 = vrot.lane.b32.xlu0 %v879, 113
      %v1104 = vpop.permute.xlu0 %1103
      %1105 = vrot.lane.b32.xlu0 %v880, 113
      %v1106 = vpop.permute.xlu0 %1105
      %v1107 = vsel %vm368, %v1104, %v1106
      %v1108 = vsel %vm368, %v1106, %v1104
      %v1109 = vmul.f32 %v372, %v1107
      %v1110 = vmul.f32 %v373, %v1108
      %v1111 = vadd.f32 %v1101, %v1109
      %v1112 = vadd.f32 %v1102, %v1110
      %1113 = vrot.lane.b32.xlu0 %v881, 113
      %v1114 = vpop.permute.xlu0 %1113
      %1115 = vrot.lane.b32.xlu0 %v882, 113
      %v1116 = vpop.permute.xlu0 %1115
      %v1117 = vsel %vm368, %v1114, %v1116
      %v1118 = vsel %vm368, %v1116, %v1114
      %v1119 = vmul.f32 %v385, %v1117
      %v1120 = vmul.f32 %v386, %v1118
      %v1121 = vadd.f32 %v1111, %v1119
      %v1122 = vadd.f32 %v1112, %v1120
      %1123 = vrot.lane.b32.xlu0 %v883, 113
      %v1124 = vpop.permute.xlu0 %1123
      %1125 = vrot.lane.b32.xlu0 %v884, 113
      %v1126 = vpop.permute.xlu0 %1125
      %v1127 = vsel %vm368, %v1124, %v1126
      %v1128 = vsel %vm368, %v1126, %v1124
      %v1129 = vmul.f32 %v398, %v1127
      %v1130 = vmul.f32 %v399, %v1128
      %v1131 = vadd.f32 %v1121, %v1129
      %v1132 = vadd.f32 %v1122, %v1130
      %1133 = vrot.lane.b32.xlu0 %v885, 113
      %v1134 = vpop.permute.xlu0 %1133
      %1135 = vrot.lane.b32.xlu0 %v886, 113
      %v1136 = vpop.permute.xlu0 %1135
      %v1137 = vsel %vm368, %v1134, %v1136
      %v1138 = vsel %vm368, %v1136, %v1134
      %v1139 = vmul.f32 %v411, %v1137
      %v1140 = vmul.f32 %v412, %v1138
      %v1141 = vadd.f32 %v1131, %v1139
      %v1142 = vadd.f32 %v1132, %v1140
      %1143 = vrot.lane.b32.xlu0 %v879, 112
      %v1144 = vpop.permute.xlu0 %1143
      %1145 = vrot.lane.b32.xlu0 %v880, 112
      %v1146 = vpop.permute.xlu0 %1145
      %v1147 = vsel %vm421, %v1144, %v1146
      %v1148 = vsel %vm421, %v1146, %v1144
      %v1149 = vmul.f32 %v425, %v1147
      %v1150 = vmul.f32 %v426, %v1148
      %v1151 = vadd.f32 %v1141, %v1149
      %v1152 = vadd.f32 %v1142, %v1150
      %1153 = vrot.lane.b32.xlu0 %v881, 112
      %v1154 = vpop.permute.xlu0 %1153
      %1155 = vrot.lane.b32.xlu0 %v882, 112
      %v1156 = vpop.permute.xlu0 %1155
      %v1157 = vsel %vm421, %v1154, %v1156
      %v1158 = vsel %vm421, %v1156, %v1154
      %v1159 = vmul.f32 %v438, %v1157
      %v1160 = vmul.f32 %v439, %v1158
      %v1161 = vadd.f32 %v1151, %v1159
      %v1162 = vadd.f32 %v1152, %v1160
      %1163 = vrot.lane.b32.xlu0 %v883, 112
      %v1164 = vpop.permute.xlu0 %1163
      %1165 = vrot.lane.b32.xlu0 %v884, 112
      %v1166 = vpop.permute.xlu0 %1165
      %v1167 = vsel %vm421, %v1164, %v1166
      %v1168 = vsel %vm421, %v1166, %v1164
      %v1169 = vmul.f32 %v451, %v1167
      %v1170 = vmul.f32 %v452, %v1168
      %v1171 = vadd.f32 %v1161, %v1169
      %v1172 = vadd.f32 %v1162, %v1170
      %1173 = vrot.lane.b32.xlu0 %v885, 112
      %v1174 = vpop.permute.xlu0 %1173
      %1175 = vrot.lane.b32.xlu0 %v886, 112
      %v1176 = vpop.permute.xlu0 %1175
      %v1177 = vsel %vm421, %v1174, %v1176
      %v1178 = vsel %vm421, %v1176, %v1174
      %v1179 = vmul.f32 %v464, %v1177
      %v1180 = vmul.f32 %v465, %v1178
      %v1181 = vadd.f32 %v1171, %v1179
      %v1182 = vadd.f32 %v1172, %v1180
      %1183 = vrot.lane.b32.xlu0 %v879, 111
      %v1184 = vpop.permute.xlu0 %1183
      %1185 = vrot.lane.b32.xlu0 %v880, 111
      %v1186 = vpop.permute.xlu0 %1185
      %v1187 = vsel %vm474, %v1184, %v1186
      %v1188 = vsel %vm474, %v1186, %v1184
      %v1189 = vmul.f32 %v478, %v1187
      %v1190 = vmul.f32 %v479, %v1188
      %v1191 = vadd.f32 %v1181, %v1189
      %v1192 = vadd.f32 %v1182, %v1190
      %1193 = vrot.lane.b32.xlu0 %v881, 111
      %v1194 = vpop.permute.xlu0 %1193
      %1195 = vrot.lane.b32.xlu0 %v882, 111
      %v1196 = vpop.permute.xlu0 %1195
      %v1197 = vsel %vm474, %v1194, %v1196
      %v1198 = vsel %vm474, %v1196, %v1194
      %v1199 = vmul.f32 %v491, %v1197
      %v1200 = vmul.f32 %v492, %v1198
      %v1201 = vadd.f32 %v1191, %v1199
      %v1202 = vadd.f32 %v1192, %v1200
      %1203 = vrot.lane.b32.xlu0 %v883, 111
      %v1204 = vpop.permute.xlu0 %1203
      %1205 = vrot.lane.b32.xlu0 %v884, 111
      %v1206 = vpop.permute.xlu0 %1205
      %v1207 = vsel %vm474, %v1204, %v1206
      %v1208 = vsel %vm474, %v1206, %v1204
      %v1209 = vmul.f32 %v504, %v1207
      %v1210 = vmul.f32 %v505, %v1208
      %v1211 = vadd.f32 %v1201, %v1209
      %v1212 = vadd.f32 %v1202, %v1210
      %1213 = vrot.lane.b32.xlu0 %v885, 111
      %v1214 = vpop.permute.xlu0 %1213
      %1215 = vrot.lane.b32.xlu0 %v886, 111
      %v1216 = vpop.permute.xlu0 %1215
      %v1217 = vsel %vm474, %v1214, %v1216
      %v1218 = vsel %vm474, %v1216, %v1214
      %v1219 = vmul.f32 %v517, %v1217
      %v1220 = vmul.f32 %v518, %v1218
      %v1221 = vadd.f32 %v1211, %v1219
      %v1222 = vadd.f32 %v1212, %v1220
      %v1223 = vmax.f32 %v1221, 0.0
      %v1224 = vmax.f32 %v1222, 0.0
      %v1225 = vmul.f32 %v1223, 2.0
      %v1226 = vmul.f32 %v1224, 2.0
      %v1227 = vadd.f32 %v875, %v1225
      %v1228 = vadd.f32 %v876, %v1226
      %v1229 = vmul.f32 %v1223, 0.25
      %v1230 = vmul.f32 %v1224, 0.25
      %v1231 = vadd.f32 %v62, %v1229
      %v1232 = vadd.f32 %v63, %v1230
      %v1233 = vrot.slane %v1231, 6
      %v1234 = vrot.slane %v1232, 6
      %v1235 = vrot.slane %v1231, 4
      %v1236 = vrot.slane %v1232, 4
      %v1237 = vrot.slane %v1231, 2
      %v1238 = vrot.slane %v1232, 2
      %1239 = vrot.lane.b32.xlu0 %v1231, 17
      %v1240 = vpop.permute.xlu0 %1239
      %1241 = vrot.lane.b32.xlu0 %v1232, 17
      %v1242 = vpop.permute.xlu0 %1241
      %v1243 = vsel %vm76, %v1240, %v1242
      %v1244 = vsel %vm76, %v1242, %v1240
      %v1245 = vmul.f32 %v79, %v1244
      %v1246 = vmul.f32 %v80, %v1243
      %v1247 = vadd.f32 %v52, %v1245
      %v1248 = vadd.f32 %v53, %v1246
      %1249 = vrot.lane.b32.xlu0 %v1233, 17
      %v1250 = vpop.permute.xlu0 %1249
      %1251 = vrot.lane.b32.xlu0 %v1234, 17
      %v1252 = vpop.permute.xlu0 %1251
      %v1253 = vsel %vm76, %v1250, %v1252
      %v1254 = vsel %vm76, %v1252, %v1250
      %v1255 = vmul.f32 %v92, %v1254
      %v1256 = vmul.f32 %v93, %v1253
      %v1257 = vadd.f32 %v1247, %v1255
      %v1258 = vadd.f32 %v1248, %v1256
      %1259 = vrot.lane.b32.xlu0 %v1235, 17
      %v1260 = vpop.permute.xlu0 %1259
      %1261 = vrot.lane.b32.xlu0 %v1236, 17
      %v1262 = vpop.permute.xlu0 %1261
      %v1263 = vsel %vm76, %v1260, %v1262
      %v1264 = vsel %vm76, %v1262, %v1260
      %v1265 = vmul.f32 %v105, %v1264
      %v1266 = vmul.f32 %v106, %v1263
      %v1267 = vadd.f32 %v1257, %v1265
      %v1268 = vadd.f32 %v1258, %v1266
      %1269 = vrot.lane.b32.xlu0 %v1237, 17
      %v1270 = vpop.permute.xlu0 %1269
      %1271 = vrot.lane.b32.xlu0 %v1238, 17
      %v1272 = vpop.permute.xlu0 %1271
      %v1273 = vsel %vm76, %v1270, %v1272
      %v1274 = vsel %vm76, %v1272, %v1270
      %v1275 = vmul.f32 %v118, %v1274
      %v1276 = vmul.f32 %v119, %v1273
      %v1277 = vadd.f32 %v1267, %v1275
      %v1278 = vadd.f32 %v1268, %v1276
      %1279 = vrot.lane.b32.xlu0 %v1231, 16
      %v1280 = vpop.permute.xlu0 %1279
      %1281 = vrot.lane.b32.xlu0 %v1232, 16
      %v1282 = vpop.permute.xlu0 %1281
      %v1283 = vsel %vm128, %v1280, %v1282
      %v1284 = vsel %vm128, %v1282, %v1280
      %v1285 = vmul.f32 %v132, %v1284
      %v1286 = vmul.f32 %v133, %v1283
      %v1287 = vadd.f32 %v1277, %v1285
      %v1288 = vadd.f32 %v1278, %v1286
      %1289 = vrot.lane.b32.xlu0 %v1233, 16
      %v1290 = vpop.permute.xlu0 %1289
      %1291 = vrot.lane.b32.xlu0 %v1234, 16
      %v1292 = vpop.permute.xlu0 %1291
      %v1293 = vsel %vm128, %v1290, %v1292
      %v1294 = vsel %vm128, %v1292, %v1290
      %v1295 = vmul.f32 %v145, %v1294
      %v1296 = vmul.f32 %v146, %v1293
      %v1297 = vadd.f32 %v1287, %v1295
      %v1298 = vadd.f32 %v1288, %v1296
      %1299 = vrot.lane.b32.xlu0 %v1235, 16
      %v1300 = vpop.permute.xlu0 %1299
      %1301 = vrot.lane.b32.xlu0 %v1236, 16
      %v1302 = vpop.permute.xlu0 %1301
      %v1303 = vsel %vm128, %v1300, %v1302
      %v1304 = vsel %vm128, %v1302, %v1300
      %v1305 = vmul.f32 %v158, %v1304
      %v1306 = vmul.f32 %v159, %v1303
      %v1307 = vadd.f32 %v1297, %v1305
      %v1308 = vadd.f32 %v1298, %v1306
      %1309 = vrot.lane.b32.xlu0 %v1237, 16
      %v1310 = vpop.permute.xlu0 %1309
      %1311 = vrot.lane.b32.xlu0 %v1238, 16
      %v1312 = vpop.permute.xlu0 %1311
      %v1313 = vsel %vm128, %v1310, %v1312
      %v1314 = vsel %vm128, %v1312, %v1310
      %v1315 = vmul.f32 %v171, %v1314
      %v1316 = vmul.f32 %v172, %v1313
      %v1317 = vadd.f32 %v1307, %v1315
      %v1318 = vadd.f32 %v1308, %v1316
      %1319 = vrot.lane.b32.xlu0 %v1231, 15
      %v1320 = vpop.permute.xlu0 %1319
      %1321 = vrot.lane.b32.xlu0 %v1232, 15
      %v1322 = vpop.permute.xlu0 %1321
      %v1323 = vsel %vm181, %v1320, %v1322
      %v1324 = vsel %vm181, %v1322, %v1320
      %v1325 = vmul.f32 %v185, %v1324
      %v1326 = vmul.f32 %v186, %v1323
      %v1327 = vadd.f32 %v1317, %v1325
      %v1328 = vadd.f32 %v1318, %v1326
      %1329 = vrot.lane.b32.xlu0 %v1233, 15
      %v1330 = vpop.permute.xlu0 %1329
      %1331 = vrot.lane.b32.xlu0 %v1234, 15
      %v1332 = vpop.permute.xlu0 %1331
      %v1333 = vsel %vm181, %v1330, %v1332
      %v1334 = vsel %vm181, %v1332, %v1330
      %v1335 = vmul.f32 %v198, %v1334
      %v1336 = vmul.f32 %v199, %v1333
      %v1337 = vadd.f32 %v1327, %v1335
      %v1338 = vadd.f32 %v1328, %v1336
      %1339 = vrot.lane.b32.xlu0 %v1235, 15
      %v1340 = vpop.permute.xlu0 %1339
      %1341 = vrot.lane.b32.xlu0 %v1236, 15
      %v1342 = vpop.permute.xlu0 %1341
      %v1343 = vsel %vm181, %v1340, %v1342
      %v1344 = vsel %vm181, %v1342, %v1340
      %v1345 = vmul.f32 %v211, %v1344
      %v1346 = vmul.f32 %v212, %v1343
      %v1347 = vadd.f32 %v1337, %v1345
      %v1348 = vadd.f32 %v1338, %v1346
      %1349 = vrot.lane.b32.xlu0 %v1237, 15
      %v1350 = vpop.permute.xlu0 %1349
      %1351 = vrot.lane.b32.xlu0 %v1238, 15
      %v1352 = vpop.permute.xlu0 %1351
      %v1353 = vsel %vm181, %v1350, %v1352
      %v1354 = vsel %vm181, %v1352, %v1350
      %v1355 = vmul.f32 %v224, %v1354
      %v1356 = vmul.f32 %v225, %v1353
      %v1357 = vadd.f32 %v1347, %v1355
      %v1358 = vadd.f32 %v1348, %v1356
      %1359 = vrot.lane.b32.xlu0 %v1231, 1
      %v1360 = vpop.permute.xlu0 %1359
      %1361 = vrot.lane.b32.xlu0 %v1232, 1
      %v1362 = vpop.permute.xlu0 %1361
      %v1363 = vsel %vm234, %v1360, %v1362
      %v1364 = vsel %vm234, %v1362, %v1360
      %v1365 = vmul.f32 %v238, %v1364
      %v1366 = vmul.f32 %v239, %v1363
      %v1367 = vadd.f32 %v1357, %v1365
      %v1368 = vadd.f32 %v1358, %v1366
      %1369 = vrot.lane.b32.xlu0 %v1233, 1
      %v1370 = vpop.permute.xlu0 %1369
      %1371 = vrot.lane.b32.xlu0 %v1234, 1
      %v1372 = vpop.permute.xlu0 %1371
      %v1373 = vsel %vm234, %v1370, %v1372
      %v1374 = vsel %vm234, %v1372, %v1370
      %v1375 = vmul.f32 %v251, %v1374
      %v1376 = vmul.f32 %v252, %v1373
      %v1377 = vadd.f32 %v1367, %v1375
      %v1378 = vadd.f32 %v1368, %v1376
      %1379 = vrot.lane.b32.xlu0 %v1235, 1
      %v1380 = vpop.permute.xlu0 %1379
      %1381 = vrot.lane.b32.xlu0 %v1236, 1
      %v1382 = vpop.permute.xlu0 %1381
      %v1383 = vsel %vm234, %v1380, %v1382
      %v1384 = vsel %vm234, %v1382, %v1380
      %v1385 = vmul.f32 %v264, %v1384
      %v1386 = vmul.f32 %v265, %v1383
      %v1387 = vadd.f32 %v1377, %v1385
      %v1388 = vadd.f32 %v1378, %v1386
      %1389 = vrot.lane.b32.xlu0 %v1237, 1
      %v1390 = vpop.permute.xlu0 %1389
      %1391 = vrot.lane.b32.xlu0 %v1238, 1
      %v1392 = vpop.permute.xlu0 %1391
      %v1393 = vsel %vm234, %v1390, %v1392
      %v1394 = vsel %vm234, %v1392, %v1390
      %v1395 = vmul.f32 %v277, %v1394
      %v1396 = vmul.f32 %v278, %v1393
      %v1397 = vadd.f32 %v1387, %v1395
      %v1398 = vadd.f32 %v1388, %v1396
      %v1399 = vmul.f32 %v284, %v1231
      %v1400 = vmul.f32 %v285, %v1232
      %v1401 = vadd.f32 %v1397, %v1399
      %v1402 = vadd.f32 %v1398, %v1400
      %v1403 = vmul.f32 %v291, %v1233
      %v1404 = vmul.f32 %v292, %v1234
      %v1405 = vadd.f32 %v1401, %v1403
      %v1406 = vadd.f32 %v1402, %v1404
      %v1407 = vmul.f32 %v298, %v1235
      %v1408 = vmul.f32 %v299, %v1236
      %v1409 = vadd.f32 %v1405, %v1407
      %v1410 = vadd.f32 %v1406, %v1408
      %v1411 = vmul.f32 %v305, %v1237
      %v1412 = vmul.f32 %v306, %v1238
      %v1413 = vadd.f32 %v1409, %v1411
      %v1414 = vadd.f32 %v1410, %v1412
      %1415 = vrot.lane.b32.xlu0 %v1231, 127
      %v1416 = vpop.permute.xlu0 %1415
      %1417 = vrot.lane.b32.xlu0 %v1232, 127
      %v1418 = vpop.permute.xlu0 %1417
      %v1419 = vsel %vm315, %v1416, %v1418
      %v1420 = vsel %vm315, %v1418, %v1416
      %v1421 = vmul.f32 %v319, %v1419
      %v1422 = vmul.f32 %v320, %v1420
      %v1423 = vadd.f32 %v1413, %v1421
      %v1424 = vadd.f32 %v1414, %v1422
      %1425 = vrot.lane.b32.xlu0 %v1233, 127
      %v1426 = vpop.permute.xlu0 %1425
      %1427 = vrot.lane.b32.xlu0 %v1234, 127
      %v1428 = vpop.permute.xlu0 %1427
      %v1429 = vsel %vm315, %v1426, %v1428
      %v1430 = vsel %vm315, %v1428, %v1426
      %v1431 = vmul.f32 %v332, %v1429
      %v1432 = vmul.f32 %v333, %v1430
      %v1433 = vadd.f32 %v1423, %v1431
      %v1434 = vadd.f32 %v1424, %v1432
      %1435 = vrot.lane.b32.xlu0 %v1235, 127
      %v1436 = vpop.permute.xlu0 %1435
      %1437 = vrot.lane.b32.xlu0 %v1236, 127
      %v1438 = vpop.permute.xlu0 %1437
      %v1439 = vsel %vm315, %v1436, %v1438
      %v1440 = vsel %vm315, %v1438, %v1436
      %v1441 = vmul.f32 %v345, %v1439
      %v1442 = vmul.f32 %v346, %v1440
      %v1443 = vadd.f32 %v1433, %v1441
      %v1444 = vadd.f32 %v1434, %v1442
      %1445 = vrot.lane.b32.xlu0 %v1237, 127
      %v1446 = vpop.permute.xlu0 %1445
      %1447 = vrot.lane.b32.xlu0 %v1238, 127
      %v1448 = vpop.permute.xlu0 %1447
      %v1449 = vsel %vm315, %v1446, %v1448
      %v1450 = vsel %vm315, %v1448, %v1446
      %v1451 = vmul.f32 %v358, %v1449
      %v1452 = vmul.f32 %v359, %v1450
      %v1453 = vadd.f32 %v1443, %v1451
      %v1454 = vadd.f32 %v1444, %v1452
      %1455 = vrot.lane.b32.xlu0 %v1231, 113
      %v1456 = vpop.permute.xlu0 %1455
      %1457 = vrot.lane.b32.xlu0 %v1232, 113
      %v1458 = vpop.permute.xlu0 %1457
      %v1459 = vsel %vm368, %v1456, %v1458
      %v1460 = vsel %vm368, %v1458, %v1456
      %v1461 = vmul.f32 %v372, %v1459
      %v1462 = vmul.f32 %v373, %v1460
      %v1463 = vadd.f32 %v1453, %v1461
      %v1464 = vadd.f32 %v1454, %v1462
      %1465 = vrot.lane.b32.xlu0 %v1233, 113
      %v1466 = vpop.permute.xlu0 %1465
      %1467 = vrot.lane.b32.xlu0 %v1234, 113
      %v1468 = vpop.permute.xlu0 %1467
      %v1469 = vsel %vm368, %v1466, %v1468
      %v1470 = vsel %vm368, %v1468, %v1466
      %v1471 = vmul.f32 %v385, %v1469
      %v1472 = vmul.f32 %v386, %v1470
      %v1473 = vadd.f32 %v1463, %v1471
      %v1474 = vadd.f32 %v1464, %v1472
      %1475 = vrot.lane.b32.xlu0 %v1235, 113
      %v1476 = vpop.permute.xlu0 %1475
      %1477 = vrot.lane.b32.xlu0 %v1236, 113
      %v1478 = vpop.permute.xlu0 %1477
      %v1479 = vsel %vm368, %v1476, %v1478
      %v1480 = vsel %vm368, %v1478, %v1476
      %v1481 = vmul.f32 %v398, %v1479
      %v1482 = vmul.f32 %v399, %v1480
      %v1483 = vadd.f32 %v1473, %v1481
      %v1484 = vadd.f32 %v1474, %v1482
      %1485 = vrot.lane.b32.xlu0 %v1237, 113
      %v1486 = vpop.permute.xlu0 %1485
      %1487 = vrot.lane.b32.xlu0 %v1238, 113
      %v1488 = vpop.permute.xlu0 %1487
      %v1489 = vsel %vm368, %v1486, %v1488
      %v1490 = vsel %vm368, %v1488, %v1486
      %v1491 = vmul.f32 %v411, %v1489
      %v1492 = vmul.f32 %v412, %v1490
      %v1493 = vadd.f32 %v1483, %v1491
      %v1494 = vadd.f32 %v1484, %v1492
      %1495 = vrot.lane.b32.xlu0 %v1231, 112
      %v1496 = vpop.permute.xlu0 %1495
      %1497 = vrot.lane.b32.xlu0 %v1232, 112
      %v1498 = vpop.permute.xlu0 %1497
      %v1499 = vsel %vm421, %v1496, %v1498
      %v1500 = vsel %vm421, %v1498, %v1496
      %v1501 = vmul.f32 %v425, %v1499
      %v1502 = vmul.f32 %v426, %v1500
      %v1503 = vadd.f32 %v1493, %v1501
      %v1504 = vadd.f32 %v1494, %v1502
      %1505 = vrot.lane.b32.xlu0 %v1233, 112
      %v1506 = vpop.permute.xlu0 %1505
      %1507 = vrot.lane.b32.xlu0 %v1234, 112
      %v1508 = vpop.permute.xlu0 %1507
      %v1509 = vsel %vm421, %v1506, %v1508
      %v1510 = vsel %vm421, %v1508, %v1506
      %v1511 = vmul.f32 %v438, %v1509
      %v1512 = vmul.f32 %v439, %v1510
      %v1513 = vadd.f32 %v1503, %v1511
      %v1514 = vadd.f32 %v1504, %v1512
      %1515 = vrot.lane.b32.xlu0 %v1235, 112
      %v1516 = vpop.permute.xlu0 %1515
      %1517 = vrot.lane.b32.xlu0 %v1236, 112
      %v1518 = vpop.permute.xlu0 %1517
      %v1519 = vsel %vm421, %v1516, %v1518
      %v1520 = vsel %vm421, %v1518, %v1516
      %v1521 = vmul.f32 %v451, %v1519
      %v1522 = vmul.f32 %v452, %v1520
      %v1523 = vadd.f32 %v1513, %v1521
      %v1524 = vadd.f32 %v1514, %v1522
      %1525 = vrot.lane.b32.xlu0 %v1237, 112
      %v1526 = vpop.permute.xlu0 %1525
      %1527 = vrot.lane.b32.xlu0 %v1238, 112
      %v1528 = vpop.permute.xlu0 %1527
      %v1529 = vsel %vm421, %v1526, %v1528
      %v1530 = vsel %vm421, %v1528, %v1526
      %v1531 = vmul.f32 %v464, %v1529
      %v1532 = vmul.f32 %v465, %v1530
      %v1533 = vadd.f32 %v1523, %v1531
      %v1534 = vadd.f32 %v1524, %v1532
      %1535 = vrot.lane.b32.xlu0 %v1231, 111
      %v1536 = vpop.permute.xlu0 %1535
      %1537 = vrot.lane.b32.xlu0 %v1232, 111
      %v1538 = vpop.permute.xlu0 %1537
      %v1539 = vsel %vm474, %v1536, %v1538
      %v1540 = vsel %vm474, %v1538, %v1536
      %v1541 = vmul.f32 %v478, %v1539
      %v1542 = vmul.f32 %v479, %v1540
      %v1543 = vadd.f32 %v1533, %v1541
      %v1544 = vadd.f32 %v1534, %v1542
      %1545 = vrot.lane.b32.xlu0 %v1233, 111
      %v1546 = vpop.permute.xlu0 %1545
      %1547 = vrot.lane.b32.xlu0 %v1234, 111
      %v1548 = vpop.permute.xlu0 %1547
      %v1549 = vsel %vm474, %v1546, %v1548
      %v1550 = vsel %vm474, %v1548, %v1546
      %v1551 = vmul.f32 %v491, %v1549
      %v1552 = vmul.f32 %v492, %v1550
      %v1553 = vadd.f32 %v1543, %v1551
      %v1554 = vadd.f32 %v1544, %v1552
      %1555 = vrot.lane.b32.xlu0 %v1235, 111
      %v1556 = vpop.permute.xlu0 %1555
      %1557 = vrot.lane.b32.xlu0 %v1236, 111
      %v1558 = vpop.permute.xlu0 %1557
      %v1559 = vsel %vm474, %v1556, %v1558
      %v1560 = vsel %vm474, %v1558, %v1556
      %v1561 = vmul.f32 %v504, %v1559
      %v1562 = vmul.f32 %v505, %v1560
      %v1563 = vadd.f32 %v1553, %v1561
      %v1564 = vadd.f32 %v1554, %v1562
      %1565 = vrot.lane.b32.xlu0 %v1237, 111
      %v1566 = vpop.permute.xlu0 %1565
      %1567 = vrot.lane.b32.xlu0 %v1238, 111
      %v1568 = vpop.permute.xlu0 %1567
      %v1569 = vsel %vm474, %v1566, %v1568
      %v1570 = vsel %vm474, %v1568, %v1566
      %v1571 = vmul.f32 %v517, %v1569
      %v1572 = vmul.f32 %v518, %v1570
      %v1573 = vadd.f32 %v1563, %v1571
      %v1574 = vadd.f32 %v1564, %v1572
      %v1575 = vmax.f32 %v1573, 0.0
      %v1576 = vmax.f32 %v1574, 0.0
      %v1577 = vadd.f32 %v1227, %v1575
      %v1578 = vadd.f32 %v1228, %v1576
      %v1579 = vmul.f32 %v1577, 0.041666668
      %v1580 = vmul.f32 %v1578, 0.041666668
      %v1581 = vadd.f32 %v62, %v1579
      %v1582 = vadd.f32 %v63, %v1580
    $region30: #{tpu_custom_call.1} parent=1 // loop_footer
      %s61 = sadd.s32 1, %s57
    $region31: #{tpu_custom_call.1} parent=1 // loop_footer_branch
      %56 = sbr.rel target = $region27
    $region32: #{tpu_custom_call.1} parent=1 // loop_exit
      _
    %1583 = vst [vmem:[#allocation8] sm:$0xff] %v62
    %1584 = vst [vmem:[#allocation8 + $0x8] sm:$0xff] %v63
    // Predicated region
    $region33: #{tpu_custom_call.1} parent=1 // pred_check
      _
    $region34: #{tpu_custom_call.1} parent=1 // pred_check_branch
      %1586 = sbr.rel (0) target = $region36
    $region35: #{tpu_custom_call.1} parent=1 // pred_region
      %s1588 = ssub.s32 256, 256
      %1589 = vsyncadd [#allocation4], %s1588
      %s1591 = sshll.u32 [#allocation8], 4
      %s1592 = int_to_ptr.vmem [resolvable:$true] %s1591
      %1594 = dma.vmem_to_hbm [thread:$0]  %s1592, 256, %s3, [#allocation4]
    $region36: #{tpu_custom_call.1} parent=1 // pred_fallthru
      _
    // Predicated region
    $region37: #{tpu_custom_call.1} parent=1 // pred_check
      _
    $region38: #{tpu_custom_call.1} parent=1 // pred_check_branch
      %1596 = sbr.rel (0) target = $region40
    $region39: #{tpu_custom_call.1} parent=1 // pred_region
      %1597 = dma.done [#allocation4], 256
    $region40: #{tpu_custom_call.1} parent=1 // pred_fallthru
      _
    %1598 = vsyncpa [#allocation3], 1
    %1599 = vsyncpa [#allocation6], 1
    %1600 = vsyncpa [#allocation4], 1

</llo_original>
